<compile_context>
chip_gen: v7x
topology: tpu7x:2x2x1
jax: 0.10.0
libtpu: 0.0.40
codegen_flags: <defaults>
</compile_context>

<pallas_src>
import functools
import math

import jax
import jax.numpy as jnp
import numpy as np
from jax.experimental import pallas as pl
from jax.experimental.pallas import tpu as pltpu

_COMPUTE_DTYPE = jnp.bfloat16      # matmul-operand dtype (weights, q/k/v slabs)
_LN_EPS = 1e-5                     # nn.LayerNorm default


# ----------------------------------------------------------------------------
# Block-size / compiler-param helpers
# ----------------------------------------------------------------------------

def _row_block(n, target=512, min_steps=8):
    """Largest multiple-of-8 divisor of n that is <= target and yields at least
    `min_steps` grid steps (pipeline depth + both v7x TensorCores busy)."""
    if n % 8 != 0:
        return n                                   # full-extent block is always legal
    b = max(8, min(target, (n // min_steps) // 8 * 8))
    while n % b != 0:
        b -= 8
    return b


def _col_block(n, target=512):
    """Largest lane-dense (multiple-of-128) divisor of n <= target, else full."""
    if n % 128 != 0:
        return n
    b = min(target, n) // 128 * 128
    while n % b != 0:
        b -= 128
    return b


def _bytes(*specs):
    """Rough byte count from arrays or (shape, dtype) tuples."""
    total = 0
    for s in specs:
        if isinstance(s, tuple):
            shape, dtype = s
            total += int(np.prod(shape)) * np.dtype(dtype).itemsize
        else:
            total += int(np.prod(s.shape)) * np.dtype(s.dtype).itemsize
    return int(total)


def _mosaic_params(semantics, block_bytes, scratch_bytes=0):
    """Explicit scoped-VMEM budget: double-buffered blocks + scratch + headroom,
    clamped to [32 MiB, 64 MiB] so the value is valid on every generation
    (v5e default 16 MiB, v6e/v7x default 32 MiB, v7x physical 64 MiB)."""
    need = int(2.5 * block_bytes) + int(scratch_bytes) + (2 << 20)
    return pltpu.CompilerParams(
        dimension_semantics=semantics,
        vmem_limit_bytes=int(min(64 << 20, max(32 << 20, need))))


# ----------------------------------------------------------------------------
# Fused LayerNorm + N linear projections  (used for ln1+QKV and ln2+Q)
# ----------------------------------------------------------------------------

def _ln_proj_kernel(*refs, eps, n_proj):
    x_ref, g_ref, b_ref = refs[0], refs[1], refs[2]
    w_refs = refs[3:3 + 2 * n_proj:2]
    bias_refs = refs[4:3 + 2 * n_proj:2]
    xn_ref = refs[3 + 2 * n_proj]
    y_refs = refs[4 + 2 * n_proj:]

    x = x_ref[...].astype(jnp.float32)
    mean = jnp.mean(x, axis=-1, keepdims=True)
    var = jnp.mean(jnp.square(x - mean), axis=-1, keepdims=True)
    xn = (x - mean) * jax.lax.rsqrt(var + eps) * g_ref[...] + b_ref[...]
    xn_ref[...] = xn.astype(xn_ref.dtype)
    xn_c = xn.astype(w_refs[0].dtype)                 # bf16 operand for the MXU
    for w_ref, bias_ref, y_ref in zip(w_refs, bias_refs, y_refs):
        y = jnp.dot(xn_c, w_ref[...], preferred_element_type=jnp.float32)
        y_ref[...] = (y + bias_ref[...]).astype(y_ref.dtype)   # f32 epilogue


def ln_proj(x2d, gamma, beta, projections, *, eps=_LN_EPS, out_dtype=_COMPUTE_DTYPE):
    """Fused LayerNorm + one-or-more Linear projections over row blocks.

    projections: list of (w, b) with w (D, Dout_i), b (Dout_i,).
    Returns (x_normed_f32, [proj_0, proj_1, ...])."""
    N, D = x2d.shape
    blk = _row_block(N)
    n_proj = len(projections)

    in_arrays = [x2d, gamma.reshape(1, D), beta.reshape(1, D)]
    in_specs = [
        pl.BlockSpec((blk, D), lambda i: (i, 0)),
        pl.BlockSpec((1, D), lambda i: (0, 0)),
        pl.BlockSpec((1, D), lambda i: (0, 0)),
    ]
    out_shapes = [jax.ShapeDtypeStruct((N, D), jnp.float32)]
    out_specs = [pl.BlockSpec((blk, D), lambda i: (i, 0))]
    flops = 10 * N * D
    blk_bytes = _bytes(((blk, D), x2d.dtype), ((1, D), jnp.float32),
                       ((1, D), jnp.float32), ((blk, D), jnp.float32))
    for w, b in projections:
        dout = w.shape[1]
        in_arrays += [w, b.reshape(1, dout)]
        # TODO(synk): for D >= ~4096 these resident (D, dout) weight blocks
        # should be K-tiled (extra "arbitrary" grid axis + f32 VMEM accumulator);
        # at attention-projection sizes they comfortably fit the explicit budget.
        in_specs += [
            pl.BlockSpec((D, dout), lambda i: (0, 0)),
            pl.BlockSpec((1, dout), lambda i: (0, 0)),
        ]
        out_shapes.append(jax.ShapeDtypeStruct((N, dout), out_dtype))
        out_specs.append(pl.BlockSpec((blk, dout), lambda i: (i, 0)))
        flops += 2 * N * D * dout
        blk_bytes += _bytes((w.shape, w.dtype), ((1, dout), jnp.float32),
                            ((blk, dout), out_dtype))

    cost = pl.CostEstimate(
        flops=int(flops), transcendentals=int(N),
        bytes_accessed=_bytes(*in_arrays,
                              *[(s.shape, s.dtype) for s in out_shapes]))
    outs = pl.pallas_call(
        functools.partial(_ln_proj_kernel, eps=eps, n_proj=n_proj),
        out_shape=tuple(out_shapes),
        grid=(N // blk,),
        in_specs=in_specs,
        out_specs=tuple(out_specs),
        compiler_params=_mosaic_params(("parallel",), blk_bytes),
        cost_estimate=cost,
    )(*in_arrays)
    return outs[0], list(outs[1:])


# ----------------------------------------------------------------------------
# Plain linear (+bias) — used for the encoder-memory K/V projection
# ----------------------------------------------------------------------------

def _linear_kernel(x_ref, w_ref, b_ref, o_ref):
    acc = jnp.dot(x_ref[...].astype(w_ref.dtype), w_ref[...],
                  preferred_element_type=jnp.float32)
    o_ref[...] = (acc + b_ref[...]).astype(o_ref.dtype)


def linear(x2d, w, b, *, out_dtype=_COMPUTE_DTYPE):
    N, Din = x2d.shape
    Dout = w.shape[1]
    blk = _row_block(N)
    blk_bytes = _bytes(((blk, Din), x2d.dtype), (w.shape, w.dtype),
                       ((1, Dout), jnp.float32), ((blk, Dout), out_dtype))
    cost = pl.CostEstimate(
        flops=int(2 * N * Din * Dout), transcendentals=0,
        bytes_accessed=_bytes(x2d, w, b, ((N, Dout), out_dtype)))
    return pl.pallas_call(
        _linear_kernel,
        out_shape=jax.ShapeDtypeStruct((N, Dout), out_dtype),
        grid=(N // blk,),
        in_specs=[
            pl.BlockSpec((blk, Din), lambda i: (i, 0)),
            pl.BlockSpec((Din, Dout), lambda i: (0, 0)),
            pl.BlockSpec((1, Dout), lambda i: (0, 0)),
        ],
        out_specs=pl.BlockSpec((blk, Dout), lambda i: (i, 0)),
        compiler_params=_mosaic_params(("parallel",), blk_bytes),
        cost_estimate=cost,
    )(x2d, w, b.reshape(1, Dout))


# ----------------------------------------------------------------------------
# Fused LayerNorm + FFN + residual, d_ff-tiled:
#   out = xn + b2 + sum_f relu(xn @ W1[:, f] + b1[f]) @ W2[f, :]
# ----------------------------------------------------------------------------

def _ln_ffn_kernel(x_ref, g_ref, b_ref, w1_ref, b1_ref, w2_ref, b2_ref, o_ref,
                   xn_ref, acc_ref, *, eps):
    f = pl.program_id(1)

    @pl.when(f == 0)
    def _():
        x = x_ref[...].astype(jnp.float32)
        mean = jnp.mean(x, axis=-1, keepdims=True)
        var = jnp.mean(jnp.square(x - mean), axis=-1, keepdims=True)
        xn = (x - mean) * jax.lax.rsqrt(var + eps) * g_ref[...] + b_ref[...]
        xn_ref[...] = xn
        acc_ref[...] = xn + b2_ref[...]             # residual + final bias (f32)

    h = jnp.dot(xn_ref[...].astype(w1_ref.dtype), w1_ref[...],
                preferred_element_type=jnp.float32)
    h = jnp.maximum(h + b1_ref[...], 0.0)           # f32 bias + ReLU epilogue
    acc_ref[...] += jnp.dot(h.astype(w2_ref.dtype), w2_ref[...],
                            preferred_element_type=jnp.float32)

    @pl.when(f == pl.num_programs(1) - 1)
    def _():
        o_ref[...] = acc_ref[...].astype(o_ref.dtype)


def ln_ffn(x2d, gamma, beta, w1, b1, w2, b2, *, eps=_LN_EPS):
    N, D = x2d.shape
    F = w1.shape[1]
    blk = _row_block(N)
    tf = _col_block(F)
    blk_bytes = _bytes(((blk, D), x2d.dtype), ((1, D), jnp.float32),
                       ((1, D), jnp.float32), ((D, tf), w1.dtype),
                       ((1, tf), jnp.float32), ((tf, D), w2.dtype),
                       ((1, D), jnp.float32), ((blk, D), jnp.float32))
    scratch_bytes = 2 * blk * D * 4
    cost = pl.CostEstimate(
        flops=int(4 * N * D * F + 12 * N * D), transcendentals=int(N),
        bytes_accessed=_bytes(x2d, gamma, beta, w1, b1, w2, b2,
                              ((N, D), jnp.float32)))
    return pl.pallas_call(
        functools.partial(_ln_ffn_kernel, eps=eps),
        out_shape=jax.ShapeDtypeStruct((N, D), jnp.float32),
        grid=(N // blk, F // tf),
        in_specs=[
            pl.BlockSpec((blk, D), lambda i, f: (i, 0)),
            pl.BlockSpec((1, D), lambda i, f: (0, 0)),
            pl.BlockSpec((1, D), lambda i, f: (0, 0)),
            pl.BlockSpec((D, tf), lambda i, f: (0, f)),
            pl.BlockSpec((1, tf), lambda i, f: (0, f)),
            pl.BlockSpec((tf, D), lambda i, f: (f, 0)),
            pl.BlockSpec((1, D), lambda i, f: (0, 0)),
        ],
        out_specs=pl.BlockSpec((blk, D), lambda i, f: (i, 0)),
        scratch_shapes=[pltpu.VMEM((blk, D), jnp.float32),
                        pltpu.VMEM((blk, D), jnp.float32)],
        compiler_params=_mosaic_params(("parallel", "arbitrary"),
                                       blk_bytes, scratch_bytes),
        cost_estimate=cost,
    )(x2d, gamma.reshape(1, D), beta.reshape(1, D),
      w1, b1.reshape(1, F), w2, b2.reshape(1, D))


# ----------------------------------------------------------------------------
# Multi-head attention: grid (B, Sq/tq, H), head-major blocks, fused output
# projection + residual via a VMEM f32 accumulator over the head axis.
# ----------------------------------------------------------------------------

def _attn_kernel(q_ref, k_ref, v_ref, mask_ref, wo_ref, bo_ref, res_ref, o_ref,
                 acc_ref, *, scale):
    h = pl.program_id(2)

    @pl.when(h == 0)
    def _():
        acc_ref[...] = res_ref[0] + bo_ref[...]      # residual + output bias (f32)

    q = q_ref[0, 0].astype(jnp.float32)              # (tq, dk)
    k = k_ref[0, 0].astype(jnp.float32)              # (Sk, dk)
    s = jax.lax.dot_general(q, k, (((1,), (1,)), ((), ())),
                            preferred_element_type=jnp.float32)   # (tq, Sk)
    s = s * scale + mask_ref[...]
    s = s - jnp.max(s, axis=-1, keepdims=True)
    p = jnp.exp(s)
    p = p * pl.reciprocal(jnp.sum(p, axis=-1, keepdims=True), approx=True)
    ctx = jnp.dot(p.astype(v_ref.dtype), v_ref[0, 0],
                  preferred_element_type=jnp.float32)             # (tq, dk)
    acc_ref[...] += jnp.dot(ctx.astype(wo_ref.dtype), wo_ref[0],
                            preferred_element_type=jnp.float32)   # (tq, D)

    @pl.when(h == pl.num_programs(2) - 1)
    def _():
        o_ref[0] = acc_ref[...].astype(o_ref.dtype)


def attention(q, k, v, mask_add, wo, bo, residual):
    """q: (B,H,Sq,dk) bf16, k/v: (B,H,Sk,dk) bf16, mask_add: (Sq,Sk) f32 additive,
    wo: (D,D) bf16, residual: (B,Sq,D) f32.  Returns residual + MHA @ Wo + bo."""
    B, H, Sq, dk = q.shape
    Sk = k.shape[2]
    D = H * dk
    tq = _row_block(Sq, target=256, min_steps=2)
    scale = 1.0 / math.sqrt(dk)
    wo_hm = wo.reshape(H, dk, D)                     # head-major Wo row slices
    blk_bytes = _bytes(((1, 1, tq, dk), q.dtype), ((1, 1, Sk, dk), k.dtype),
                       ((1, 1, Sk, dk), v.dtype), ((tq, Sk), jnp.float32),
                       ((1, dk, D), wo.dtype), ((1, D), jnp.float32),
                       ((1, tq, D), jnp.float32), ((1, tq, D), jnp.float32))
    cost = pl.CostEstimate(
        flops=int(4 * B * H * Sq * Sk * dk + 2 * B * Sq * D * D),
        transcendentals=int(B * H * Sq * (Sk + 1)),
        bytes_accessed=_bytes(q, k, v, mask_add, wo, bo, residual,
                              ((B, Sq, D), jnp.float32)))
    # TODO(synk): for long Sk turn the key/value extent into a flash-style grid
    # axis (running max/denominator in VMEM scratch) so the (tq, Sk) score tile
    # is bounded; unnecessary at these sequence lengths.
    return pl.pallas_call(
        functools.partial(_attn_kernel, scale=scale),
        out_shape=jax.ShapeDtypeStruct((B, Sq, D), jnp.float32),
        grid=(B, Sq // tq, H),
        in_specs=[
            pl.BlockSpec((1, 1, tq, dk), lambda b, i, h: (b, h, i, 0)),
            pl.BlockSpec((1, 1, Sk, dk), lambda b, i, h: (b, h, 0, 0)),
            pl.BlockSpec((1, 1, Sk, dk), lambda b, i, h: (b, h, 0, 0)),
            pl.BlockSpec((tq, Sk), lambda b, i, h: (i, 0)),   # additive mask
            pl.BlockSpec((1, dk, D), lambda b, i, h: (h, 0, 0)),
            pl.BlockSpec((1, D), lambda b, i, h: (0, 0)),
            pl.BlockSpec((1, tq, D), lambda b, i, h: (b, i, 0)),
        ],
        out_specs=pl.BlockSpec((1, tq, D), lambda b, i, h: (b, i, 0)),
        scratch_shapes=[pltpu.VMEM((tq, D), jnp.float32)],
        compiler_params=_mosaic_params(("parallel", "parallel", "arbitrary"),
                                       blk_bytes, tq * D * 4),
        cost_estimate=cost,
    )(q, k, v, mask_add, wo_hm, bo.reshape(1, D), residual)


# ----------------------------------------------------------------------------
# Final LayerNorm + vocab projection, vocab-column tiled (lane-dense logits)
# ----------------------------------------------------------------------------

def _ln_out_kernel(x_ref, g_ref, b_ref, w_ref, bias_ref, o_ref, *, eps):
    x = x_ref[...].astype(jnp.float32)
    mean = jnp.mean(x, axis=-1, keepdims=True)
    var = jnp.mean(jnp.square(x - mean), axis=-1, keepdims=True)
    xn = (x - mean) * jax.lax.rsqrt(var + eps) * g_ref[...] + b_ref[...]
    y = jnp.dot(xn.astype(w_ref.dtype), w_ref[...],
                preferred_element_type=jnp.float32)
    o_ref[...] = (y + bias_ref[...]).astype(o_ref.dtype)


def ln_out_proj(x2d, gamma, beta, w, b, *, eps=_LN_EPS):
    N, D = x2d.shape
    V = w.shape[1]
    blk = _row_block(N)
    tv = _col_block(V, target=1024)
    blk_bytes = _bytes(((blk, D), x2d.dtype), ((1, D), jnp.float32),
                       ((1, D), jnp.float32), ((D, tv), w.dtype),
                       ((1, tv), jnp.float32), ((blk, tv), jnp.float32))
    cost = pl.CostEstimate(
        flops=int(2 * N * D * V + 10 * N * D * (V // tv)),
        transcendentals=int(N * (V // tv)),
        bytes_accessed=_bytes(x2d, gamma, beta, w, b, ((N, V), jnp.float32)))
    return pl.pallas_call(
        functools.partial(_ln_out_kernel, eps=eps),
        out_shape=jax.ShapeDtypeStruct((N, V), jnp.float32),
        grid=(N // blk, V // tv),
        in_specs=[
            pl.BlockSpec((blk, D), lambda i, v: (i, 0)),
            pl.BlockSpec((1, D), lambda i, v: (0, 0)),
            pl.BlockSpec((1, D), lambda i, v: (0, 0)),
            pl.BlockSpec((D, tv), lambda i, v: (0, v)),
            pl.BlockSpec((1, tv), lambda i, v: (0, v)),
        ],
        out_specs=pl.BlockSpec((blk, tv), lambda i, v: (i, v)),
        compiler_params=_mosaic_params(("parallel", "parallel"), blk_bytes),
        cost_estimate=cost,
    )(x2d, gamma.reshape(1, D), beta.reshape(1, D), w, b.reshape(1, V))


# ----------------------------------------------------------------------------
# Model glue (reshapes / embedding / parameter handling) in plain JAX
# ----------------------------------------------------------------------------

def _split_heads(x2d, B, S, H, dk):
    # TODO(synk): head split is layout plumbing left to XLA (a single HBM
    # transpose); it keeps every in-kernel dot free of dk-wide lane slicing.
    return x2d.reshape(B, S, H, dk).transpose(0, 2, 1, 3)


def decoder_layer(x, memory, p, n_head, src_mask_add, tgt_mask_add):
    B, S, D = x.shape
    Sm = memory.shape[1]
    dk = D // n_head

    # norm1 -> fused QKV projection (x read once) -> self-attn (+Wo, +residual).
    # TODO(synk): optionally fuse the QKV projection into the attention kernel
    # (resident wq/wkv) to avoid the bf16 q/kv HBM round trip.
    xn, (q, kv) = ln_proj(x.reshape(-1, D), p["ln1_g"], p["ln1_b"],
                          [(p["self"]["wq"], p["self"]["bq"]),
                           (p["self"]["wkv"], p["self"]["bkv"])])
    x = attention(_split_heads(q, B, S, n_head, dk),
                  _split_heads(kv[:, :D], B, S, n_head, dk),
                  _split_heads(kv[:, D:], B, S, n_head, dk),
                  tgt_mask_add, p["self"]["wo"], p["self"]["bo"],
                  xn.reshape(B, S, D))

    # norm2 -> Q projection; K/V projected from the encoder memory; cross-attn.
    xn, (q,) = ln_proj(x.reshape(-1, D), p["ln2_g"], p["ln2_b"],
                       [(p["cross"]["wq"], p["cross"]["bq"])])
    kv_mem = linear(memory.reshape(-1, D), p["cross"]["wkv"], p["cross"]["bkv"])
    x = attention(_split_heads(q, B, S, n_head, dk),
                  _split_heads(kv_mem[:, :D], B, Sm, n_head, dk),
                  _split_heads(kv_mem[:, D:], B, Sm, n_head, dk),
                  src_mask_add, p["cross"]["wo"], p["cross"]["bo"],
                  xn.reshape(B, S, D))

    # norm3 -> FFN -> residual, d_ff-tiled in one fused kernel.
    x = ln_ffn(x.reshape(-1, D), p["ln3_g"], p["ln3_b"],
               p["ff_w1"], p["ff_b1"], p["ff_w2"], p["ff_b2"]).reshape(B, S, D)
    return x


def sinusoidal_pe(seq_len, d_model):
    pos = np.arange(seq_len)[:, None].astype(np.float64)
    i = np.arange(d_model)[None, :]
    angle = pos / np.power(10000.0, (2 * (i // 2)) / d_model)
    pe = np.where(i % 2 == 0, np.sin(angle), np.cos(angle))
    return jnp.asarray(pe, dtype=jnp.float32)


def decoder_forward(params, tokens, memory, src_mask_add, tgt_mask_add, *, n_head):
    B, S = tokens.shape
    D = params["embedding"].shape[1]
    # TODO(synk): embedding gather has no clean dense-tile Pallas formulation at
    # this size; left to XLA.  Positional encoding is a trace-time constant.
    x = params["embedding"][tokens]                    # [B, S, D] f32
    x = x + sinusoidal_pe(S, D)[None]                  # positional encoding
    for lp in params["layers"]:
        x = decoder_layer(x, memory, lp, n_head, src_mask_add, tgt_mask_add)
    logits = ln_out_proj(x.reshape(-1, D), params["norm_g"], params["norm_b"],
                         params["out_w"], params["out_b"])
    return logits.reshape(B, S, -1)


# ----------------------------------------------------------------------------
# Deterministic parameter init (matmul weights stored in bf16)
# ----------------------------------------------------------------------------

def init_params(key, vocab_size, n_layer, n_head, d_model, d_ff):
    def nrm(k, shape, scale=0.02, dtype=_COMPUTE_DTYPE):
        return (scale * jax.random.normal(k, shape, dtype=jnp.float32)).astype(dtype)

    keys = iter(jax.random.split(key, 16 * n_layer + 8))

    def attn_params():
        return {
            "wq": nrm(next(keys), (d_model, d_model)),
            "bq": jnp.zeros((d_model,), jnp.float32),
            # fused K/V projection: one (D, 2D) weight — K in [:, :D], V in [:, D:]
            "wkv": nrm(next(keys), (d_model, 2 * d_model)),
            "bkv": jnp.zeros((2 * d_model,), jnp.float32),
            "wo": nrm(next(keys), (d_model, d_model)),
            "bo": jnp.zeros((d_model,), jnp.float32),
        }

    layers = []
    for _ in range(n_layer):
        layers.append({
            "self": attn_params(),
            "cross": attn_params(),
            "ff_w1": nrm(next(keys), (d_model, d_ff)),
            "ff_b1": jnp.zeros((d_ff,), jnp.float32),
            "ff_w2": nrm(next(keys), (d_ff, d_model)),
            "ff_b2": jnp.zeros((d_model,), jnp.float32),
            "ln1_g": jnp.ones((d_model,), jnp.float32), "ln1_b": jnp.zeros((d_model,), jnp.float32),
            "ln2_g": jnp.ones((d_model,), jnp.float32), "ln2_b": jnp.zeros((d_model,), jnp.float32),
            "ln3_g": jnp.ones((d_model,), jnp.float32), "ln3_b": jnp.zeros((d_model,), jnp.float32),
        })

    return {
        "embedding": nrm(next(keys), (vocab_size, d_model), scale=1.0, dtype=jnp.float32),
        "layers": layers,
        "norm_g": jnp.ones((d_model,), jnp.float32),
        "norm_b": jnp.zeros((d_model,), jnp.float32),
        "out_w": nrm(next(keys), (d_model, vocab_size)),
        "out_b": jnp.zeros((vocab_size,), jnp.float32),
    }


# ----------------------------------------------------------------------------
# Main
# ----------------------------------------------------------------------------

if __name__ == "__main__":
    vocab_size, n_layer, n_head, d_model, d_ff = 64, 2, 4, 32, 64
    B, S_tgt, S_src = 2, 8, 8

    key = jax.random.PRNGKey(0)
    k_par, k_tok, k_mem = jax.random.split(key, 3)

    params = init_params(k_par, vocab_size, n_layer, n_head, d_model, d_ff)
    tokens = jax.random.randint(k_tok, (B, S_tgt), 0, vocab_size, dtype=jnp.int32)
    memory = jax.random.normal(k_mem, (B, S_src, d_model), dtype=jnp.float32)

    # Additive masks: 0 = attend, -1e9 = masked (tgt causal; src_mask=None -> zeros).
    causal = jnp.tril(jnp.ones((S_tgt, S_tgt), dtype=jnp.float32))
    tgt_mask_add = jnp.where(causal > 0, 0.0, -1e9).astype(jnp.float32)
    src_mask_add = jnp.zeros((S_tgt, S_src), dtype=jnp.float32)

    fwd = jax.jit(functools.partial(decoder_forward, n_head=n_head))
    logits = fwd(params, tokens, memory, src_mask_add, tgt_mask_add)
    jax.block_until_ready(logits)

    assert logits.shape == (B, S_tgt, vocab_size)
    assert bool(jnp.all(jnp.isfinite(logits)))
    print("KERNEL_OK")
</pallas_src>

<mosaic_0001>
module attributes {stable_mosaic.version = 11 : i64} {
  func.func @_ln_proj_kernel(%arg0: i32, %arg1: memref<8x32xf32, #tpu.memory_space<vmem>>, %arg2: memref<1x32xf32, #tpu.memory_space<vmem>>, %arg3: memref<1x32xf32, #tpu.memory_space<vmem>>, %arg4: memref<32x32xbf16, #tpu.memory_space<vmem>>, %arg5: memref<1x32xf32, #tpu.memory_space<vmem>>, %arg6: memref<32x64xbf16, #tpu.memory_space<vmem>>, %arg7: memref<1x64xf32, #tpu.memory_space<vmem>>, %arg8: memref<8x32xf32, #tpu.memory_space<vmem>>, %arg9: memref<8x32xbf16, #tpu.memory_space<vmem>>, %arg10: memref<8x64xbf16, #tpu.memory_space<vmem>>) attributes {dimension_semantics = [#tpu.dimension_semantics<parallel>], iteration_bounds = array<i64: 2>, scalar_prefetch = 0 : i64, scratch_operands = 0 : i64, tpu.core_type = #tpu.core_type<tc>, window_params = [{transform_indices = @transform_0, window_bounds = array<i64: 8, 32>}, {pipeline_mode = #tpu.pipeline_mode<synchronous>, transform_indices = @transform_1, window_bounds = array<i64: 1, 32>}, {pipeline_mode = #tpu.pipeline_mode<synchronous>, transform_indices = @transform_2, window_bounds = array<i64: 1, 32>}, {pipeline_mode = #tpu.pipeline_mode<synchronous>, transform_indices = @transform_3, window_bounds = array<i64: 32, 32>}, {pipeline_mode = #tpu.pipeline_mode<synchronous>, transform_indices = @transform_4, window_bounds = array<i64: 1, 32>}, {pipeline_mode = #tpu.pipeline_mode<synchronous>, transform_indices = @transform_5, window_bounds = array<i64: 32, 64>}, {pipeline_mode = #tpu.pipeline_mode<synchronous>, transform_indices = @transform_6, window_bounds = array<i64: 1, 64>}, {transform_indices = @transform_7, window_bounds = array<i64: 8, 32>}, {transform_indices = @transform_8, window_bounds = array<i64: 8, 32>}, {transform_indices = @transform_9, window_bounds = array<i64: 8, 64>}]} {
    %c0 = arith.constant 0 : index
    %c0_0 = arith.constant 0 : index
    %0 = vector.load %arg1[%c0, %c0_0] : memref<8x32xf32, #tpu.memory_space<vmem>>, vector<8x32xf32>
    %cst = arith.constant dense<0.000000e+00> : vector<8xf32>
    %1 = vector.multi_reduction <add>, %0, %cst [1] : vector<8x32xf32> to vector<8xf32>
    %2 = vector.shape_cast %1 : vector<8xf32> to vector<8x1xf32>
    %cst_1 = arith.constant 3.200000e+01 : f32
    %3 = vector.broadcast %cst_1 : f32 to vector<8x1xf32>
    %4 = arith.divf %2, %3 : vector<8x1xf32>
    %5 = vector.broadcast %4 : vector<8x1xf32> to vector<8x32xf32>
    %6 = arith.subf %0, %5 : vector<8x32xf32>
    %7 = arith.mulf %6, %6 : vector<8x32xf32>
    %cst_2 = arith.constant dense<0.000000e+00> : vector<8xf32>
    %8 = vector.multi_reduction <add>, %7, %cst_2 [1] : vector<8x32xf32> to vector<8xf32>
    %9 = vector.shape_cast %8 : vector<8xf32> to vector<8x1xf32>
    %cst_3 = arith.constant 3.200000e+01 : f32
    %10 = vector.broadcast %cst_3 : f32 to vector<8x1xf32>
    %11 = arith.divf %9, %10 : vector<8x1xf32>
    %12 = vector.broadcast %4 : vector<8x1xf32> to vector<8x32xf32>
    %13 = arith.subf %0, %12 : vector<8x32xf32>
    %cst_4 = arith.constant 9.99999974E-6 : f32
    %14 = vector.broadcast %cst_4 : f32 to vector<8x1xf32>
    %15 = arith.addf %11, %14 : vector<8x1xf32>
    %16 = math.rsqrt %15 : vector<8x1xf32>
    %17 = vector.broadcast %16 : vector<8x1xf32> to vector<8x32xf32>
    %18 = arith.mulf %13, %17 : vector<8x32xf32>
    %c0_5 = arith.constant 0 : index
    %c0_6 = arith.constant 0 : index
    %19 = vector.load %arg2[%c0_5, %c0_6] : memref<1x32xf32, #tpu.memory_space<vmem>>, vector<1x32xf32>
    %20 = vector.broadcast %19 : vector<1x32xf32> to vector<8x32xf32>
    %21 = arith.mulf %18, %20 : vector<8x32xf32>
    %c0_7 = arith.constant 0 : index
    %c0_8 = arith.constant 0 : index
    %22 = vector.load %arg3[%c0_7, %c0_8] : memref<1x32xf32, #tpu.memory_space<vmem>>, vector<1x32xf32>
    %23 = vector.broadcast %22 : vector<1x32xf32> to vector<8x32xf32>
    %24 = arith.addf %21, %23 : vector<8x32xf32>
    %c0_9 = arith.constant 0 : index
    %c0_10 = arith.constant 0 : index
    %25 = vector.load %arg8[%c0_9, %c0_10] : memref<8x32xf32, #tpu.memory_space<vmem>>, vector<8x32xf32>
    tpu.vector_store %arg8[%c0_9, %c0_10], %24 {strides = array<i32>} : memref<8x32xf32, #tpu.memory_space<vmem>>, vector<8x32xf32>,
    %26 = arith.truncf %24 : vector<8x32xf32> to vector<8x32xbf16>
    %c0_11 = arith.constant 0 : index
    %c0_12 = arith.constant 0 : index
    %27 = vector.load %arg4[%c0_11, %c0_12] : memref<32x32xbf16, #tpu.memory_space<vmem>>, vector<32x32xbf16>
    %cst_13 = arith.constant dense<0.000000e+00> : vector<8x32xf32>
    %28 = tpu.matmul %26, %27, %cst_13 {dimension_numbers = #tpu.dot_dimension_numbers<[1], [0], [0], [1], [0, 0, 1, 1], [], []>} : vector<8x32xbf16>, vector<32x32xbf16>, vector<8x32xf32> -> vector<8x32xf32>
    %c0_14 = arith.constant 0 : index
    %c0_15 = arith.constant 0 : index
    %29 = vector.load %arg5[%c0_14, %c0_15] : memref<1x32xf32, #tpu.memory_space<vmem>>, vector<1x32xf32>
    %30 = vector.broadcast %29 : vector<1x32xf32> to vector<8x32xf32>
    %31 = arith.addf %28, %30 : vector<8x32xf32>
    %32 = arith.truncf %31 : vector<8x32xf32> to vector<8x32xbf16>
    %c0_16 = arith.constant 0 : index
    %c0_17 = arith.constant 0 : index
    %33 = vector.load %arg9[%c0_16, %c0_17] : memref<8x32xbf16, #tpu.memory_space<vmem>>, vector<8x32xbf16>
    tpu.vector_store %arg9[%c0_16, %c0_17], %32 {strides = array<i32>} : memref<8x32xbf16, #tpu.memory_space<vmem>>, vector<8x32xbf16>,
    %c0_18 = arith.constant 0 : index
    %c0_19 = arith.constant 0 : index
    %34 = vector.load %arg6[%c0_18, %c0_19] : memref<32x64xbf16, #tpu.memory_space<vmem>>, vector<32x64xbf16>
    %cst_20 = arith.constant dense<0.000000e+00> : vector<8x64xf32>
    %35 = tpu.matmul %26, %34, %cst_20 {dimension_numbers = #tpu.dot_dimension_numbers<[1], [0], [0], [1], [0, 0, 1, 1], [], []>} : vector<8x32xbf16>, vector<32x64xbf16>, vector<8x64xf32> -> vector<8x64xf32>
    %c0_21 = arith.constant 0 : index
    %c0_22 = arith.constant 0 : index
    %36 = vector.load %arg7[%c0_21, %c0_22] : memref<1x64xf32, #tpu.memory_space<vmem>>, vector<1x64xf32>
    %37 = vector.broadcast %36 : vector<1x64xf32> to vector<8x64xf32>
    %38 = arith.addf %35, %37 : vector<8x64xf32>
    %39 = arith.truncf %38 : vector<8x64xf32> to vector<8x64xbf16>
    %c0_23 = arith.constant 0 : index
    %c0_24 = arith.constant 0 : index
    %40 = vector.load %arg10[%c0_23, %c0_24] : memref<8x64xbf16, #tpu.memory_space<vmem>>, vector<8x64xbf16>
    tpu.vector_store %arg10[%c0_23, %c0_24], %39 {strides = array<i32>} : memref<8x64xbf16, #tpu.memory_space<vmem>>, vector<8x64xbf16>,
    return
  }
  func.func @transform_0(%arg0: i32) -> (i32, i32) {
    %c0_i32 = arith.constant 0 : i32
    %c0_i32_0 = arith.constant 0 : i32
    return %arg0, %c0_i32 : i32, i32
  }
  func.func @transform_1(%arg0: i32) -> (i32, i32) {
    %c0_i32 = arith.constant 0 : i32
    %c0_i32_0 = arith.constant 0 : i32
    %c0_i32_1 = arith.constant 0 : i32
    return %c0_i32, %c0_i32_0 : i32, i32
  }
  func.func @transform_2(%arg0: i32) -> (i32, i32) {
    %c0_i32 = arith.constant 0 : i32
    %c0_i32_0 = arith.constant 0 : i32
    %c0_i32_1 = arith.constant 0 : i32
    return %c0_i32, %c0_i32_0 : i32, i32
  }
  func.func @transform_3(%arg0: i32) -> (i32, i32) {
    %c0_i32 = arith.constant 0 : i32
    %c0_i32_0 = arith.constant 0 : i32
    %c0_i32_1 = arith.constant 0 : i32
    return %c0_i32, %c0_i32_0 : i32, i32
  }
  func.func @transform_4(%arg0: i32) -> (i32, i32) {
    %c0_i32 = arith.constant 0 : i32
    %c0_i32_0 = arith.constant 0 : i32
    %c0_i32_1 = arith.constant 0 : i32
    return %c0_i32, %c0_i32_0 : i32, i32
  }
  func.func @transform_5(%arg0: i32) -> (i32, i32) {
    %c0_i32 = arith.constant 0 : i32
    %c0_i32_0 = arith.constant 0 : i32
    %c0_i32_1 = arith.constant 0 : i32
    return %c0_i32, %c0_i32_0 : i32, i32
  }
  func.func @transform_6(%arg0: i32) -> (i32, i32) {
    %c0_i32 = arith.constant 0 : i32
    %c0_i32_0 = arith.constant 0 : i32
    %c0_i32_1 = arith.constant 0 : i32
    return %c0_i32, %c0_i32_0 : i32, i32
  }
  func.func @transform_7(%arg0: i32) -> (i32, i32) {
    %c0_i32 = arith.constant 0 : i32
    %c0_i32_0 = arith.constant 0 : i32
    return %arg0, %c0_i32 : i32, i32
  }
  func.func @transform_8(%arg0: i32) -> (i32, i32) {
    %c0_i32 = arith.constant 0 : i32
    %c0_i32_0 = arith.constant 0 : i32
    return %arg0, %c0_i32 : i32, i32
  }
  func.func @transform_9(%arg0: i32) -> (i32, i32) {
    %c0_i32 = arith.constant 0 : i32
    %c0_i32_0 = arith.constant 0 : i32
    return %arg0, %c0_i32 : i32, i32
  }
}

module attributes {stable_mosaic.version = 11 : i64} {
  func.func @_attn_kernel(%arg0: i32, %arg1: i32, %arg2: i32, %arg3: memref<1x1x8x8xbf16, #tpu.memory_space<vmem>>, %arg4: memref<1x1x8x8xbf16, #tpu.memory_space<vmem>>, %arg5: memref<1x1x8x8xbf16, #tpu.memory_space<vmem>>, %arg6: memref<8x8xf32, #tpu.memory_space<vmem>>, %arg7: memref<1x8x32xbf16, #tpu.memory_space<vmem>>, %arg8: memref<1x32xf32, #tpu.memory_space<vmem>>, %arg9: memref<1x8x32xf32, #tpu.memory_space<vmem>>, %arg10: memref<1x8x32xf32, #tpu.memory_space<vmem>>, %arg11: memref<8x32xf32, #tpu.memory_space<vmem>>) attributes {dimension_semantics = [#tpu.dimension_semantics<parallel>, #tpu.dimension_semantics<parallel>, #tpu.dimension_semantics<arbitrary>], iteration_bounds = array<i64: 2, 1, 4>, scalar_prefetch = 0 : i64, scratch_operands = 1 : i64, tpu.core_type = #tpu.core_type<tc>, window_params = [{transform_indices = @transform_0, window_bounds = array<i64: 1, 1, 8, 8>}, {transform_indices = @transform_1, window_bounds = array<i64: 1, 1, 8, 8>}, {transform_indices = @transform_2, window_bounds = array<i64: 1, 1, 8, 8>}, {transform_indices = @transform_3, window_bounds = array<i64: 8, 8>}, {transform_indices = @transform_4, window_bounds = array<i64: 1, 8, 32>}, {pipeline_mode = #tpu.pipeline_mode<synchronous>, transform_indices = @transform_5, window_bounds = array<i64: 1, 32>}, {transform_indices = @transform_6, window_bounds = array<i64: 1, 8, 32>}, {transform_indices = @transform_7, window_bounds = array<i64: 1, 8, 32>}]} {
    %c0_i32 = arith.constant 0 : i32
    %0 = arith.cmpi eq, %arg2, %c0_i32 : i32
    %1 = arith.extui %0 : i1 to i32
    %c0_i32_0 = arith.constant 0 : i32
    %2 = arith.cmpi ne, %1, %c0_i32_0 : i32
    scf.if %2 {
      %c0_27 = arith.constant 0 : index
      %c0_28 = arith.constant 0 : index
      %c0_29 = arith.constant 0 : index
      %38 = vector.load %arg9[%c0_27, %c0_28, %c0_29] : memref<1x8x32xf32, #tpu.memory_space<vmem>>, vector<1x8x32xf32>
      %39 = vector.shape_cast %38 : vector<1x8x32xf32> to vector<8x32xf32>
      %c0_30 = arith.constant 0 : index
      %c0_31 = arith.constant 0 : index
      %40 = vector.load %arg8[%c0_30, %c0_31] : memref<1x32xf32, #tpu.memory_space<vmem>>, vector<1x32xf32>
      %41 = vector.broadcast %40 : vector<1x32xf32> to vector<8x32xf32>
      %42 = arith.addf %39, %41 : vector<8x32xf32>
      %c0_32 = arith.constant 0 : index
      %c0_33 = arith.constant 0 : index
      %43 = vector.load %arg11[%c0_32, %c0_33] : memref<8x32xf32, #tpu.memory_space<vmem>>, vector<8x32xf32>
      tpu.vector_store %arg11[%c0_32, %c0_33], %42 {strides = array<i32>} : memref<8x32xf32, #tpu.memory_space<vmem>>, vector<8x32xf32>,
    } else {
    }
    %c0 = arith.constant 0 : index
    %c0_1 = arith.constant 0 : index
    %c0_2 = arith.constant 0 : index
    %c0_3 = arith.constant 0 : index
    %3 = vector.load %arg3[%c0, %c0_1, %c0_2, %c0_3] : memref<1x1x8x8xbf16, #tpu.memory_space<vmem>>, vector<1x1x8x8xbf16>
    %4 = vector.shape_cast %3 : vector<1x1x8x8xbf16> to vector<8x8xbf16>
    %5 = arith.extf %4 : vector<8x8xbf16> to vector<8x8xf32>
    %c0_4 = arith.constant 0 : index
    %c0_5 = arith.constant 0 : index
    %c0_6 = arith.constant 0 : index
    %c0_7 = arith.constant 0 : index
    %6 = vector.load %arg4[%c0_4, %c0_5, %c0_6, %c0_7] : memref<1x1x8x8xbf16, #tpu.memory_space<vmem>>, vector<1x1x8x8xbf16>
    %7 = vector.shape_cast %6 : vector<1x1x8x8xbf16> to vector<8x8xbf16>
    %8 = arith.extf %7 : vector<8x8xbf16> to vector<8x8xf32>
    %cst = arith.constant dense<0.000000e+00> : vector<8x8xf32>
    %9 = tpu.matmul %5, %8, %cst {dimension_numbers = #tpu.dot_dimension_numbers<[1], [1], [0], [0], [0, 0, 1, 0], [], []>} : vector<8x8xf32>, vector<8x8xf32>, vector<8x8xf32> -> vector<8x8xf32>
    %cst_8 = arith.constant 0.353553385 : f32
    %10 = vector.broadcast %cst_8 : f32 to vector<8x8xf32>
    %11 = arith.mulf %9, %10 : vector<8x8xf32>
    %c0_9 = arith.constant 0 : index
    %c0_10 = arith.constant 0 : index
    %12 = vector.load %arg6[%c0_9, %c0_10] : memref<8x8xf32, #tpu.memory_space<vmem>>, vector<8x8xf32>
    %13 = arith.addf %11, %12 : vector<8x8xf32>
    %cst_11 = arith.constant dense<0xFF800000> : vector<8xf32>
    %14 = vector.multi_reduction <maximumf>, %13, %cst_11 [1] : vector<8x8xf32> to vector<8xf32>
    %15 = vector.shape_cast %14 : vector<8xf32> to vector<8x1xf32>
    %16 = vector.broadcast %15 : vector<8x1xf32> to vector<8x8xf32>
    %17 = arith.subf %13, %16 : vector<8x8xf32>
    %18 = math.exp %17 : vector<8x8xf32>
    %cst_12 = arith.constant dense<0.000000e+00> : vector<8xf32>
    %19 = vector.multi_reduction <add>, %18, %cst_12 [1] : vector<8x8xf32> to vector<8xf32>
    %20 = vector.shape_cast %19 : vector<8xf32> to vector<8x1xf32>
    %21 = tpu.reciprocal %20 {approx = true} : vector<8x1xf32> -> vector<8x1xf32>
    %22 = vector.broadcast %21 : vector<8x1xf32> to vector<8x8xf32>
    %23 = arith.mulf %18, %22 : vector<8x8xf32>
    %24 = arith.truncf %23 : vector<8x8xf32> to vector<8x8xbf16>
    %c0_13 = arith.constant 0 : index
    %c0_14 = arith.constant 0 : index
    %c0_15 = arith.constant 0 : index
    %c0_16 = arith.constant 0 : index
    %25 = vector.load %arg5[%c0_13, %c0_14, %c0_15, %c0_16] : memref<1x1x8x8xbf16, #tpu.memory_space<vmem>>, vector<1x1x8x8xbf16>
    %26 = vector.shape_cast %25 : vector<1x1x8x8xbf16> to vector<8x8xbf16>
    %cst_17 = arith.constant dense<0.000000e+00> : vector<8x8xf32>
    %27 = tpu.matmul %24, %26, %cst_17 {dimension_numbers = #tpu.dot_dimension_numbers<[1], [0], [0], [1], [0, 0, 1, 1], [], []>} : vector<8x8xbf16>, vector<8x8xbf16>, vector<8x8xf32> -> vector<8x8xf32>
    %c0_18 = arith.constant 0 : index
    %c0_19 = arith.constant 0 : index
    %28 = vector.load %arg11[%c0_18, %c0_19] : memref<8x32xf32, #tpu.memory_space<vmem>>, vector<8x32xf32>
    %29 = arith.truncf %27 : vector<8x8xf32> to vector<8x8xbf16>
    %c0_20 = arith.constant 0 : index
    %c0_21 = arith.constant 0 : index
    %c0_22 = arith.constant 0 : index
    %30 = vector.load %arg7[%c0_20, %c0_21, %c0_22] : memref<1x8x32xbf16, #tpu.memory_space<vmem>>, vector<1x8x32xbf16>
    %31 = vector.shape_cast %30 : vector<1x8x32xbf16> to vector<8x32xbf16>
    %cst_23 = arith.constant dense<0.000000e+00> : vector<8x32xf32>
    %32 = tpu.matmul %29, %31, %cst_23 {dimension_numbers = #tpu.dot_dimension_numbers<[1], [0], [0], [1], [0, 0, 1, 1], [], []>} : vector<8x8xbf16>, vector<8x32xbf16>, vector<8x32xf32> -> vector<8x32xf32>
    %33 = arith.addf %28, %32 : vector<8x32xf32>
    %c0_24 = arith.constant 0 : index
    %c0_25 = arith.constant 0 : index
    %34 = vector.load %arg11[%c0_24, %c0_25] : memref<8x32xf32, #tpu.memory_space<vmem>>, vector<8x32xf32>
    tpu.vector_store %arg11[%c0_24, %c0_25], %33 {strides = array<i32>} : memref<8x32xf32, #tpu.memory_space<vmem>>, vector<8x32xf32>,
    %c3_i32 = arith.constant 3 : i32
    %35 = arith.cmpi eq, %arg2, %c3_i32 : i32
    %36 = arith.extui %35 : i1 to i32
    %c0_i32_26 = arith.constant 0 : i32
    %37 = arith.cmpi ne, %36, %c0_i32_26 : i32
    scf.if %37 {
      %c0_27 = arith.constant 0 : index
      %c0_28 = arith.constant 0 : index
      %38 = vector.load %arg11[%c0_27, %c0_28] : memref<8x32xf32, #tpu.memory_space<vmem>>, vector<8x32xf32>
      %c0_29 = arith.constant 0 : index
      %c0_30 = arith.constant 0 : index
      %c0_31 = arith.constant 0 : index
      %39 = vector.load %arg10[%c0_29, %c0_30, %c0_31] : memref<1x8x32xf32, #tpu.memory_space<vmem>>, vector<1x8x32xf32>
      %40 = vector.shape_cast %39 : vector<1x8x32xf32> to vector<8x32xf32>
      %41 = vector.shape_cast %38 : vector<8x32xf32> to vector<1x8x32xf32>
      tpu.vector_store %arg10[%c0_29, %c0_30, %c0_31], %41 {strides = array<i32>} : memref<1x8x32xf32, #tpu.memory_space<vmem>>, vector<1x8x32xf32>,
    } else {
    }
    return
  }
  func.func @transform_0(%arg0: i32, %arg1: i32, %arg2: i32) -> (i32, i32, i32, i32) {
    %c0_i32 = arith.constant 0 : i32
    %c0_i32_0 = arith.constant 0 : i32
    return %arg0, %arg2, %arg1, %c0_i32 : i32, i32, i32, i32
  }
  func.func @transform_1(%arg0: i32, %arg1: i32, %arg2: i32) -> (i32, i32, i32, i32) {
    %c0_i32 = arith.constant 0 : i32
    %c0_i32_0 = arith.constant 0 : i32
    %c0_i32_1 = arith.constant 0 : i32
    return %arg0, %arg2, %c0_i32, %c0_i32_0 : i32, i32, i32, i32
  }
  func.func @transform_2(%arg0: i32, %arg1: i32, %arg2: i32) -> (i32, i32, i32, i32) {
    %c0_i32 = arith.constant 0 : i32
    %c0_i32_0 = arith.constant 0 : i32
    %c0_i32_1 = arith.constant 0 : i32
    return %arg0, %arg2, %c0_i32, %c0_i32_0 : i32, i32, i32, i32
  }
  func.func @transform_3(%arg0: i32, %arg1: i32, %arg2: i32) -> (i32, i32) {
    %c0_i32 = arith.constant 0 : i32
    %c0_i32_0 = arith.constant 0 : i32
    return %arg1, %c0_i32 : i32, i32
  }
  func.func @transform_4(%arg0: i32, %arg1: i32, %arg2: i32) -> (i32, i32, i32) {
    %c0_i32 = arith.constant 0 : i32
    %c0_i32_0 = arith.constant 0 : i32
    %c0_i32_1 = arith.constant 0 : i32
    return %arg2, %c0_i32, %c0_i32_0 : i32, i32, i32
  }
  func.func @transform_5(%arg0: i32, %arg1: i32, %arg2: i32) -> (i32, i32) {
    %c0_i32 = arith.constant 0 : i32
    %c0_i32_0 = arith.constant 0 : i32
    %c0_i32_1 = arith.constant 0 : i32
    return %c0_i32, %c0_i32_0 : i32, i32
  }
  func.func @transform_6(%arg0: i32, %arg1: i32, %arg2: i32) -> (i32, i32, i32) {
    %c0_i32 = arith.constant 0 : i32
    %c0_i32_0 = arith.constant 0 : i32
    return %arg0, %arg1, %c0_i32 : i32, i32, i32
  }
  func.func @transform_7(%arg0: i32, %arg1: i32, %arg2: i32) -> (i32, i32, i32) {
    %c0_i32 = arith.constant 0 : i32
    %c0_i32_0 = arith.constant 0 : i32
    return %arg0, %arg1, %c0_i32 : i32, i32, i32
  }
}

module attributes {stable_mosaic.version = 11 : i64} {
  func.func @_ln_proj_kernel(%arg0: i32, %arg1: memref<8x32xf32, #tpu.memory_space<vmem>>, %arg2: memref<1x32xf32, #tpu.memory_space<vmem>>, %arg3: memref<1x32xf32, #tpu.memory_space<vmem>>, %arg4: memref<32x32xbf16, #tpu.memory_space<vmem>>, %arg5: memref<1x32xf32, #tpu.memory_space<vmem>>, %arg6: memref<8x32xf32, #tpu.memory_space<vmem>>, %arg7: memref<8x32xbf16, #tpu.memory_space<vmem>>) attributes {dimension_semantics = [#tpu.dimension_semantics<parallel>], iteration_bounds = array<i64: 2>, scalar_prefetch = 0 : i64, scratch_operands = 0 : i64, tpu.core_type = #tpu.core_type<tc>, window_params = [{transform_indices = @transform_0, window_bounds = array<i64: 8, 32>}, {pipeline_mode = #tpu.pipeline_mode<synchronous>, transform_indices = @transform_1, window_bounds = array<i64: 1, 32>}, {pipeline_mode = #tpu.pipeline_mode<synchronous>, transform_indices = @transform_2, window_bounds = array<i64: 1, 32>}, {pipeline_mode = #tpu.pipeline_mode<synchronous>, transform_indices = @transform_3, window_bounds = array<i64: 32, 32>}, {pipeline_mode = #tpu.pipeline_mode<synchronous>, transform_indices = @transform_4, window_bounds = array<i64: 1, 32>}, {transform_indices = @transform_5, window_bounds = array<i64: 8, 32>}, {transform_indices = @transform_6, window_bounds = array<i64: 8, 32>}]} {
    %c0 = arith.constant 0 : index
    %c0_0 = arith.constant 0 : index
    %0 = vector.load %arg1[%c0, %c0_0] : memref<8x32xf32, #tpu.memory_space<vmem>>, vector<8x32xf32>
    %cst = arith.constant dense<0.000000e+00> : vector<8xf32>
    %1 = vector.multi_reduction <add>, %0, %cst [1] : vector<8x32xf32> to vector<8xf32>
    %2 = vector.shape_cast %1 : vector<8xf32> to vector<8x1xf32>
    %cst_1 = arith.constant 3.200000e+01 : f32
    %3 = vector.broadcast %cst_1 : f32 to vector<8x1xf32>
    %4 = arith.divf %2, %3 : vector<8x1xf32>
    %5 = vector.broadcast %4 : vector<8x1xf32> to vector<8x32xf32>
    %6 = arith.subf %0, %5 : vector<8x32xf32>
    %7 = arith.mulf %6, %6 : vector<8x32xf32>
    %cst_2 = arith.constant dense<0.000000e+00> : vector<8xf32>
    %8 = vector.multi_reduction <add>, %7, %cst_2 [1] : vector<8x32xf32> to vector<8xf32>
    %9 = vector.shape_cast %8 : vector<8xf32> to vector<8x1xf32>
    %cst_3 = arith.constant 3.200000e+01 : f32
    %10 = vector.broadcast %cst_3 : f32 to vector<8x1xf32>
    %11 = arith.divf %9, %10 : vector<8x1xf32>
    %12 = vector.broadcast %4 : vector<8x1xf32> to vector<8x32xf32>
    %13 = arith.subf %0, %12 : vector<8x32xf32>
    %cst_4 = arith.constant 9.99999974E-6 : f32
    %14 = vector.broadcast %cst_4 : f32 to vector<8x1xf32>
    %15 = arith.addf %11, %14 : vector<8x1xf32>
    %16 = math.rsqrt %15 : vector<8x1xf32>
    %17 = vector.broadcast %16 : vector<8x1xf32> to vector<8x32xf32>
    %18 = arith.mulf %13, %17 : vector<8x32xf32>
    %c0_5 = arith.constant 0 : index
    %c0_6 = arith.constant 0 : index
    %19 = vector.load %arg2[%c0_5, %c0_6] : memref<1x32xf32, #tpu.memory_space<vmem>>, vector<1x32xf32>
    %20 = vector.broadcast %19 : vector<1x32xf32> to vector<8x32xf32>
    %21 = arith.mulf %18, %20 : vector<8x32xf32>
    %c0_7 = arith.constant 0 : index
    %c0_8 = arith.constant 0 : index
    %22 = vector.load %arg3[%c0_7, %c0_8] : memref<1x32xf32, #tpu.memory_space<vmem>>, vector<1x32xf32>
    %23 = vector.broadcast %22 : vector<1x32xf32> to vector<8x32xf32>
    %24 = arith.addf %21, %23 : vector<8x32xf32>
    %c0_9 = arith.constant 0 : index
    %c0_10 = arith.constant 0 : index
    %25 = vector.load %arg6[%c0_9, %c0_10] : memref<8x32xf32, #tpu.memory_space<vmem>>, vector<8x32xf32>
    tpu.vector_store %arg6[%c0_9, %c0_10], %24 {strides = array<i32>} : memref<8x32xf32, #tpu.memory_space<vmem>>, vector<8x32xf32>,
    %26 = arith.truncf %24 : vector<8x32xf32> to vector<8x32xbf16>
    %c0_11 = arith.constant 0 : index
    %c0_12 = arith.constant 0 : index
    %27 = vector.load %arg4[%c0_11, %c0_12] : memref<32x32xbf16, #tpu.memory_space<vmem>>, vector<32x32xbf16>
    %cst_13 = arith.constant dense<0.000000e+00> : vector<8x32xf32>
    %28 = tpu.matmul %26, %27, %cst_13 {dimension_numbers = #tpu.dot_dimension_numbers<[1], [0], [0], [1], [0, 0, 1, 1], [], []>} : vector<8x32xbf16>, vector<32x32xbf16>, vector<8x32xf32> -> vector<8x32xf32>
    %c0_14 = arith.constant 0 : index
    %c0_15 = arith.constant 0 : index
    %29 = vector.load %arg5[%c0_14, %c0_15] : memref<1x32xf32, #tpu.memory_space<vmem>>, vector<1x32xf32>
    %30 = vector.broadcast %29 : vector<1x32xf32> to vector<8x32xf32>
    %31 = arith.addf %28, %30 : vector<8x32xf32>
    %32 = arith.truncf %31 : vector<8x32xf32> to vector<8x32xbf16>
    %c0_16 = arith.constant 0 : index
    %c0_17 = arith.constant 0 : index
    %33 = vector.load %arg7[%c0_16, %c0_17] : memref<8x32xbf16, #tpu.memory_space<vmem>>, vector<8x32xbf16>
    tpu.vector_store %arg7[%c0_16, %c0_17], %32 {strides = array<i32>} : memref<8x32xbf16, #tpu.memory_space<vmem>>, vector<8x32xbf16>,
    return
  }
  func.func @transform_0(%arg0: i32) -> (i32, i32) {
    %c0_i32 = arith.constant 0 : i32
    %c0_i32_0 = arith.constant 0 : i32
    return %arg0, %c0_i32 : i32, i32
  }
  func.func @transform_1(%arg0: i32) -> (i32, i32) {
    %c0_i32 = arith.constant 0 : i32
    %c0_i32_0 = arith.constant 0 : i32
    %c0_i32_1 = arith.constant 0 : i32
    return %c0_i32, %c0_i32_0 : i32, i32
  }
  func.func @transform_2(%arg0: i32) -> (i32, i32) {
    %c0_i32 = arith.constant 0 : i32
    %c0_i32_0 = arith.constant 0 : i32
    %c0_i32_1 = arith.constant 0 : i32
    return %c0_i32, %c0_i32_0 : i32, i32
  }
  func.func @transform_3(%arg0: i32) -> (i32, i32) {
    %c0_i32 = arith.constant 0 : i32
    %c0_i32_0 = arith.constant 0 : i32
    %c0_i32_1 = arith.constant 0 : i32
    return %c0_i32, %c0_i32_0 : i32, i32
  }
  func.func @transform_4(%arg0: i32) -> (i32, i32) {
    %c0_i32 = arith.constant 0 : i32
    %c0_i32_0 = arith.constant 0 : i32
    %c0_i32_1 = arith.constant 0 : i32
    return %c0_i32, %c0_i32_0 : i32, i32
  }
  func.func @transform_5(%arg0: i32) -> (i32, i32) {
    %c0_i32 = arith.constant 0 : i32
    %c0_i32_0 = arith.constant 0 : i32
    return %arg0, %c0_i32 : i32, i32
  }
  func.func @transform_6(%arg0: i32) -> (i32, i32) {
    %c0_i32 = arith.constant 0 : i32
    %c0_i32_0 = arith.constant 0 : i32
    return %arg0, %c0_i32 : i32, i32
  }
}

module attributes {stable_mosaic.version = 11 : i64} {
  func.func @_linear_kernel(%arg0: i32, %arg1: memref<8x32xf32, #tpu.memory_space<vmem>>, %arg2: memref<32x64xbf16, #tpu.memory_space<vmem>>, %arg3: memref<1x64xf32, #tpu.memory_space<vmem>>, %arg4: memref<8x64xbf16, #tpu.memory_space<vmem>>) attributes {dimension_semantics = [#tpu.dimension_semantics<parallel>], iteration_bounds = array<i64: 2>, scalar_prefetch = 0 : i64, scratch_operands = 0 : i64, tpu.core_type = #tpu.core_type<tc>, window_params = [{transform_indices = @transform_0, window_bounds = array<i64: 8, 32>}, {pipeline_mode = #tpu.pipeline_mode<synchronous>, transform_indices = @transform_1, window_bounds = array<i64: 32, 64>}, {pipeline_mode = #tpu.pipeline_mode<synchronous>, transform_indices = @transform_2, window_bounds = array<i64: 1, 64>}, {transform_indices = @transform_3, window_bounds = array<i64: 8, 64>}]} {
    %c0 = arith.constant 0 : index
    %c0_0 = arith.constant 0 : index
    %0 = vector.load %arg1[%c0, %c0_0] : memref<8x32xf32, #tpu.memory_space<vmem>>, vector<8x32xf32>
    %1 = arith.truncf %0 : vector<8x32xf32> to vector<8x32xbf16>
    %c0_1 = arith.constant 0 : index
    %c0_2 = arith.constant 0 : index
    %2 = vector.load %arg2[%c0_1, %c0_2] : memref<32x64xbf16, #tpu.memory_space<vmem>>, vector<32x64xbf16>
    %cst = arith.constant dense<0.000000e+00> : vector<8x64xf32>
    %3 = tpu.matmul %1, %2, %cst {dimension_numbers = #tpu.dot_dimension_numbers<[1], [0], [0], [1], [0, 0, 1, 1], [], []>} : vector<8x32xbf16>, vector<32x64xbf16>, vector<8x64xf32> -> vector<8x64xf32>
    %c0_3 = arith.constant 0 : index
    %c0_4 = arith.constant 0 : index
    %4 = vector.load %arg3[%c0_3, %c0_4] : memref<1x64xf32, #tpu.memory_space<vmem>>, vector<1x64xf32>
    %5 = vector.broadcast %4 : vector<1x64xf32> to vector<8x64xf32>
    %6 = arith.addf %3, %5 : vector<8x64xf32>
    %7 = arith.truncf %6 : vector<8x64xf32> to vector<8x64xbf16>
    %c0_5 = arith.constant 0 : index
    %c0_6 = arith.constant 0 : index
    %8 = vector.load %arg4[%c0_5, %c0_6] : memref<8x64xbf16, #tpu.memory_space<vmem>>, vector<8x64xbf16>
    tpu.vector_store %arg4[%c0_5, %c0_6], %7 {strides = array<i32>} : memref<8x64xbf16, #tpu.memory_space<vmem>>, vector<8x64xbf16>,
    return
  }
  func.func @transform_0(%arg0: i32) -> (i32, i32) {
    %c0_i32 = arith.constant 0 : i32
    %c0_i32_0 = arith.constant 0 : i32
    return %arg0, %c0_i32 : i32, i32
  }
  func.func @transform_1(%arg0: i32) -> (i32, i32) {
    %c0_i32 = arith.constant 0 : i32
    %c0_i32_0 = arith.constant 0 : i32
    %c0_i32_1 = arith.constant 0 : i32
    return %c0_i32, %c0_i32_0 : i32, i32
  }
  func.func @transform_2(%arg0: i32) -> (i32, i32) {
    %c0_i32 = arith.constant 0 : i32
    %c0_i32_0 = arith.constant 0 : i32
    %c0_i32_1 = arith.constant 0 : i32
    return %c0_i32, %c0_i32_0 : i32, i32
  }
  func.func @transform_3(%arg0: i32) -> (i32, i32) {
    %c0_i32 = arith.constant 0 : i32
    %c0_i32_0 = arith.constant 0 : i32
    return %arg0, %c0_i32 : i32, i32
  }
}

module attributes {stable_mosaic.version = 11 : i64} {
  func.func @_ln_out_kernel(%arg0: i32, %arg1: i32, %arg2: memref<8x32xf32, #tpu.memory_space<vmem>>, %arg3: memref<1x32xf32, #tpu.memory_space<vmem>>, %arg4: memref<1x32xf32, #tpu.memory_space<vmem>>, %arg5: memref<32x64xbf16, #tpu.memory_space<vmem>>, %arg6: memref<1x64xf32, #tpu.memory_space<vmem>>, %arg7: memref<8x64xf32, #tpu.memory_space<vmem>>) attributes {dimension_semantics = [#tpu.dimension_semantics<parallel>, #tpu.dimension_semantics<parallel>], iteration_bounds = array<i64: 2, 1>, scalar_prefetch = 0 : i64, scratch_operands = 0 : i64, tpu.core_type = #tpu.core_type<tc>, window_params = [{transform_indices = @transform_0, window_bounds = array<i64: 8, 32>}, {pipeline_mode = #tpu.pipeline_mode<synchronous>, transform_indices = @transform_1, window_bounds = array<i64: 1, 32>}, {pipeline_mode = #tpu.pipeline_mode<synchronous>, transform_indices = @transform_2, window_bounds = array<i64: 1, 32>}, {transform_indices = @transform_3, window_bounds = array<i64: 32, 64>}, {transform_indices = @transform_4, window_bounds = array<i64: 1, 64>}, {transform_indices = @transform_5, window_bounds = array<i64: 8, 64>}]} {
    %c0 = arith.constant 0 : index
    %c0_0 = arith.constant 0 : index
    %0 = vector.load %arg2[%c0, %c0_0] : memref<8x32xf32, #tpu.memory_space<vmem>>, vector<8x32xf32>
    %cst = arith.constant dense<0.000000e+00> : vector<8xf32>
    %1 = vector.multi_reduction <add>, %0, %cst [1] : vector<8x32xf32> to vector<8xf32>
    %2 = vector.shape_cast %1 : vector<8xf32> to vector<8x1xf32>
    %cst_1 = arith.constant 3.200000e+01 : f32
    %3 = vector.broadcast %cst_1 : f32 to vector<8x1xf32>
    %4 = arith.divf %2, %3 : vector<8x1xf32>
    %5 = vector.broadcast %4 : vector<8x1xf32> to vector<8x32xf32>
    %6 = arith.subf %0, %5 : vector<8x32xf32>
    %7 = arith.mulf %6, %6 : vector<8x32xf32>
    %cst_2 = arith.constant dense<0.000000e+00> : vector<8xf32>
    %8 = vector.multi_reduction <add>, %7, %cst_2 [1] : vector<8x32xf32> to vector<8xf32>
    %9 = vector.shape_cast %8 : vector<8xf32> to vector<8x1xf32>
    %cst_3 = arith.constant 3.200000e+01 : f32
    %10 = vector.broadcast %cst_3 : f32 to vector<8x1xf32>
    %11 = arith.divf %9, %10 : vector<8x1xf32>
    %12 = vector.broadcast %4 : vector<8x1xf32> to vector<8x32xf32>
    %13 = arith.subf %0, %12 : vector<8x32xf32>
    %cst_4 = arith.constant 9.99999974E-6 : f32
    %14 = vector.broadcast %cst_4 : f32 to vector<8x1xf32>
    %15 = arith.addf %11, %14 : vector<8x1xf32>
    %16 = math.rsqrt %15 : vector<8x1xf32>
    %17 = vector.broadcast %16 : vector<8x1xf32> to vector<8x32xf32>
    %18 = arith.mulf %13, %17 : vector<8x32xf32>
    %c0_5 = arith.constant 0 : index
    %c0_6 = arith.constant 0 : index
    %19 = vector.load %arg3[%c0_5, %c0_6] : memref<1x32xf32, #tpu.memory_space<vmem>>, vector<1x32xf32>
    %20 = vector.broadcast %19 : vector<1x32xf32> to vector<8x32xf32>
    %21 = arith.mulf %18, %20 : vector<8x32xf32>
    %c0_7 = arith.constant 0 : index
    %c0_8 = arith.constant 0 : index
    %22 = vector.load %arg4[%c0_7, %c0_8] : memref<1x32xf32, #tpu.memory_space<vmem>>, vector<1x32xf32>
    %23 = vector.broadcast %22 : vector<1x32xf32> to vector<8x32xf32>
    %24 = arith.addf %21, %23 : vector<8x32xf32>
    %25 = arith.truncf %24 : vector<8x32xf32> to vector<8x32xbf16>
    %c0_9 = arith.constant 0 : index
    %c0_10 = arith.constant 0 : index
    %26 = vector.load %arg5[%c0_9, %c0_10] : memref<32x64xbf16, #tpu.memory_space<vmem>>, vector<32x64xbf16>
    %cst_11 = arith.constant dense<0.000000e+00> : vector<8x64xf32>
    %27 = tpu.matmul %25, %26, %cst_11 {dimension_numbers = #tpu.dot_dimension_numbers<[1], [0], [0], [1], [0, 0, 1, 1], [], []>} : vector<8x32xbf16>, vector<32x64xbf16>, vector<8x64xf32> -> vector<8x64xf32>
    %c0_12 = arith.constant 0 : index
    %c0_13 = arith.constant 0 : index
    %28 = vector.load %arg6[%c0_12, %c0_13] : memref<1x64xf32, #tpu.memory_space<vmem>>, vector<1x64xf32>
    %29 = vector.broadcast %28 : vector<1x64xf32> to vector<8x64xf32>
    %30 = arith.addf %27, %29 : vector<8x64xf32>
    %c0_14 = arith.constant 0 : index
    %c0_15 = arith.constant 0 : index
    %31 = vector.load %arg7[%c0_14, %c0_15] : memref<8x64xf32, #tpu.memory_space<vmem>>, vector<8x64xf32>
    tpu.vector_store %arg7[%c0_14, %c0_15], %30 {strides = array<i32>} : memref<8x64xf32, #tpu.memory_space<vmem>>, vector<8x64xf32>,
    return
  }
  func.func @transform_0(%arg0: i32, %arg1: i32) -> (i32, i32) {
    %c0_i32 = arith.constant 0 : i32
    %c0_i32_0 = arith.constant 0 : i32
    return %arg0, %c0_i32 : i32, i32
  }
  func.func @transform_1(%arg0: i32, %arg1: i32) -> (i32, i32) {
    %c0_i32 = arith.constant 0 : i32
    %c0_i32_0 = arith.constant 0 : i32
    %c0_i32_1 = arith.constant 0 : i32
    return %c0_i32, %c0_i32_0 : i32, i32
  }
  func.func @transform_2(%arg0: i32, %arg1: i32) -> (i32, i32) {
    %c0_i32 = arith.constant 0 : i32
    %c0_i32_0 = arith.constant 0 : i32
    %c0_i32_1 = arith.constant 0 : i32
    return %c0_i32, %c0_i32_0 : i32, i32
  }
  func.func @transform_3(%arg0: i32, %arg1: i32) -> (i32, i32) {
    %c0_i32 = arith.constant 0 : i32
    %c0_i32_0 = arith.constant 0 : i32
    return %c0_i32, %arg1 : i32, i32
  }
  func.func @transform_4(%arg0: i32, %arg1: i32) -> (i32, i32) {
    %c0_i32 = arith.constant 0 : i32
    %c0_i32_0 = arith.constant 0 : i32
    return %c0_i32, %arg1 : i32, i32
  }
  func.func @transform_5(%arg0: i32, %arg1: i32) -> (i32, i32) {
    %c0_i32 = arith.constant 0 : i32
    return %arg0, %arg1 : i32, i32
  }
}

module attributes {stable_mosaic.version = 11 : i64} {
  func.func @_ln_ffn_kernel(%arg0: i32, %arg1: i32, %arg2: memref<8x32xf32, #tpu.memory_space<vmem>>, %arg3: memref<1x32xf32, #tpu.memory_space<vmem>>, %arg4: memref<1x32xf32, #tpu.memory_space<vmem>>, %arg5: memref<32x64xbf16, #tpu.memory_space<vmem>>, %arg6: memref<1x64xf32, #tpu.memory_space<vmem>>, %arg7: memref<64x32xbf16, #tpu.memory_space<vmem>>, %arg8: memref<1x32xf32, #tpu.memory_space<vmem>>, %arg9: memref<8x32xf32, #tpu.memory_space<vmem>>, %arg10: memref<8x32xf32, #tpu.memory_space<vmem>>, %arg11: memref<8x32xf32, #tpu.memory_space<vmem>>) attributes {dimension_semantics = [#tpu.dimension_semantics<parallel>, #tpu.dimension_semantics<arbitrary>], iteration_bounds = array<i64: 2, 1>, scalar_prefetch = 0 : i64, scratch_operands = 2 : i64, tpu.core_type = #tpu.core_type<tc>, window_params = [{transform_indices = @transform_0, window_bounds = array<i64: 8, 32>}, {pipeline_mode = #tpu.pipeline_mode<synchronous>, transform_indices = @transform_1, window_bounds = array<i64: 1, 32>}, {pipeline_mode = #tpu.pipeline_mode<synchronous>, transform_indices = @transform_2, window_bounds = array<i64: 1, 32>}, {transform_indices = @transform_3, window_bounds = array<i64: 32, 64>}, {transform_indices = @transform_4, window_bounds = array<i64: 1, 64>}, {transform_indices = @transform_5, window_bounds = array<i64: 64, 32>}, {pipeline_mode = #tpu.pipeline_mode<synchronous>, transform_indices = @transform_6, window_bounds = array<i64: 1, 32>}, {transform_indices = @transform_7, window_bounds = array<i64: 8, 32>}]} {
    %c0_i32 = arith.constant 0 : i32
    %0 = arith.cmpi eq, %arg1, %c0_i32 : i32
    %1 = arith.extui %0 : i1 to i32
    %c0_i32_0 = arith.constant 0 : i32
    %2 = arith.cmpi ne, %1, %c0_i32_0 : i32
    scf.if %2 {
      %c0_16 = arith.constant 0 : index
      %c0_17 = arith.constant 0 : index
      %21 = vector.load %arg2[%c0_16, %c0_17] : memref<8x32xf32, #tpu.memory_space<vmem>>, vector<8x32xf32>
      %cst_18 = arith.constant dense<0.000000e+00> : vector<8xf32>
      %22 = vector.multi_reduction <add>, %21, %cst_18 [1] : vector<8x32xf32> to vector<8xf32>
      %23 = vector.shape_cast %22 : vector<8xf32> to vector<8x1xf32>
      %cst_19 = arith.constant 3.200000e+01 : f32
      %24 = vector.broadcast %cst_19 : f32 to vector<8x1xf32>
      %25 = arith.divf %23, %24 : vector<8x1xf32>
      %26 = vector.broadcast %25 : vector<8x1xf32> to vector<8x32xf32>
      %27 = arith.subf %21, %26 : vector<8x32xf32>
      %28 = arith.mulf %27, %27 : vector<8x32xf32>
      %cst_20 = arith.constant dense<0.000000e+00> : vector<8xf32>
      %29 = vector.multi_reduction <add>, %28, %cst_20 [1] : vector<8x32xf32> to vector<8xf32>
      %30 = vector.shape_cast %29 : vector<8xf32> to vector<8x1xf32>
      %cst_21 = arith.constant 3.200000e+01 : f32
      %31 = vector.broadcast %cst_21 : f32 to vector<8x1xf32>
      %32 = arith.divf %30, %31 : vector<8x1xf32>
      %33 = vector.broadcast %25 : vector<8x1xf32> to vector<8x32xf32>
      %34 = arith.subf %21, %33 : vector<8x32xf32>
      %cst_22 = arith.constant 9.99999974E-6 : f32
      %35 = vector.broadcast %cst_22 : f32 to vector<8x1xf32>
      %36 = arith.addf %32, %35 : vector<8x1xf32>
      %37 = math.rsqrt %36 : vector<8x1xf32>
      %38 = vector.broadcast %37 : vector<8x1xf32> to vector<8x32xf32>
      %39 = arith.mulf %34, %38 : vector<8x32xf32>
      %c0_23 = arith.constant 0 : index
      %c0_24 = arith.constant 0 : index
      %40 = vector.load %arg3[%c0_23, %c0_24] : memref<1x32xf32, #tpu.memory_space<vmem>>, vector<1x32xf32>
      %41 = vector.broadcast %40 : vector<1x32xf32> to vector<8x32xf32>
      %42 = arith.mulf %39, %41 : vector<8x32xf32>
      %c0_25 = arith.constant 0 : index
      %c0_26 = arith.constant 0 : index
      %43 = vector.load %arg4[%c0_25, %c0_26] : memref<1x32xf32, #tpu.memory_space<vmem>>, vector<1x32xf32>
      %44 = vector.broadcast %43 : vector<1x32xf32> to vector<8x32xf32>
      %45 = arith.addf %42, %44 : vector<8x32xf32>
      %c0_27 = arith.constant 0 : index
      %c0_28 = arith.constant 0 : index
      %46 = vector.load %arg10[%c0_27, %c0_28] : memref<8x32xf32, #tpu.memory_space<vmem>>, vector<8x32xf32>
      tpu.vector_store %arg10[%c0_27, %c0_28], %45 {strides = array<i32>} : memref<8x32xf32, #tpu.memory_space<vmem>>, vector<8x32xf32>,
      %c0_29 = arith.constant 0 : index
      %c0_30 = arith.constant 0 : index
      %47 = vector.load %arg8[%c0_29, %c0_30] : memref<1x32xf32, #tpu.memory_space<vmem>>, vector<1x32xf32>
      %48 = vector.broadcast %47 : vector<1x32xf32> to vector<8x32xf32>
      %49 = arith.addf %45, %48 : vector<8x32xf32>
      %c0_31 = arith.constant 0 : index
      %c0_32 = arith.constant 0 : index
      %50 = vector.load %arg11[%c0_31, %c0_32] : memref<8x32xf32, #tpu.memory_space<vmem>>, vector<8x32xf32>
      tpu.vector_store %arg11[%c0_31, %c0_32], %49 {strides = array<i32>} : memref<8x32xf32, #tpu.memory_space<vmem>>, vector<8x32xf32>,
    } else {
    }
    %c0 = arith.constant 0 : index
    %c0_1 = arith.constant 0 : index
    %3 = vector.load %arg10[%c0, %c0_1] : memref<8x32xf32, #tpu.memory_space<vmem>>, vector<8x32xf32>
    %4 = arith.truncf %3 : vector<8x32xf32> to vector<8x32xbf16>
    %c0_2 = arith.constant 0 : index
    %c0_3 = arith.constant 0 : index
    %5 = vector.load %arg5[%c0_2, %c0_3] : memref<32x64xbf16, #tpu.memory_space<vmem>>, vector<32x64xbf16>
    %cst = arith.constant dense<0.000000e+00> : vector<8x64xf32>
    %6 = tpu.matmul %4, %5, %cst {dimension_numbers = #tpu.dot_dimension_numbers<[1], [0], [0], [1], [0, 0, 1, 1], [], []>} : vector<8x32xbf16>, vector<32x64xbf16>, vector<8x64xf32> -> vector<8x64xf32>
    %c0_4 = arith.constant 0 : index
    %c0_5 = arith.constant 0 : index
    %7 = vector.load %arg6[%c0_4, %c0_5] : memref<1x64xf32, #tpu.memory_space<vmem>>, vector<1x64xf32>
    %8 = vector.broadcast %7 : vector<1x64xf32> to vector<8x64xf32>
    %9 = arith.addf %6, %8 : vector<8x64xf32>
    %cst_6 = arith.constant 0.000000e+00 : f32
    %10 = vector.broadcast %cst_6 : f32 to vector<8x64xf32>
    %11 = arith.maximumf %9, %10 : vector<8x64xf32>
    %c0_7 = arith.constant 0 : index
    %c0_8 = arith.constant 0 : index
    %12 = vector.load %arg11[%c0_7, %c0_8] : memref<8x32xf32, #tpu.memory_space<vmem>>, vector<8x32xf32>
    %13 = arith.truncf %11 : vector<8x64xf32> to vector<8x64xbf16>
    %c0_9 = arith.constant 0 : index
    %c0_10 = arith.constant 0 : index
    %14 = vector.load %arg7[%c0_9, %c0_10] : memref<64x32xbf16, #tpu.memory_space<vmem>>, vector<64x32xbf16>
    %cst_11 = arith.constant dense<0.000000e+00> : vector<8x32xf32>
    %15 = tpu.matmul %13, %14, %cst_11 {dimension_numbers = #tpu.dot_dimension_numbers<[1], [0], [0], [1], [0, 0, 1, 1], [], []>} : vector<8x64xbf16>, vector<64x32xbf16>, vector<8x32xf32> -> vector<8x32xf32>
    %16 = arith.addf %12, %15 : vector<8x32xf32>
    %c0_12 = arith.constant 0 : index
    %c0_13 = arith.constant 0 : index
    %17 = vector.load %arg11[%c0_12, %c0_13] : memref<8x32xf32, #tpu.memory_space<vmem>>, vector<8x32xf32>
    tpu.vector_store %arg11[%c0_12, %c0_13], %16 {strides = array<i32>} : memref<8x32xf32, #tpu.memory_space<vmem>>, vector<8x32xf32>,
    %c0_i32_14 = arith.constant 0 : i32
    %18 = arith.cmpi eq, %arg1, %c0_i32_14 : i32
    %19 = arith.extui %18 : i1 to i32
    %c0_i32_15 = arith.constant 0 : i32
    %20 = arith.cmpi ne, %19, %c0_i32_15 : i32
    scf.if %20 {
      %c0_16 = arith.constant 0 : index
      %c0_17 = arith.constant 0 : index
      %21 = vector.load %arg11[%c0_16, %c0_17] : memref<8x32xf32, #tpu.memory_space<vmem>>, vector<8x32xf32>
      %c0_18 = arith.constant 0 : index
      %c0_19 = arith.constant 0 : index
      %22 = vector.load %arg9[%c0_18, %c0_19] : memref<8x32xf32, #tpu.memory_space<vmem>>, vector<8x32xf32>
      tpu.vector_store %arg9[%c0_18, %c0_19], %21 {strides = array<i32>} : memref<8x32xf32, #tpu.memory_space<vmem>>, vector<8x32xf32>,
    } else {
    }
    return
  }
  func.func @transform_0(%arg0: i32, %arg1: i32) -> (i32, i32) {
    %c0_i32 = arith.constant 0 : i32
    %c0_i32_0 = arith.constant 0 : i32
    return %arg0, %c0_i32 : i32, i32
  }
  func.func @transform_1(%arg0: i32, %arg1: i32) -> (i32, i32) {
    %c0_i32 = arith.constant 0 : i32
    %c0_i32_0 = arith.constant 0 : i32
    %c0_i32_1 = arith.constant 0 : i32
    return %c0_i32, %c0_i32_0 : i32, i32
  }
  func.func @transform_2(%arg0: i32, %arg1: i32) -> (i32, i32) {
    %c0_i32 = arith.constant 0 : i32
    %c0_i32_0 = arith.constant 0 : i32
    %c0_i32_1 = arith.constant 0 : i32
    return %c0_i32, %c0_i32_0 : i32, i32
  }
  func.func @transform_3(%arg0: i32, %arg1: i32) -> (i32, i32) {
    %c0_i32 = arith.constant 0 : i32
    %c0_i32_0 = arith.constant 0 : i32
    return %c0_i32, %arg1 : i32, i32
  }
  func.func @transform_4(%arg0: i32, %arg1: i32) -> (i32, i32) {
    %c0_i32 = arith.constant 0 : i32
    %c0_i32_0 = arith.constant 0 : i32
    return %c0_i32, %arg1 : i32, i32
  }
  func.func @transform_5(%arg0: i32, %arg1: i32) -> (i32, i32) {
    %c0_i32 = arith.constant 0 : i32
    %c0_i32_0 = arith.constant 0 : i32
    return %arg1, %c0_i32 : i32, i32
  }
  func.func @transform_6(%arg0: i32, %arg1: i32) -> (i32, i32) {
    %c0_i32 = arith.constant 0 : i32
    %c0_i32_0 = arith.constant 0 : i32
    %c0_i32_1 = arith.constant 0 : i32
    return %c0_i32, %c0_i32_0 : i32, i32
  }
  func.func @transform_7(%arg0: i32, %arg1: i32) -> (i32, i32) {
    %c0_i32 = arith.constant 0 : i32
    %c0_i32_0 = arith.constant 0 : i32
    return %arg0, %c0_i32 : i32, i32
  }
}

</mosaic_0001>

<llo_original>
// kernel: decoder_forward.16
$region0: #{decoder_forward.16}
  #allocation0 [shape = 'u32[]', space=smem, size = 0x4, offset = 0x4, fixed_abs, tag = 'smem constant byte address 0x4 - core index']
  #allocation1 [shape = 'u32[144,128]{1,0:T(1,128)}', space=vmem, size = 0x12000, scoped, tag = 'internal scratch']
  %s0 = inlined_call_operand.vmem [shape: f32[16,32], index: 0, kind: input, shape index: {}]
  %s1 = inlined_call_operand.vmem [shape: bf16[32,64], index: 1, kind: input, shape index: {}]
  %s2 = inlined_call_operand.vmem [shape: f32[1,64], index: 2, kind: input, shape index: {}]
  %s3 = inlined_call_operand.vmem [shape: bf16[16,64], index: 3, kind: output, shape index: {}]
  %s4 = sld [smem:[#allocation0]]
  $region45: #{decoder_forward.16} parent=0
    _
  %s6 = ssub.s32 1, %s4
  %s7 = scalar_select 0, %s6, %s4
  loop: start=0, step=1, limit=4
  $region2: #{decoder_forward.16} parent=0 // loop_pre_header
    _
  $region3: #{decoder_forward.16} parent=0 // loop_header
    %s9 = sphi 0, %s13
    %p10 = scmp.ge.s32.totalorder %s9, 4
    %s19 = sphi 0, %s21
    %s22 = sphi 0, %s19
    %s23 = sphi 0, %s22
    %s39 = sphi 0, %s23
    %s43 = sphi 0, %s43
    %s45 = sphi 0, %s43
    %s46 = sphi 0, %s45
    %s60 = sphi 0, %s46
    %s64 = sphi 0, %s64
    %s66 = sphi 0, %s64
    %s67 = sphi 0, %s66
    %s81 = sphi 0, %s67
    %s87 = sphi 0, %s89
    %s90 = sphi 0, %s87
    %s91 = sphi 0, %s90
    %s107 = sphi 0, %s91
  $region4: #{decoder_forward.16} parent=0 // loop_header_branch
    %12 = sbr.rel (%p10) target = $region8
  $region5: #{decoder_forward.16} parent=0 // loop_body
    %s14 = ssub.s32 %s9, 1
    %s15 = ssub.s32 %s9, 2
    %s16 = sadd.s32 %s9, 1
    %s17 = ssub.s32 %s9, %s16
    %p18 = scmp.eq.s32.totalorder %s17, 0
    %s20 = sadd.s32 %s19, 1
    %s21 = scalar_select %p18, %s19, %s20
    %p24 = pneg %p18
    %p25 = scmp.eq.s32.totalorder %s9, 1
    %p26 = por %p24, %p25
    %p27 = scmp.ne.s32.totalorder %s19, %s22
    %p28 = scmp.eq.s32.totalorder %s9, 0
    %p29 = por %p27, %p28
    %p30 = scmp.ne.s32.totalorder %s19, %s22
    %p31 = scmp.eq.s32.totalorder %s14, 1
    %p32 = por %p30, %p31
    %p33 = scmp.ne.s32.totalorder %s22, %s23
    %p34 = scmp.eq.s32.totalorder %s14, 0
    %p35 = por %p33, %p34
    %p36 = scmp.ne.s32.totalorder %s22, %s23
    %p37 = scmp.eq.s32.totalorder %s15, 1
    %p38 = por %p36, %p37
    %p40 = scmp.ne.s32.totalorder %s23, %s39
    %p41 = scmp.eq.s32.totalorder %s15, 0
    %p42 = por %p40, %p41
    %s44 = sadd.s32 %s43, 1
    %p47 = scmp.eq.s32.totalorder %s9, 1
    %p48 = scmp.ne.s32.totalorder %s43, %s45
    %p49 = scmp.eq.s32.totalorder %s9, 0
    %p50 = por %p48, %p49
    %p51 = scmp.ne.s32.totalorder %s43, %s45
    %p52 = scmp.eq.s32.totalorder %s14, 1
    %p53 = por %p51, %p52
    %p54 = scmp.ne.s32.totalorder %s45, %s46
    %p55 = scmp.eq.s32.totalorder %s14, 0
    %p56 = por %p54, %p55
    %p57 = scmp.ne.s32.totalorder %s45, %s46
    %p58 = scmp.eq.s32.totalorder %s15, 1
    %p59 = por %p57, %p58
    %p61 = scmp.ne.s32.totalorder %s46, %s60
    %p62 = scmp.eq.s32.totalorder %s15, 0
    %p63 = por %p61, %p62
    %s65 = sadd.s32 %s64, 1
    %p68 = scmp.eq.s32.totalorder %s9, 1
    %p69 = scmp.ne.s32.totalorder %s64, %s66
    %p70 = scmp.eq.s32.totalorder %s9, 0
    %p71 = por %p69, %p70
    %p72 = scmp.ne.s32.totalorder %s64, %s66
    %p73 = scmp.eq.s32.totalorder %s14, 1
    %p74 = por %p72, %p73
    %p75 = scmp.ne.s32.totalorder %s66, %s67
    %p76 = scmp.eq.s32.totalorder %s14, 0
    %p77 = por %p75, %p76
    %p78 = scmp.ne.s32.totalorder %s66, %s67
    %p79 = scmp.eq.s32.totalorder %s15, 1
    %p80 = por %p78, %p79
    %p82 = scmp.ne.s32.totalorder %s67, %s81
    %p83 = scmp.eq.s32.totalorder %s15, 0
    %p84 = por %p82, %p83
    %s85 = ssub.s32 %s9, %s16
    %p86 = scmp.eq.s32.totalorder %s85, 0
    %s88 = sadd.s32 %s87, 1
    %s89 = scalar_select %p86, %s87, %s88
    %p92 = pneg %p86
    %p93 = scmp.eq.s32.totalorder %s9, 1
    %p94 = por %p92, %p93
    %p95 = scmp.ne.s32.totalorder %s87, %s90
    %p96 = scmp.eq.s32.totalorder %s9, 0
    %p97 = por %p95, %p96
    %p98 = scmp.ne.s32.totalorder %s87, %s90
    %p99 = scmp.eq.s32.totalorder %s14, 1
    %p100 = por %p98, %p99
    %p101 = scmp.ne.s32.totalorder %s90, %s91
    %p102 = scmp.eq.s32.totalorder %s14, 0
    %p103 = por %p101, %p102
    %p104 = scmp.ne.s32.totalorder %s90, %s91
    %p105 = scmp.eq.s32.totalorder %s15, 1
    %p106 = por %p104, %p105
    %p108 = scmp.ne.s32.totalorder %s91, %s107
    %p109 = scmp.eq.s32.totalorder %s15, 0
    %p110 = por %p108, %p109
    %p111 = scmp.le.s32.totalorder 1, %s9
    %p112 = scmp.lt.s32.totalorder %s9, 3
    %p113 = pnand %p111, %p112
    %p114 = pneg %p113
    // Predicated region
    $region9: #{decoder_forward.16} parent=5 // pred_check
      _
    $region10: #{decoder_forward.16} parent=5 // pred_check_branch
      %116 = sbr.rel (%p113) target = $region12
    $region11: #{decoder_forward.16} parent=5 // pred_region
      %s117 = ssub.s32 %s9, 1
      // Predicated region
      $region13: #{decoder_forward.16} parent=11 // pred_check
        %p118 = pneg %p56
      $region14: #{decoder_forward.16} parent=11 // pred_check_branch
        %120 = sbr.rel (%p118) target = $region16
      $region15: #{decoder_forward.16} parent=11 // pred_region
        _
      $region16: #{decoder_forward.16} parent=11 // pred_fallthru
        _
      // Predicated region
      $region17: #{decoder_forward.16} parent=11 // pred_check
        %p121 = pneg %p77
      $region18: #{decoder_forward.16} parent=11 // pred_check_branch
        %123 = sbr.rel (%p121) target = $region20
      $region19: #{decoder_forward.16} parent=11 // pred_region
        _
      $region20: #{decoder_forward.16} parent=11 // pred_fallthru
        _
    $region12: #{decoder_forward.16} parent=5 // pred_fallthru
      _
    %p124 = scmp.lt.s32.totalorder %s9, 2
    // Predicated region
    $region21: #{decoder_forward.16} parent=5 // pred_check
      %p125 = pneg %p124
    $region22: #{decoder_forward.16} parent=5 // pred_check_branch
      %127 = sbr.rel (%p125) target = $region24
    $region23: #{decoder_forward.16} parent=5 // pred_region
      // Predicated region
      $region25: #{decoder_forward.16} parent=23 // pred_check
        %p128 = pneg %p29
      $region26: #{decoder_forward.16} parent=23 // pred_check_branch
        %130 = sbr.rel (%p128) target = $region28
      $region27: #{decoder_forward.16} parent=23 // pred_region
        %p131 = scmp.lt.s32.totalorder %s9, 1
        %s132 = scalar_select %p131, %s9, 1
        %s133 = smul.addr %s132, 8
        %s134 = scalar_lea.vmem %s0, %s133
      $region28: #{decoder_forward.16} parent=23 // pred_fallthru
        _
    $region24: #{decoder_forward.16} parent=5 // pred_fallthru
      _
    %p135 = scmp.le.s32.totalorder 1, %s9
    %p136 = scmp.lt.s32.totalorder %s9, 3
    %p137 = pnand %p135, %p136
    %p138 = pneg %p137
    // Predicated region
    $region29: #{decoder_forward.16} parent=5 // pred_check
      _
    $region30: #{decoder_forward.16} parent=5 // pred_check_branch
      %140 = sbr.rel (%p137) target = $region32
    $region31: #{decoder_forward.16} parent=5 // pred_region
      %s141 = ssub.s32 %s9, 1
      %p142 = scmp.lt.s32.totalorder %s14, 1
      %s143 = scalar_select %p142, %s14, 1
      %s144 = smul.addr %s143, 8
      %s145 = scalar_lea.vmem %s0, %s144
      %p146 = pneg %p35
      %p147 = pneg %p32
      %p148 = pneg %p56
      %p149 = pneg %p53
      %p150 = pneg %p77
      %p151 = pneg %p74
      %p152 = pneg %p103
      %p153 = pneg %p100
      %p154 = scmp.lt.s32.totalorder %s14, 1
      %s155 = scalar_select %p154, %s14, 1
      %s156 = smul.addr %s155, 4
      %s157 = scalar_lea.vmem %s3, %s156
      %p158 = scmp.lt.s32.totalorder %s14, 1
      %s159 = scalar_select %p158, %s14, 1
      %s160 = smul.addr %s159, 8
      %s161 = scalar_lea.vmem %s0, %s160
      %p162 = scmp.lt.s32.totalorder %s14, 1
      %s163 = scalar_select %p162, %s14, 1
      %s164 = smul.addr %s163, 4
      %s165 = scalar_lea.vmem %s3, %s164
      %v167 = vld [vmem:[%s161] sm:$0xff]
      %v168 = vpack.c.bf16 %v167, %v167
      %v169 = vld [vmem:[%s1] sm:$0xf]
      %v170 = vld [vmem:[%s1 + $0x4] sm:$0xf]
      %v171 = vld [vmem:[%s1 + $0x8] sm:$0xf]
      %v172 = vld [vmem:[%s1 + $0xc] sm:$0xf]
      %v173 = vld [vmem:[%s2] sm:$0x1]
      %v175 = vlaneseq
      %v176 = vshrl.u32 %v175, 7
      %v177 = vsub.s32 0, %v176
      %v178 = vrot.slane %v173, %v177
      %v184 = vunpack.c.l.b16 %v169
      %v185 = vunpack.c.l.b16 %v170
      %v186 = vunpack.c.l.b16 %v171
      %v187 = vunpack.c.l.b16 %v172
      %v188 = vpack.c.b16 %v185, %v184
      %v189 = vpack.c.b16 %v187, %v186
      %vm192 = vcmask 261120
      %v194 = vsel %vm192, %v168, 0
      %196 = vmatprep.subr.bf16.mxu0 0
      %197 = vmatpush1.bf16.msra.mxu0 %v188
      %198 = vmatprep.subr.bf16.mxu0 0
      %199 = vmatpush1.bf16.msra.mxu0 %v189
      %200 = vmatprep.subr.bf16.mxu0 0
      %201 = vmatpush1.bf16.msra.mxu0 0
      %202 = vmatprep.subr.bf16.mxu0 0
      %203 = vmatpush1.bf16.msra.mxu0 0
      %204 = vmatprep.subr.bf16.mxu0 0
      %205 = vmatpush1.bf16.msra.mxu0 0
      %206 = vmatprep.subr.bf16.mxu0 0
      %207 = vmatpush1.bf16.msra.mxu0 0
      %208 = vmatprep.subr.bf16.mxu0 0
      %209 = vmatpush1.bf16.msra.mxu0 0
      %210 = vmatprep.subr.bf16.mxu0 0
      %211 = vmatpush1.bf16.msra.mxu0 0
      %212 = vmatprep.subr.bf16.mxu0 0
      %213 = vmatpush1.bf16.msra.mxu0 0
      %214 = vmatprep.subr.bf16.mxu0 0
      %215 = vmatpush1.bf16.msra.mxu0 0
      %216 = vmatprep.subr.bf16.mxu0 0
      %217 = vmatpush1.bf16.msra.mxu0 0
      %218 = vmatprep.subr.bf16.mxu0 0
      %219 = vmatpush1.bf16.msra.mxu0 0
      %220 = vmatprep.subr.bf16.mxu0 0
      %221 = vmatpush1.bf16.msra.mxu0 0
      %222 = vmatprep.subr.bf16.mxu0 0
      %223 = vmatpush1.bf16.msra.mxu0 0
      %224 = vmatprep.subr.bf16.mxu0 0
      %225 = vmatpush1.bf16.msra.mxu0 0
      %226 = vmatprep.subr.bf16.mxu0 0
      %227 = vmatpush1.bf16.msra.mxu0 0
      %228 = vmatprep.mubr.bf16.mxu0 0
      %229 = vmatmul.mubr.bf16.gmra.mrb[0].mxu0 %v194
      %v230 = vpop.f32.mrb[0].mxu0
      %v231 = vadd.f32 %v178, %v230
      %v232 = vpop.f32.mrb[0].mxu0
      %v233 = vpop.f32.mrb[0].mxu0
      %v234 = vpop.f32.mrb[0].mxu0
      %235 = vdwg.mxu0
      %v236 = vpack.c.bf16 %v231, %v231
      %vm237 = vcmask 519168
      %238 = vst.msk [vmem:[%s165] sm:$0xf] %vm237, %v236
      %p239 = scmp.lt.s32.totalorder %s14, 1
      %s240 = scalar_select %p239, %s14, 1
      %s241 = smul.addr %s240, 4
      %s242 = scalar_lea.vmem %s3, %s241
      // Predicated region
      $region33: #{decoder_forward.16} parent=31 // pred_check
        %p243 = pneg %p100
      $region34: #{decoder_forward.16} parent=31 // pred_check_branch
        %245 = sbr.rel (%p243) target = $region36
      $region35: #{decoder_forward.16} parent=31 // pred_region
        _
      $region36: #{decoder_forward.16} parent=31 // pred_fallthru
        _
    $region32: #{decoder_forward.16} parent=5 // pred_fallthru
      _
    %p246 = scmp.le.s32.totalorder 2, %s9
    // Predicated region
    $region37: #{decoder_forward.16} parent=5 // pred_check
      %p247 = pneg %p246
    $region38: #{decoder_forward.16} parent=5 // pred_check_branch
      %249 = sbr.rel (%p247) target = $region40
    $region39: #{decoder_forward.16} parent=5 // pred_region
      %s250 = ssub.s32 %s9, 2
      // Predicated region
      $region41: #{decoder_forward.16} parent=39 // pred_check
        %p251 = pneg %p106
      $region42: #{decoder_forward.16} parent=39 // pred_check_branch
        %253 = sbr.rel (%p251) target = $region44
      $region43: #{decoder_forward.16} parent=39 // pred_region
        %p254 = scmp.lt.s32.totalorder %s15, 1
        %s255 = scalar_select %p254, %s15, 1
        %s256 = smul.addr %s255, 4
        %s257 = scalar_lea.vmem %s3, %s256
      $region44: #{decoder_forward.16} parent=39 // pred_fallthru
        _
    $region40: #{decoder_forward.16} parent=5 // pred_fallthru
      _
  $region6: #{decoder_forward.16} parent=0 // loop_footer
    %s13 = sadd.s32 1, %s9
  $region7: #{decoder_forward.16} parent=0 // loop_footer_branch
    %8 = sbr.rel target = $region3
  $region8: #{decoder_forward.16} parent=0 // loop_exit
    _

// kernel: decoder_forward.14
$region0: #{decoder_forward.14}
  #allocation0 [shape = 'u32[]', space=smem, size = 0x4, offset = 0x4, fixed_abs, tag = 'smem constant byte address 0x4 - core index']
  #allocation1 [shape = 'u32[144,128]{1,0:T(1,128)}', space=vmem, size = 0x12000, scoped, tag = 'internal scratch']
  #allocation2 [shape = 'f32[8,32]{1,0:T(8,128)}', space=vmem, size = 0x1000, scoped, tag = 'scratch operand']
  %s0 = inlined_call_operand.vmem [shape: bf16[2,4,8,8], index: 0, kind: input, shape index: {}]
  %s1 = inlined_call_operand.vmem [shape: bf16[2,4,8,8], index: 1, kind: input, shape index: {}]
  %s2 = inlined_call_operand.vmem [shape: bf16[2,4,8,8], index: 2, kind: input, shape index: {}]
  %s3 = inlined_call_operand.vmem [shape: f32[8,8], index: 3, kind: input, shape index: {}]
  %s4 = inlined_call_operand.vmem [shape: bf16[4,8,32], index: 4, kind: input, shape index: {}]
  %s5 = inlined_call_operand.vmem [shape: f32[1,32], index: 5, kind: input, shape index: {}]
  %s6 = inlined_call_operand.vmem [shape: f32[2,8,32], index: 6, kind: input, shape index: {}]
  %s7 = inlined_call_operand.vmem [shape: f32[2,8,32], index: 7, kind: output, shape index: {}]
  %s8 = sld [smem:[#allocation0]]
  $region69: #{decoder_forward.14} parent=0
    _
  %s10 = ssub.s32 1, %s8
  %s11 = scalar_select 0, %s10, %s8
  loop: start=0, step=1, limit=10
  $region2: #{decoder_forward.14} parent=0 // loop_pre_header
    _
  $region3: #{decoder_forward.14} parent=0 // loop_header
    %s13 = sphi 0, %s17
    %p14 = scmp.ge.s32.totalorder %s13, 10
    %s20 = sphi 0, %s39
    %s21 = sphi 0, %s35
    %s22 = sphi 0, %s31
    %s23 = sphi 0, %s20
    %s24 = sphi 0, %s21
    %s25 = sphi 0, %s22
    %s26 = sphi 0, %s23
    %s27 = sphi 0, %s24
    %s28 = sphi 0, %s25
    %s46 = sphi 0, %s48
    %s49 = sphi 0, %s46
    %s50 = sphi 0, %s49
    %s66 = sphi 0, %s50
    %s74 = sphi 0, %s76
    %s77 = sphi 0, %s74
    %s78 = sphi 0, %s77
    %s94 = sphi 0, %s78
    %s102 = sphi 0, %s104
    %s105 = sphi 0, %s102
    %s106 = sphi 0, %s105
    %s122 = sphi 0, %s106
    %s128 = sphi 0, %s130
    %s131 = sphi 0, %s128
    %s132 = sphi 0, %s131
    %s148 = sphi 0, %s132
    %s154 = sphi 0, %s156
    %s157 = sphi 0, %s154
    %s158 = sphi 0, %s157
    %s174 = sphi 0, %s158
    %s178 = sphi 0, %s178
    %s180 = sphi 0, %s178
    %s181 = sphi 0, %s180
    %s195 = sphi 0, %s181
    %s203 = sphi 0, %s205
    %s206 = sphi 0, %s203
    %s207 = sphi 0, %s206
    %s223 = sphi 0, %s207
    %s231 = sphi 0, %s233
    %s234 = sphi 0, %s231
    %s235 = sphi 0, %s234
    %s251 = sphi 0, %s235
  $region4: #{decoder_forward.14} parent=0 // loop_header_branch
    %16 = sbr.rel (%p14) target = $region8
  $region5: #{decoder_forward.14} parent=0 // loop_body
    %s18 = ssub.s32 %s13, 1
    %s19 = ssub.s32 %s13, 2
    %s29 = sadd.s32 1, %s22
    %p30 = scmp.ge.s32.totalorder %s29, 4
    %s31 = scalar_select %p30, 0, %s29
    %s32 = sadd.s32 1, %s21
    %s33 = scalar_select %p30, %s32, %s21
    %p34 = scmp.ge.s32.totalorder %s33, 1
    %s35 = scalar_select %p34, 0, %s33
    %s36 = sadd.s32 1, %s20
    %s37 = scalar_select %p34, %s36, %s20
    %p38 = scmp.ge.s32.totalorder %s37, 2
    %s39 = scalar_select %p38, 0, %s37
    %s40 = ssub.s32 %s20, %s39
    %s41 = ssub.s32 %s22, %s31
    %s42 = sor.u32 %s40, %s41
    %s43 = ssub.s32 %s21, %s35
    %s44 = sor.u32 %s42, %s43
    %p45 = scmp.eq.s32.totalorder %s44, 0
    %s47 = sadd.s32 %s46, 1
    %s48 = scalar_select %p45, %s46, %s47
    %p51 = pneg %p45
    %p52 = scmp.eq.s32.totalorder %s13, 7
    %p53 = por %p51, %p52
    %p54 = scmp.ne.s32.totalorder %s46, %s49
    %p55 = scmp.eq.s32.totalorder %s13, 0
    %p56 = por %p54, %p55
    %p57 = scmp.ne.s32.totalorder %s46, %s49
    %p58 = scmp.eq.s32.totalorder %s18, 7
    %p59 = por %p57, %p58
    %p60 = scmp.ne.s32.totalorder %s49, %s50
    %p61 = scmp.eq.s32.totalorder %s18, 0
    %p62 = por %p60, %p61
    %p63 = scmp.ne.s32.totalorder %s49, %s50
    %p64 = scmp.eq.s32.totalorder %s19, 7
    %p65 = por %p63, %p64
    %p67 = scmp.ne.s32.totalorder %s50, %s66
    %p68 = scmp.eq.s32.totalorder %s19, 0
    %p69 = por %p67, %p68
    %s70 = ssub.s32 %s20, %s39
    %s71 = ssub.s32 %s22, %s31
    %s72 = sor.u32 %s70, %s71
    %p73 = scmp.eq.s32.totalorder %s72, 0
    %s75 = sadd.s32 %s74, 1
    %s76 = scalar_select %p73, %s74, %s75
    %p79 = pneg %p73
    %p80 = scmp.eq.s32.totalorder %s13, 7
    %p81 = por %p79, %p80
    %p82 = scmp.ne.s32.totalorder %s74, %s77
    %p83 = scmp.eq.s32.totalorder %s13, 0
    %p84 = por %p82, %p83
    %p85 = scmp.ne.s32.totalorder %s74, %s77
    %p86 = scmp.eq.s32.totalorder %s18, 7
    %p87 = por %p85, %p86
    %p88 = scmp.ne.s32.totalorder %s77, %s78
    %p89 = scmp.eq.s32.totalorder %s18, 0
    %p90 = por %p88, %p89
    %p91 = scmp.ne.s32.totalorder %s77, %s78
    %p92 = scmp.eq.s32.totalorder %s19, 7
    %p93 = por %p91, %p92
    %p95 = scmp.ne.s32.totalorder %s78, %s94
    %p96 = scmp.eq.s32.totalorder %s19, 0
    %p97 = por %p95, %p96
    %s98 = ssub.s32 %s20, %s39
    %s99 = ssub.s32 %s22, %s31
    %s100 = sor.u32 %s98, %s99
    %p101 = scmp.eq.s32.totalorder %s100, 0
    %s103 = sadd.s32 %s102, 1
    %s104 = scalar_select %p101, %s102, %s103
    %p107 = pneg %p101
    %p108 = scmp.eq.s32.totalorder %s13, 7
    %p109 = por %p107, %p108
    %p110 = scmp.ne.s32.totalorder %s102, %s105
    %p111 = scmp.eq.s32.totalorder %s13, 0
    %p112 = por %p110, %p111
    %p113 = scmp.ne.s32.totalorder %s102, %s105
    %p114 = scmp.eq.s32.totalorder %s18, 7
    %p115 = por %p113, %p114
    %p116 = scmp.ne.s32.totalorder %s105, %s106
    %p117 = scmp.eq.s32.totalorder %s18, 0
    %p118 = por %p116, %p117
    %p119 = scmp.ne.s32.totalorder %s105, %s106
    %p120 = scmp.eq.s32.totalorder %s19, 7
    %p121 = por %p119, %p120
    %p123 = scmp.ne.s32.totalorder %s106, %s122
    %p124 = scmp.eq.s32.totalorder %s19, 0
    %p125 = por %p123, %p124
    %s126 = ssub.s32 %s21, %s35
    %p127 = scmp.eq.s32.totalorder %s126, 0
    %s129 = sadd.s32 %s128, 1
    %s130 = scalar_select %p127, %s128, %s129
    %p133 = pneg %p127
    %p134 = scmp.eq.s32.totalorder %s13, 7
    %p135 = por %p133, %p134
    %p136 = scmp.ne.s32.totalorder %s128, %s131
    %p137 = scmp.eq.s32.totalorder %s13, 0
    %p138 = por %p136, %p137
    %p139 = scmp.ne.s32.totalorder %s128, %s131
    %p140 = scmp.eq.s32.totalorder %s18, 7
    %p141 = por %p139, %p140
    %p142 = scmp.ne.s32.totalorder %s131, %s132
    %p143 = scmp.eq.s32.totalorder %s18, 0
    %p144 = por %p142, %p143
    %p145 = scmp.ne.s32.totalorder %s131, %s132
    %p146 = scmp.eq.s32.totalorder %s19, 7
    %p147 = por %p145, %p146
    %p149 = scmp.ne.s32.totalorder %s132, %s148
    %p150 = scmp.eq.s32.totalorder %s19, 0
    %p151 = por %p149, %p150
    %s152 = ssub.s32 %s22, %s31
    %p153 = scmp.eq.s32.totalorder %s152, 0
    %s155 = sadd.s32 %s154, 1
    %s156 = scalar_select %p153, %s154, %s155
    %p159 = pneg %p153
    %p160 = scmp.eq.s32.totalorder %s13, 7
    %p161 = por %p159, %p160
    %p162 = scmp.ne.s32.totalorder %s154, %s157
    %p163 = scmp.eq.s32.totalorder %s13, 0
    %p164 = por %p162, %p163
    %p165 = scmp.ne.s32.totalorder %s154, %s157
    %p166 = scmp.eq.s32.totalorder %s18, 7
    %p167 = por %p165, %p166
    %p168 = scmp.ne.s32.totalorder %s157, %s158
    %p169 = scmp.eq.s32.totalorder %s18, 0
    %p170 = por %p168, %p169
    %p171 = scmp.ne.s32.totalorder %s157, %s158
    %p172 = scmp.eq.s32.totalorder %s19, 7
    %p173 = por %p171, %p172
    %p175 = scmp.ne.s32.totalorder %s158, %s174
    %p176 = scmp.eq.s32.totalorder %s19, 0
    %p177 = por %p175, %p176
    %s179 = sadd.s32 %s178, 1
    %p182 = scmp.eq.s32.totalorder %s13, 7
    %p183 = scmp.ne.s32.totalorder %s178, %s180
    %p184 = scmp.eq.s32.totalorder %s13, 0
    %p185 = por %p183, %p184
    %p186 = scmp.ne.s32.totalorder %s178, %s180
    %p187 = scmp.eq.s32.totalorder %s18, 7
    %p188 = por %p186, %p187
    %p189 = scmp.ne.s32.totalorder %s180, %s181
    %p190 = scmp.eq.s32.totalorder %s18, 0
    %p191 = por %p189, %p190
    %p192 = scmp.ne.s32.totalorder %s180, %s181
    %p193 = scmp.eq.s32.totalorder %s19, 7
    %p194 = por %p192, %p193
    %p196 = scmp.ne.s32.totalorder %s181, %s195
    %p197 = scmp.eq.s32.totalorder %s19, 0
    %p198 = por %p196, %p197
    %s199 = ssub.s32 %s20, %s39
    %s200 = ssub.s32 %s21, %s35
    %s201 = sor.u32 %s199, %s200
    %p202 = scmp.eq.s32.totalorder %s201, 0
    %s204 = sadd.s32 %s203, 1
    %s205 = scalar_select %p202, %s203, %s204
    %p208 = pneg %p202
    %p209 = scmp.eq.s32.totalorder %s13, 7
    %p210 = por %p208, %p209
    %p211 = scmp.ne.s32.totalorder %s203, %s206
    %p212 = scmp.eq.s32.totalorder %s13, 0
    %p213 = por %p211, %p212
    %p214 = scmp.ne.s32.totalorder %s203, %s206
    %p215 = scmp.eq.s32.totalorder %s18, 7
    %p216 = por %p214, %p215
    %p217 = scmp.ne.s32.totalorder %s206, %s207
    %p218 = scmp.eq.s32.totalorder %s18, 0
    %p219 = por %p217, %p218
    %p220 = scmp.ne.s32.totalorder %s206, %s207
    %p221 = scmp.eq.s32.totalorder %s19, 7
    %p222 = por %p220, %p221
    %p224 = scmp.ne.s32.totalorder %s207, %s223
    %p225 = scmp.eq.s32.totalorder %s19, 0
    %p226 = por %p224, %p225
    %s227 = ssub.s32 %s20, %s39
    %s228 = ssub.s32 %s21, %s35
    %s229 = sor.u32 %s227, %s228
    %p230 = scmp.eq.s32.totalorder %s229, 0
    %s232 = sadd.s32 %s231, 1
    %s233 = scalar_select %p230, %s231, %s232
    %p236 = pneg %p230
    %p237 = scmp.eq.s32.totalorder %s13, 7
    %p238 = por %p236, %p237
    %p239 = scmp.ne.s32.totalorder %s231, %s234
    %p240 = scmp.eq.s32.totalorder %s13, 0
    %p241 = por %p239, %p240
    %p242 = scmp.ne.s32.totalorder %s231, %s234
    %p243 = scmp.eq.s32.totalorder %s18, 7
    %p244 = por %p242, %p243
    %p245 = scmp.ne.s32.totalorder %s234, %s235
    %p246 = scmp.eq.s32.totalorder %s18, 0
    %p247 = por %p245, %p246
    %p248 = scmp.ne.s32.totalorder %s234, %s235
    %p249 = scmp.eq.s32.totalorder %s19, 7
    %p250 = por %p248, %p249
    %p252 = scmp.ne.s32.totalorder %s235, %s251
    %p253 = scmp.eq.s32.totalorder %s19, 0
    %p254 = por %p252, %p253
    %p255 = scmp.le.s32.totalorder 1, %s13
    %p256 = scmp.lt.s32.totalorder %s13, 9
    %p257 = pnand %p255, %p256
    %p258 = pneg %p257
    // Predicated region
    $region9: #{decoder_forward.14} parent=5 // pred_check
      _
    $region10: #{decoder_forward.14} parent=5 // pred_check_branch
      %260 = sbr.rel (%p257) target = $region12
    $region11: #{decoder_forward.14} parent=5 // pred_region
      %s261 = ssub.s32 %s13, 1
      // Predicated region
      $region13: #{decoder_forward.14} parent=11 // pred_check
        %p262 = pneg %p144
      $region14: #{decoder_forward.14} parent=11 // pred_check_branch
        %264 = sbr.rel (%p262) target = $region16
      $region15: #{decoder_forward.14} parent=11 // pred_region
        %p265 = scmp.lt.s32.totalorder %s24, 0
        %s266 = scalar_select %p265, %s24, 0
        %s267 = smul.addr %s266, 8
        %s268 = scalar_lea.vmem %s3, %s267
      $region16: #{decoder_forward.14} parent=11 // pred_fallthru
        _
      // Predicated region
      $region17: #{decoder_forward.14} parent=11 // pred_check
        %p269 = pneg %p191
      $region18: #{decoder_forward.14} parent=11 // pred_check_branch
        %271 = sbr.rel (%p269) target = $region20
      $region19: #{decoder_forward.14} parent=11 // pred_region
        _
      $region20: #{decoder_forward.14} parent=11 // pred_fallthru
        _
    $region12: #{decoder_forward.14} parent=5 // pred_fallthru
      _
    %p272 = scmp.lt.s32.totalorder %s13, 8
    // Predicated region
    $region21: #{decoder_forward.14} parent=5 // pred_check
      %p273 = pneg %p272
    $region22: #{decoder_forward.14} parent=5 // pred_check_branch
      %275 = sbr.rel (%p273) target = $region24
    $region23: #{decoder_forward.14} parent=5 // pred_region
      // Predicated region
      $region25: #{decoder_forward.14} parent=23 // pred_check
        %p276 = pneg %p56
      $region26: #{decoder_forward.14} parent=23 // pred_check_branch
        %278 = sbr.rel (%p276) target = $region28
      $region27: #{decoder_forward.14} parent=23 // pred_region
        %p279 = scmp.lt.s32.totalorder %s20, 1
        %s280 = scalar_select %p279, %s20, 1
        %p281 = scmp.lt.s32.totalorder %s22, 3
        %s282 = scalar_select %p281, %s22, 3
        %p283 = scmp.lt.s32.totalorder %s21, 0
        %s284 = scalar_select %p283, %s21, 0
        %s285 = sadd.s32 %s284, %s282
        %s286 = smul.addr %s280, 4
        %s287 = sadd.s32 %s285, %s286
        %s288 = smul.addr %s287, 4
        %s289 = scalar_lea.vmem %s0, %s288
      $region28: #{decoder_forward.14} parent=23 // pred_fallthru
        _
      // Predicated region
      $region29: #{decoder_forward.14} parent=23 // pred_check
        %p290 = pneg %p84
      $region30: #{decoder_forward.14} parent=23 // pred_check_branch
        %292 = sbr.rel (%p290) target = $region32
      $region31: #{decoder_forward.14} parent=23 // pred_region
        %p293 = scmp.lt.s32.totalorder %s20, 1
        %s294 = scalar_select %p293, %s20, 1
        %p295 = scmp.lt.s32.totalorder %s22, 3
        %s296 = scalar_select %p295, %s22, 3
        %s297 = smul.addr %s294, 4
        %s298 = sadd.s32 %s296, %s297
        %s299 = smul.addr %s298, 4
        %s300 = scalar_lea.vmem %s1, %s299
      $region32: #{decoder_forward.14} parent=23 // pred_fallthru
        _
      // Predicated region
      $region33: #{decoder_forward.14} parent=23 // pred_check
        %p301 = pneg %p112
      $region34: #{decoder_forward.14} parent=23 // pred_check_branch
        %303 = sbr.rel (%p301) target = $region36
      $region35: #{decoder_forward.14} parent=23 // pred_region
        %p304 = scmp.lt.s32.totalorder %s20, 1
        %s305 = scalar_select %p304, %s20, 1
        %p306 = scmp.lt.s32.totalorder %s22, 3
        %s307 = scalar_select %p306, %s22, 3
        %s308 = smul.addr %s305, 4
        %s309 = sadd.s32 %s307, %s308
        %s310 = smul.addr %s309, 4
        %s311 = scalar_lea.vmem %s2, %s310
      $region36: #{decoder_forward.14} parent=23 // pred_fallthru
        _
      // Predicated region
      $region37: #{decoder_forward.14} parent=23 // pred_check
        %p312 = pneg %p164
      $region38: #{decoder_forward.14} parent=23 // pred_check_branch
        %314 = sbr.rel (%p312) target = $region40
      $region39: #{decoder_forward.14} parent=23 // pred_region
        %p315 = scmp.lt.s32.totalorder %s22, 3
        %s316 = scalar_select %p315, %s22, 3
        %s317 = smul.addr %s316, 4
        %s318 = scalar_lea.vmem %s4, %s317
      $region40: #{decoder_forward.14} parent=23 // pred_fallthru
        _
      // Predicated region
      $region41: #{decoder_forward.14} parent=23 // pred_check
        %p319 = pneg %p213
      $region42: #{decoder_forward.14} parent=23 // pred_check_branch
        %321 = sbr.rel (%p319) target = $region44
      $region43: #{decoder_forward.14} parent=23 // pred_region
        %p322 = scmp.lt.s32.totalorder %s20, 1
        %s323 = scalar_select %p322, %s20, 1
        %p324 = scmp.lt.s32.totalorder %s21, 0
        %s325 = scalar_select %p324, %s21, 0
        %s326 = sadd.s32 %s325, %s323
        %s327 = smul.addr %s326, 8
        %s328 = scalar_lea.vmem %s6, %s327
      $region44: #{decoder_forward.14} parent=23 // pred_fallthru
        _
    $region24: #{decoder_forward.14} parent=5 // pred_fallthru
      _
    %p329 = scmp.le.s32.totalorder 1, %s13
    %p330 = scmp.lt.s32.totalorder %s13, 9
    %p331 = pnand %p329, %p330
    %p332 = pneg %p331
    // Predicated region
    $region45: #{decoder_forward.14} parent=5 // pred_check
      _
    $region46: #{decoder_forward.14} parent=5 // pred_check_branch
      %334 = sbr.rel (%p331) target = $region48
    $region47: #{decoder_forward.14} parent=5 // pred_region
      %s335 = ssub.s32 %s13, 1
      %p336 = scmp.lt.s32.totalorder %s23, 1
      %s337 = scalar_select %p336, %s23, 1
      %p338 = scmp.lt.s32.totalorder %s25, 3
      %s339 = scalar_select %p338, %s25, 3
      %p340 = scmp.lt.s32.totalorder %s24, 0
      %s341 = scalar_select %p340, %s24, 0
      %s342 = sadd.s32 %s341, %s339
      %s343 = smul.addr %s337, 4
      %s344 = sadd.s32 %s342, %s343
      %s345 = smul.addr %s344, 4
      %s346 = scalar_lea.vmem %s0, %s345
      %p347 = pneg %p62
      %p348 = pneg %p59
      %p349 = scmp.lt.s32.totalorder %s23, 1
      %s350 = scalar_select %p349, %s23, 1
      %p351 = scmp.lt.s32.totalorder %s25, 3
      %s352 = scalar_select %p351, %s25, 3
      %s353 = smul.addr %s350, 4
      %s354 = sadd.s32 %s352, %s353
      %s355 = smul.addr %s354, 4
      %s356 = scalar_lea.vmem %s1, %s355
      %p357 = pneg %p90
      %p358 = pneg %p87
      %p359 = scmp.lt.s32.totalorder %s23, 1
      %s360 = scalar_select %p359, %s23, 1
      %p361 = scmp.lt.s32.totalorder %s25, 3
      %s362 = scalar_select %p361, %s25, 3
      %s363 = smul.addr %s360, 4
      %s364 = sadd.s32 %s362, %s363
      %s365 = smul.addr %s364, 4
      %s366 = scalar_lea.vmem %s2, %s365
      %p367 = pneg %p118
      %p368 = pneg %p115
      %p369 = scmp.lt.s32.totalorder %s24, 0
      %s370 = scalar_select %p369, %s24, 0
      %s371 = smul.addr %s370, 8
      %s372 = scalar_lea.vmem %s3, %s371
      %p373 = pneg %p144
      %p374 = pneg %p141
      %p375 = scmp.lt.s32.totalorder %s25, 3
      %s376 = scalar_select %p375, %s25, 3
      %s377 = smul.addr %s376, 4
      %s378 = scalar_lea.vmem %s4, %s377
      %p379 = pneg %p170
      %p380 = pneg %p167
      %p381 = pneg %p191
      %p382 = pneg %p188
      %p383 = scmp.lt.s32.totalorder %s23, 1
      %s384 = scalar_select %p383, %s23, 1
      %p385 = scmp.lt.s32.totalorder %s24, 0
      %s386 = scalar_select %p385, %s24, 0
      %s387 = sadd.s32 %s386, %s384
      %s388 = smul.addr %s387, 8
      %s389 = scalar_lea.vmem %s6, %s388
      %p390 = pneg %p219
      %p391 = pneg %p216
      %p392 = pneg %p247
      %p393 = pneg %p244
      %p394 = scmp.lt.s32.totalorder %s23, 1
      %s395 = scalar_select %p394, %s23, 1
      %p396 = scmp.lt.s32.totalorder %s24, 0
      %s397 = scalar_select %p396, %s24, 0
      %s398 = sadd.s32 %s397, %s395
      %s399 = smul.addr %s398, 8
      %s400 = scalar_lea.vmem %s7, %s399
      %p401 = scmp.lt.s32.totalorder %s23, 1
      %s402 = scalar_select %p401, %s23, 1
      %p403 = scmp.lt.s32.totalorder %s25, 3
      %s404 = scalar_select %p403, %s25, 3
      %p405 = scmp.lt.s32.totalorder %s24, 0
      %s406 = scalar_select %p405, %s24, 0
      %s407 = sadd.s32 %s406, %s404
      %s408 = smul.addr %s402, 4
      %s409 = sadd.s32 %s407, %s408
      %s410 = smul.addr %s409, 4
      %s411 = scalar_lea.vmem %s0, %s410
      %p412 = scmp.lt.s32.totalorder %s23, 1
      %s413 = scalar_select %p412, %s23, 1
      %p414 = scmp.lt.s32.totalorder %s25, 3
      %s415 = scalar_select %p414, %s25, 3
      %s416 = smul.addr %s413, 4
      %s417 = sadd.s32 %s415, %s416
      %s418 = smul.addr %s417, 4
      %s419 = scalar_lea.vmem %s1, %s418
      %p420 = scmp.lt.s32.totalorder %s23, 1
      %s421 = scalar_select %p420, %s23, 1
      %p422 = scmp.lt.s32.totalorder %s25, 3
      %s423 = scalar_select %p422, %s25, 3
      %s424 = smul.addr %s421, 4
      %s425 = sadd.s32 %s423, %s424
      %s426 = smul.addr %s425, 4
      %s427 = scalar_lea.vmem %s2, %s426
      %p428 = scmp.lt.s32.totalorder %s24, 0
      %s429 = scalar_select %p428, %s24, 0
      %s430 = smul.addr %s429, 8
      %s431 = scalar_lea.vmem %s3, %s430
      %p432 = scmp.lt.s32.totalorder %s25, 3
      %s433 = scalar_select %p432, %s25, 3
      %s434 = smul.addr %s433, 4
      %s435 = scalar_lea.vmem %s4, %s434
      %p436 = scmp.lt.s32.totalorder %s23, 1
      %s437 = scalar_select %p436, %s23, 1
      %p438 = scmp.lt.s32.totalorder %s24, 0
      %s439 = scalar_select %p438, %s24, 0
      %s440 = sadd.s32 %s439, %s437
      %s441 = smul.addr %s440, 8
      %s442 = scalar_lea.vmem %s6, %s441
      %p443 = scmp.lt.s32.totalorder %s23, 1
      %s444 = scalar_select %p443, %s23, 1
      %p445 = scmp.lt.s32.totalorder %s24, 0
      %s446 = scalar_select %p445, %s24, 0
      %s447 = sadd.s32 %s446, %s444
      %s448 = smul.addr %s447, 8
      %s449 = scalar_lea.vmem %s7, %s448
      %p451 = scmp.eq.s32.totalorder %s25, 0
      // Predicated region
      $region49: #{decoder_forward.14} parent=47 // pred_check
        %p452 = pneg %p451
      $region50: #{decoder_forward.14} parent=47 // pred_check_branch
        %454 = sbr.rel (%p452) target = $region52
      $region51: #{decoder_forward.14} parent=47 // pred_region
        %v455 = vld [vmem:[%s442] sm:$0xff]
        %v456 = vld [vmem:[%s5] sm:$0x1]
        %v458 = vlaneseq
        %v459 = vshrl.u32 %v458, 7
        %v460 = vsub.s32 0, %v459
        %v461 = vrot.slane %v456, %v460
        %v463 = vadd.f32 %v455, %v461
        %vm464 = vcmask 261120
        %465 = vst.msk [vmem:[#allocation2] sm:$0xff] %vm464, %v463
      $region52: #{decoder_forward.14} parent=47 // pred_fallthru
        _
      %v466 = vld [vmem:[%s411] sm:$0xf]
      %v467 = vunpack.c.l.bf16 %v466
      %v468 = vld [vmem:[%s419] sm:$0xf]
      %v469 = vunpack.c.l.bf16 %v468
      %vm470 = vcmask 64512
      %v472 = vsel %vm470, %v467, 0
      %v475 = vsel %vm470, %v469, 0
      %477 = vmatprep.subr.mxu0 0.0
      %478 = vmatpush1.xpose.msra.mxu0 %v475
      %479 = vmatprep.subr.mxu0 0.0
      %480 = vmatpush1.xpose.msra.mxu0 0.0
      %481 = vmatprep.subr.mxu0 0.0
      %482 = vmatpush1.xpose.msra.mxu0 0.0
      %483 = vmatprep.subr.mxu0 0.0
      %484 = vmatpush1.xpose.msra.mxu0 0.0
      %485 = vmatprep.subr.mxu0 0.0
      %486 = vmatpush1.xpose.msra.mxu0 0.0
      %487 = vmatprep.subr.mxu0 0.0
      %488 = vmatpush1.xpose.msra.mxu0 0.0
      %489 = vmatprep.subr.mxu0 0.0
      %490 = vmatpush1.xpose.msra.mxu0 0.0
      %491 = vmatprep.subr.mxu0 0.0
      %492 = vmatpush1.xpose.msra.mxu0 0.0
      %493 = vmatprep.subr.mxu0 0.0
      %494 = vmatpush1.xpose.msra.mxu0 0.0
      %495 = vmatprep.subr.mxu0 0.0
      %496 = vmatpush1.xpose.msra.mxu0 0.0
      %497 = vmatprep.subr.mxu0 0.0
      %498 = vmatpush1.xpose.msra.mxu0 0.0
      %499 = vmatprep.subr.mxu0 0.0
      %500 = vmatpush1.xpose.msra.mxu0 0.0
      %501 = vmatprep.subr.mxu0 0.0
      %502 = vmatpush1.xpose.msra.mxu0 0.0
      %503 = vmatprep.subr.mxu0 0.0
      %504 = vmatpush1.xpose.msra.mxu0 0.0
      %505 = vmatprep.subr.mxu0 0.0
      %506 = vmatpush1.xpose.msra.mxu0 0.0
      %507 = vmatprep.subr.mxu0 0.0
      %508 = vmatpush1.xpose.msra.mxu0 0.0
      %509 = vmatprep.subr.mxu0 0.0
      %510 = vmatpush1.xpose.msra.mxu0 0.0
      %511 = vmatprep.subr.mxu0 0.0
      %512 = vmatpush1.xpose.msra.mxu0 0.0
      %513 = vmatprep.subr.mxu0 0.0
      %514 = vmatpush1.xpose.msra.mxu0 0.0
      %515 = vmatprep.subr.mxu0 0.0
      %516 = vmatpush1.xpose.msra.mxu0 0.0
      %517 = vmatprep.subr.mxu0 0.0
      %518 = vmatpush1.xpose.msra.mxu0 0.0
      %519 = vmatprep.subr.mxu0 0.0
      %520 = vmatpush1.xpose.msra.mxu0 0.0
      %521 = vmatprep.subr.mxu0 0.0
      %522 = vmatpush1.xpose.msra.mxu0 0.0
      %523 = vmatprep.subr.mxu0 0.0
      %524 = vmatpush1.xpose.msra.mxu0 0.0
      %525 = vmatprep.subr.mxu0 0.0
      %526 = vmatpush1.xpose.msra.mxu0 0.0
      %527 = vmatprep.subr.mxu0 0.0
      %528 = vmatpush1.xpose.msra.mxu0 0.0
      %529 = vmatprep.subr.mxu0 0.0
      %530 = vmatpush1.xpose.msra.mxu0 0.0
      %531 = vmatprep.subr.mxu0 0.0
      %532 = vmatpush1.xpose.msra.mxu0 0.0
      %533 = vmatprep.subr.mxu0 0.0
      %534 = vmatpush1.xpose.msra.mxu0 0.0
      %535 = vmatprep.subr.mxu0 0.0
      %536 = vmatpush1.xpose.msra.mxu0 0.0
      %537 = vmatprep.subr.mxu0 0.0
      %538 = vmatpush1.xpose.msra.mxu0 0.0
      %539 = vmatprep.subr.mxu0 0.0
      %540 = vmatpush1.xpose.msra.mxu0 0.0
      %541 = vmatprep.mubr.f32.mxu0 0.0
      %542 = vmatmul.mubr.f32.gmra.mrb[0].mxu0 %v472
      %v543 = vpop.f32.mrb[0].mxu0
      %v544 = vadd.f32 0.0, %v543
      %v545 = vpop.f32.mrb[0].mxu0
      %546 = vdwg.mxu0
      %v547 = vmul.f32 %v544, 0.35355338
      %v548 = vld [vmem:[%s431] sm:$0xff]
      %v549 = vadd.f32 %v547, %v548
      %v550 = vsel %vm470, %v549, -inf
      %551 = vmax.xlane.f32.xlu0 %v550
      %v552 = vpop.xlane.xlu0 %551
      %v553 = vsub.f32 %v549, %v552
      %v554 = vmul.f32 %v553, 1.442695
      %v555 = vpow.pop %v554
      %v556 = vsel %vm470, %v555, 0.0
      %557 = vadd.xlane.f32.xlu0 %v556
      %v558 = vpop.xlane.xlu0 %557
      %v559 = vrcp.pop %v558
      %v560 = vmul.f32 %v555, %v559
      %v561 = vpack.c.bf16 %v560, %v560
      %v562 = vld [vmem:[%s427] sm:$0xf]
      %v564 = vsel %vm470, %v561, 0
      %vm566 = vcmask 1043456
      %v568 = vsel %vm566, %v562, 0
      %570 = vmatprep.subr.bf16.mxu0 0
      %571 = vmatpush1.bf16.msra.mxu0 %v568
      %572 = vmatprep.subr.bf16.mxu0 0
      %573 = vmatpush1.bf16.msra.mxu0 0
      %574 = vmatprep.subr.bf16.mxu0 0
      %575 = vmatpush1.bf16.msra.mxu0 0
      %576 = vmatprep.subr.bf16.mxu0 0
      %577 = vmatpush1.bf16.msra.mxu0 0
      %578 = vmatprep.subr.bf16.mxu0 0
      %579 = vmatpush1.bf16.msra.mxu0 0
      %580 = vmatprep.subr.bf16.mxu0 0
      %581 = vmatpush1.bf16.msra.mxu0 0
      %582 = vmatprep.subr.bf16.mxu0 0
      %583 = vmatpush1.bf16.msra.mxu0 0
      %584 = vmatprep.subr.bf16.mxu0 0
      %585 = vmatpush1.bf16.msra.mxu0 0
      %586 = vmatprep.subr.bf16.mxu0 0
      %587 = vmatpush1.bf16.msra.mxu0 0
      %588 = vmatprep.subr.bf16.mxu0 0
      %589 = vmatpush1.bf16.msra.mxu0 0
      %590 = vmatprep.subr.bf16.mxu0 0
      %591 = vmatpush1.bf16.msra.mxu0 0
      %592 = vmatprep.subr.bf16.mxu0 0
      %593 = vmatpush1.bf16.msra.mxu0 0
      %594 = vmatprep.subr.bf16.mxu0 0
      %595 = vmatpush1.bf16.msra.mxu0 0
      %596 = vmatprep.subr.bf16.mxu0 0
      %597 = vmatpush1.bf16.msra.mxu0 0
      %598 = vmatprep.subr.bf16.mxu0 0
      %599 = vmatpush1.bf16.msra.mxu0 0
      %600 = vmatprep.subr.bf16.mxu0 0
      %601 = vmatpush1.bf16.msra.mxu0 0
      %602 = vmatprep.mubr.bf16.mxu0 0
      %603 = vmatmul.mubr.bf16.gmra.mrb[0].mxu0 %v564
      %v604 = vpop.f32.mrb[0].mxu0
      %v605 = vadd.f32 0.0, %v604
      %v606 = vpop.f32.mrb[0].mxu0
      %v607 = vpop.f32.mrb[0].mxu0
      %v608 = vpop.f32.mrb[0].mxu0
      %609 = vdwg.mxu0
      %v610 = vld [vmem:[#allocation2] sm:$0xff]
      %v611 = vpack.c.bf16 %v605, %v605
      %v612 = vld [vmem:[%s435] sm:$0xf]
      %v614 = vsel %vm470, %v611, 0
      %v617 = vsel %vm566, %v612, 0
      %619 = vmatprep.subr.bf16.mxu0 0
      %620 = vmatpush1.bf16.msra.mxu0 %v617
      %621 = vmatprep.subr.bf16.mxu0 0
      %622 = vmatpush1.bf16.msra.mxu0 0
      %623 = vmatprep.subr.bf16.mxu0 0
      %624 = vmatpush1.bf16.msra.mxu0 0
      %625 = vmatprep.subr.bf16.mxu0 0
      %626 = vmatpush1.bf16.msra.mxu0 0
      %627 = vmatprep.subr.bf16.mxu0 0
      %628 = vmatpush1.bf16.msra.mxu0 0
      %629 = vmatprep.subr.bf16.mxu0 0
      %630 = vmatpush1.bf16.msra.mxu0 0
      %631 = vmatprep.subr.bf16.mxu0 0
      %632 = vmatpush1.bf16.msra.mxu0 0
      %633 = vmatprep.subr.bf16.mxu0 0
      %634 = vmatpush1.bf16.msra.mxu0 0
      %635 = vmatprep.subr.bf16.mxu0 0
      %636 = vmatpush1.bf16.msra.mxu0 0
      %637 = vmatprep.subr.bf16.mxu0 0
      %638 = vmatpush1.bf16.msra.mxu0 0
      %639 = vmatprep.subr.bf16.mxu0 0
      %640 = vmatpush1.bf16.msra.mxu0 0
      %641 = vmatprep.subr.bf16.mxu0 0
      %642 = vmatpush1.bf16.msra.mxu0 0
      %643 = vmatprep.subr.bf16.mxu0 0
      %644 = vmatpush1.bf16.msra.mxu0 0
      %645 = vmatprep.subr.bf16.mxu0 0
      %646 = vmatpush1.bf16.msra.mxu0 0
      %647 = vmatprep.subr.bf16.mxu0 0
      %648 = vmatpush1.bf16.msra.mxu0 0
      %649 = vmatprep.subr.bf16.mxu0 0
      %650 = vmatpush1.bf16.msra.mxu0 0
      %651 = vmatprep.mubr.bf16.mxu0 0
      %652 = vmatmul.mubr.bf16.gmra.mrb[0].mxu0 %v614
      %v653 = vpop.f32.mrb[0].mxu0
      %v654 = vadd.f32 0.0, %v653
      %v655 = vpop.f32.mrb[0].mxu0
      %v656 = vpop.f32.mrb[0].mxu0
      %v657 = vpop.f32.mrb[0].mxu0
      %658 = vdwg.mxu0
      %v659 = vadd.f32 %v610, %v654
      %vm660 = vcmask 261120
      %661 = vst.msk [vmem:[#allocation2] sm:$0xff] %vm660, %v659
      %p662 = scmp.eq.s32.totalorder %s25, 3
      // Predicated region
      $region53: #{decoder_forward.14} parent=47 // pred_check
        %p663 = pneg %p662
      $region54: #{decoder_forward.14} parent=47 // pred_check_branch
        %665 = sbr.rel (%p663) target = $region56
      $region55: #{decoder_forward.14} parent=47 // pred_region
        %v666 = vld [vmem:[#allocation2] sm:$0xff]
        %667 = vst.msk [vmem:[%s449] sm:$0xff] %vm660, %v666
      $region56: #{decoder_forward.14} parent=47 // pred_fallthru
        _
      %p668 = scmp.lt.s32.totalorder %s23, 1
      %s669 = scalar_select %p668, %s23, 1
      %p670 = scmp.lt.s32.totalorder %s24, 0
      %s671 = scalar_select %p670, %s24, 0
      %s672 = sadd.s32 %s671, %s669
      %s673 = smul.addr %s672, 8
      %s674 = scalar_lea.vmem %s7, %s673
      // Predicated region
      $region57: #{decoder_forward.14} parent=47 // pred_check
        %p675 = pneg %p244
      $region58: #{decoder_forward.14} parent=47 // pred_check_branch
        %677 = sbr.rel (%p675) target = $region60
      $region59: #{decoder_forward.14} parent=47 // pred_region
        _
      $region60: #{decoder_forward.14} parent=47 // pred_fallthru
        _
    $region48: #{decoder_forward.14} parent=5 // pred_fallthru
      _
    %p678 = scmp.le.s32.totalorder 2, %s13
    // Predicated region
    $region61: #{decoder_forward.14} parent=5 // pred_check
      %p679 = pneg %p678
    $region62: #{decoder_forward.14} parent=5 // pred_check_branch
      %681 = sbr.rel (%p679) target = $region64
    $region63: #{decoder_forward.14} parent=5 // pred_region
      %s682 = ssub.s32 %s13, 2
      // Predicated region
      $region65: #{decoder_forward.14} parent=63 // pred_check
        %p683 = pneg %p250
      $region66: #{decoder_forward.14} parent=63 // pred_check_branch
        %685 = sbr.rel (%p683) target = $region68
      $region67: #{decoder_forward.14} parent=63 // pred_region
        %p686 = scmp.lt.s32.totalorder %s26, 1
        %s687 = scalar_select %p686, %s26, 1
        %p688 = scmp.lt.s32.totalorder %s27, 0
        %s689 = scalar_select %p688, %s27, 0
        %s690 = sadd.s32 %s689, %s687
        %s691 = smul.addr %s690, 8
        %s692 = scalar_lea.vmem %s7, %s691
      $region68: #{decoder_forward.14} parent=63 // pred_fallthru
        _
    $region64: #{decoder_forward.14} parent=5 // pred_fallthru
      _
  $region6: #{decoder_forward.14} parent=0 // loop_footer
    %s17 = sadd.s32 1, %s13
  $region7: #{decoder_forward.14} parent=0 // loop_footer_branch
    %12 = sbr.rel target = $region3
  $region8: #{decoder_forward.14} parent=0 // loop_exit
    _

// kernel: decoder_forward.15
$region0: #{decoder_forward.15}
  #allocation0 [shape = 'u32[]', space=smem, size = 0x4, offset = 0x4, fixed_abs, tag = 'smem constant byte address 0x4 - core index']
  #allocation1 [shape = 'u32[144,128]{1,0:T(1,128)}', space=vmem, size = 0x12000, scoped, tag = 'internal scratch']
  %s0 = inlined_call_operand.vmem [shape: f32[16,32], index: 0, kind: input, shape index: {}]
  %s1 = inlined_call_operand.vmem [shape: f32[1,32], index: 1, kind: input, shape index: {}]
  %s2 = inlined_call_operand.vmem [shape: f32[1,32], index: 2, kind: input, shape index: {}]
  %s3 = inlined_call_operand.vmem [shape: bf16[32,32], index: 3, kind: input, shape index: {}]
  %s4 = inlined_call_operand.vmem [shape: f32[1,32], index: 4, kind: input, shape index: {}]
  %s5 = inlined_call_operand.vmem [shape: f32[16,32], index: 5, kind: output, shape index: {0}]
  %s6 = inlined_call_operand.vmem [shape: bf16[16,32], index: 6, kind: output, shape index: {1}]
  %7 = xla_tuple %s5, %s6
  %s8 = sld [smem:[#allocation0]]
  $region61: #{decoder_forward.15} parent=0
    _
  %s10 = ssub.s32 1, %s8
  %s11 = scalar_select 0, %s10, %s8
  loop: start=0, step=1, limit=4
  $region2: #{decoder_forward.15} parent=0 // loop_pre_header
    _
  $region3: #{decoder_forward.15} parent=0 // loop_header
    %s13 = sphi 0, %s17
    %p14 = scmp.ge.s32.totalorder %s13, 4
    %s23 = sphi 0, %s25
    %s26 = sphi 0, %s23
    %s27 = sphi 0, %s26
    %s43 = sphi 0, %s27
    %s47 = sphi 0, %s47
    %s49 = sphi 0, %s47
    %s50 = sphi 0, %s49
    %s64 = sphi 0, %s50
    %s68 = sphi 0, %s68
    %s70 = sphi 0, %s68
    %s71 = sphi 0, %s70
    %s85 = sphi 0, %s71
    %s89 = sphi 0, %s89
    %s91 = sphi 0, %s89
    %s92 = sphi 0, %s91
    %s106 = sphi 0, %s92
    %s110 = sphi 0, %s110
    %s112 = sphi 0, %s110
    %s113 = sphi 0, %s112
    %s127 = sphi 0, %s113
    %s133 = sphi 0, %s135
    %s136 = sphi 0, %s133
    %s137 = sphi 0, %s136
    %s153 = sphi 0, %s137
    %s159 = sphi 0, %s161
    %s162 = sphi 0, %s159
    %s163 = sphi 0, %s162
    %s179 = sphi 0, %s163
  $region4: #{decoder_forward.15} parent=0 // loop_header_branch
    %16 = sbr.rel (%p14) target = $region8
  $region5: #{decoder_forward.15} parent=0 // loop_body
    %s18 = ssub.s32 %s13, 1
    %s19 = ssub.s32 %s13, 2
    %s20 = sadd.s32 %s13, 1
    %s21 = ssub.s32 %s13, %s20
    %p22 = scmp.eq.s32.totalorder %s21, 0
    %s24 = sadd.s32 %s23, 1
    %s25 = scalar_select %p22, %s23, %s24
    %p28 = pneg %p22
    %p29 = scmp.eq.s32.totalorder %s13, 1
    %p30 = por %p28, %p29
    %p31 = scmp.ne.s32.totalorder %s23, %s26
    %p32 = scmp.eq.s32.totalorder %s13, 0
    %p33 = por %p31, %p32
    %p34 = scmp.ne.s32.totalorder %s23, %s26
    %p35 = scmp.eq.s32.totalorder %s18, 1
    %p36 = por %p34, %p35
    %p37 = scmp.ne.s32.totalorder %s26, %s27
    %p38 = scmp.eq.s32.totalorder %s18, 0
    %p39 = por %p37, %p38
    %p40 = scmp.ne.s32.totalorder %s26, %s27
    %p41 = scmp.eq.s32.totalorder %s19, 1
    %p42 = por %p40, %p41
    %p44 = scmp.ne.s32.totalorder %s27, %s43
    %p45 = scmp.eq.s32.totalorder %s19, 0
    %p46 = por %p44, %p45
    %s48 = sadd.s32 %s47, 1
    %p51 = scmp.eq.s32.totalorder %s13, 1
    %p52 = scmp.ne.s32.totalorder %s47, %s49
    %p53 = scmp.eq.s32.totalorder %s13, 0
    %p54 = por %p52, %p53
    %p55 = scmp.ne.s32.totalorder %s47, %s49
    %p56 = scmp.eq.s32.totalorder %s18, 1
    %p57 = por %p55, %p56
    %p58 = scmp.ne.s32.totalorder %s49, %s50
    %p59 = scmp.eq.s32.totalorder %s18, 0
    %p60 = por %p58, %p59
    %p61 = scmp.ne.s32.totalorder %s49, %s50
    %p62 = scmp.eq.s32.totalorder %s19, 1
    %p63 = por %p61, %p62
    %p65 = scmp.ne.s32.totalorder %s50, %s64
    %p66 = scmp.eq.s32.totalorder %s19, 0
    %p67 = por %p65, %p66
    %s69 = sadd.s32 %s68, 1
    %p72 = scmp.eq.s32.totalorder %s13, 1
    %p73 = scmp.ne.s32.totalorder %s68, %s70
    %p74 = scmp.eq.s32.totalorder %s13, 0
    %p75 = por %p73, %p74
    %p76 = scmp.ne.s32.totalorder %s68, %s70
    %p77 = scmp.eq.s32.totalorder %s18, 1
    %p78 = por %p76, %p77
    %p79 = scmp.ne.s32.totalorder %s70, %s71
    %p80 = scmp.eq.s32.totalorder %s18, 0
    %p81 = por %p79, %p80
    %p82 = scmp.ne.s32.totalorder %s70, %s71
    %p83 = scmp.eq.s32.totalorder %s19, 1
    %p84 = por %p82, %p83
    %p86 = scmp.ne.s32.totalorder %s71, %s85
    %p87 = scmp.eq.s32.totalorder %s19, 0
    %p88 = por %p86, %p87
    %s90 = sadd.s32 %s89, 1
    %p93 = scmp.eq.s32.totalorder %s13, 1
    %p94 = scmp.ne.s32.totalorder %s89, %s91
    %p95 = scmp.eq.s32.totalorder %s13, 0
    %p96 = por %p94, %p95
    %p97 = scmp.ne.s32.totalorder %s89, %s91
    %p98 = scmp.eq.s32.totalorder %s18, 1
    %p99 = por %p97, %p98
    %p100 = scmp.ne.s32.totalorder %s91, %s92
    %p101 = scmp.eq.s32.totalorder %s18, 0
    %p102 = por %p100, %p101
    %p103 = scmp.ne.s32.totalorder %s91, %s92
    %p104 = scmp.eq.s32.totalorder %s19, 1
    %p105 = por %p103, %p104
    %p107 = scmp.ne.s32.totalorder %s92, %s106
    %p108 = scmp.eq.s32.totalorder %s19, 0
    %p109 = por %p107, %p108
    %s111 = sadd.s32 %s110, 1
    %p114 = scmp.eq.s32.totalorder %s13, 1
    %p115 = scmp.ne.s32.totalorder %s110, %s112
    %p116 = scmp.eq.s32.totalorder %s13, 0
    %p117 = por %p115, %p116
    %p118 = scmp.ne.s32.totalorder %s110, %s112
    %p119 = scmp.eq.s32.totalorder %s18, 1
    %p120 = por %p118, %p119
    %p121 = scmp.ne.s32.totalorder %s112, %s113
    %p122 = scmp.eq.s32.totalorder %s18, 0
    %p123 = por %p121, %p122
    %p124 = scmp.ne.s32.totalorder %s112, %s113
    %p125 = scmp.eq.s32.totalorder %s19, 1
    %p126 = por %p124, %p125
    %p128 = scmp.ne.s32.totalorder %s113, %s127
    %p129 = scmp.eq.s32.totalorder %s19, 0
    %p130 = por %p128, %p129
    %s131 = ssub.s32 %s13, %s20
    %p132 = scmp.eq.s32.totalorder %s131, 0
    %s134 = sadd.s32 %s133, 1
    %s135 = scalar_select %p132, %s133, %s134
    %p138 = pneg %p132
    %p139 = scmp.eq.s32.totalorder %s13, 1
    %p140 = por %p138, %p139
    %p141 = scmp.ne.s32.totalorder %s133, %s136
    %p142 = scmp.eq.s32.totalorder %s13, 0
    %p143 = por %p141, %p142
    %p144 = scmp.ne.s32.totalorder %s133, %s136
    %p145 = scmp.eq.s32.totalorder %s18, 1
    %p146 = por %p144, %p145
    %p147 = scmp.ne.s32.totalorder %s136, %s137
    %p148 = scmp.eq.s32.totalorder %s18, 0
    %p149 = por %p147, %p148
    %p150 = scmp.ne.s32.totalorder %s136, %s137
    %p151 = scmp.eq.s32.totalorder %s19, 1
    %p152 = por %p150, %p151
    %p154 = scmp.ne.s32.totalorder %s137, %s153
    %p155 = scmp.eq.s32.totalorder %s19, 0
    %p156 = por %p154, %p155
    %s157 = ssub.s32 %s13, %s20
    %p158 = scmp.eq.s32.totalorder %s157, 0
    %s160 = sadd.s32 %s159, 1
    %s161 = scalar_select %p158, %s159, %s160
    %p164 = pneg %p158
    %p165 = scmp.eq.s32.totalorder %s13, 1
    %p166 = por %p164, %p165
    %p167 = scmp.ne.s32.totalorder %s159, %s162
    %p168 = scmp.eq.s32.totalorder %s13, 0
    %p169 = por %p167, %p168
    %p170 = scmp.ne.s32.totalorder %s159, %s162
    %p171 = scmp.eq.s32.totalorder %s18, 1
    %p172 = por %p170, %p171
    %p173 = scmp.ne.s32.totalorder %s162, %s163
    %p174 = scmp.eq.s32.totalorder %s18, 0
    %p175 = por %p173, %p174
    %p176 = scmp.ne.s32.totalorder %s162, %s163
    %p177 = scmp.eq.s32.totalorder %s19, 1
    %p178 = por %p176, %p177
    %p180 = scmp.ne.s32.totalorder %s163, %s179
    %p181 = scmp.eq.s32.totalorder %s19, 0
    %p182 = por %p180, %p181
    %p183 = scmp.le.s32.totalorder 1, %s13
    %p184 = scmp.lt.s32.totalorder %s13, 3
    %p185 = pnand %p183, %p184
    %p186 = pneg %p185
    // Predicated region
    $region9: #{decoder_forward.15} parent=5 // pred_check
      _
    $region10: #{decoder_forward.15} parent=5 // pred_check_branch
      %188 = sbr.rel (%p185) target = $region12
    $region11: #{decoder_forward.15} parent=5 // pred_region
      %s189 = ssub.s32 %s13, 1
      // Predicated region
      $region13: #{decoder_forward.15} parent=11 // pred_check
        %p190 = pneg %p60
      $region14: #{decoder_forward.15} parent=11 // pred_check_branch
        %192 = sbr.rel (%p190) target = $region16
      $region15: #{decoder_forward.15} parent=11 // pred_region
        _
      $region16: #{decoder_forward.15} parent=11 // pred_fallthru
        _
      // Predicated region
      $region17: #{decoder_forward.15} parent=11 // pred_check
        %p193 = pneg %p81
      $region18: #{decoder_forward.15} parent=11 // pred_check_branch
        %195 = sbr.rel (%p193) target = $region20
      $region19: #{decoder_forward.15} parent=11 // pred_region
        _
      $region20: #{decoder_forward.15} parent=11 // pred_fallthru
        _
      // Predicated region
      $region21: #{decoder_forward.15} parent=11 // pred_check
        %p196 = pneg %p102
      $region22: #{decoder_forward.15} parent=11 // pred_check_branch
        %198 = sbr.rel (%p196) target = $region24
      $region23: #{decoder_forward.15} parent=11 // pred_region
        _
      $region24: #{decoder_forward.15} parent=11 // pred_fallthru
        _
      // Predicated region
      $region25: #{decoder_forward.15} parent=11 // pred_check
        %p199 = pneg %p123
      $region26: #{decoder_forward.15} parent=11 // pred_check_branch
        %201 = sbr.rel (%p199) target = $region28
      $region27: #{decoder_forward.15} parent=11 // pred_region
        _
      $region28: #{decoder_forward.15} parent=11 // pred_fallthru
        _
    $region12: #{decoder_forward.15} parent=5 // pred_fallthru
      _
    %p202 = scmp.lt.s32.totalorder %s13, 2
    // Predicated region
    $region29: #{decoder_forward.15} parent=5 // pred_check
      %p203 = pneg %p202
    $region30: #{decoder_forward.15} parent=5 // pred_check_branch
      %205 = sbr.rel (%p203) target = $region32
    $region31: #{decoder_forward.15} parent=5 // pred_region
      // Predicated region
      $region33: #{decoder_forward.15} parent=31 // pred_check
        %p206 = pneg %p33
      $region34: #{decoder_forward.15} parent=31 // pred_check_branch
        %208 = sbr.rel (%p206) target = $region36
      $region35: #{decoder_forward.15} parent=31 // pred_region
        %p209 = scmp.lt.s32.totalorder %s13, 1
        %s210 = scalar_select %p209, %s13, 1
        %s211 = smul.addr %s210, 8
        %s212 = scalar_lea.vmem %s0, %s211
      $region36: #{decoder_forward.15} parent=31 // pred_fallthru
        _
    $region32: #{decoder_forward.15} parent=5 // pred_fallthru
      _
    %p213 = scmp.le.s32.totalorder 1, %s13
    %p214 = scmp.lt.s32.totalorder %s13, 3
    %p215 = pnand %p213, %p214
    %p216 = pneg %p215
    // Predicated region
    $region37: #{decoder_forward.15} parent=5 // pred_check
      _
    $region38: #{decoder_forward.15} parent=5 // pred_check_branch
      %218 = sbr.rel (%p215) target = $region40
    $region39: #{decoder_forward.15} parent=5 // pred_region
      %s219 = ssub.s32 %s13, 1
      %p220 = scmp.lt.s32.totalorder %s18, 1
      %s221 = scalar_select %p220, %s18, 1
      %s222 = smul.addr %s221, 8
      %s223 = scalar_lea.vmem %s0, %s222
      %p224 = pneg %p39
      %p225 = pneg %p36
      %p226 = pneg %p60
      %p227 = pneg %p57
      %p228 = pneg %p81
      %p229 = pneg %p78
      %p230 = pneg %p102
      %p231 = pneg %p99
      %p232 = pneg %p123
      %p233 = pneg %p120
      %p234 = pneg %p149
      %p235 = pneg %p146
      %p236 = scmp.lt.s32.totalorder %s18, 1
      %s237 = scalar_select %p236, %s18, 1
      %s238 = smul.addr %s237, 8
      %s239 = scalar_lea.vmem %s5, %s238
      %p240 = pneg %p175
      %p241 = pneg %p172
      %p242 = scmp.lt.s32.totalorder %s18, 1
      %s243 = scalar_select %p242, %s18, 1
      %s244 = smul.addr %s243, 4
      %s245 = scalar_lea.vmem %s6, %s244
      %p246 = scmp.lt.s32.totalorder %s18, 1
      %s247 = scalar_select %p246, %s18, 1
      %s248 = smul.addr %s247, 8
      %s249 = scalar_lea.vmem %s0, %s248
      %p250 = scmp.lt.s32.totalorder %s18, 1
      %s251 = scalar_select %p250, %s18, 1
      %s252 = smul.addr %s251, 8
      %s253 = scalar_lea.vmem %s5, %s252
      %p254 = scmp.lt.s32.totalorder %s18, 1
      %s255 = scalar_select %p254, %s18, 1
      %s256 = smul.addr %s255, 4
      %s257 = scalar_lea.vmem %s6, %s256
      %v259 = vld [vmem:[%s249] sm:$0xff]
      %vm260 = vcmask 261120
      %v261 = vsel %vm260, %v259, 0.0
      %262 = vadd.xlane.f32.xlu0 %v261
      %v263 = vpop.xlane.xlu0 %262
      %v264 = vrcp.pop 32.0
      %v265 = vmul.f32 %v263, %v264
      %v266 = vsub.f32 %v259, %v265
      %v267 = vmul.f32 %v266, %v266
      %v268 = vsel %vm260, %v267, 0.0
      %269 = vadd.xlane.f32.xlu0 %v268
      %v270 = vpop.xlane.xlu0 %269
      %v271 = vmul.f32 %v270, %v264
      %v272 = vadd.f32 %v271, 1e-05
      %v273 = vrsqrt.pop %v272
      %v274 = vmul.f32 %v266, %v273
      %v275 = vld [vmem:[%s1] sm:$0x1]
      %v277 = vlaneseq
      %v278 = vshrl.u32 %v277, 7
      %v279 = vsub.s32 0, %v278
      %v280 = vrot.slane %v275, %v279
      %v282 = vmul.f32 %v274, %v280
      %v283 = vld [vmem:[%s2] sm:$0x1]
      %v285 = vlaneseq
      %v286 = vshrl.u32 %v285, 7
      %v287 = vsub.s32 0, %v286
      %v288 = vrot.slane %v283, %v287
      %v290 = vadd.f32 %v282, %v288
      %291 = vst.msk [vmem:[%s253] sm:$0xff] %vm260, %v290
      %v292 = vpack.c.bf16 %v290, %v290
      %v293 = vld [vmem:[%s3] sm:$0xf]
      %v294 = vld [vmem:[%s3 + $0x4] sm:$0xf]
      %v295 = vld [vmem:[%s3 + $0x8] sm:$0xf]
      %v296 = vld [vmem:[%s3 + $0xc] sm:$0xf]
      %v297 = vld [vmem:[%s4] sm:$0x1]
      %v299 = vlaneseq
      %v300 = vshrl.u32 %v299, 7
      %v301 = vsub.s32 0, %v300
      %v302 = vrot.slane %v297, %v301
      %v308 = vunpack.c.l.b16 %v293
      %v309 = vunpack.c.l.b16 %v294
      %v310 = vunpack.c.l.b16 %v295
      %v311 = vunpack.c.l.b16 %v296
      %v312 = vpack.c.b16 %v309, %v308
      %v313 = vpack.c.b16 %v311, %v310
      %v317 = vsel %vm260, %v292, 0
      %319 = vmatprep.subr.bf16.mxu0 0
      %320 = vmatpush1.bf16.msra.mxu0 %v312
      %321 = vmatprep.subr.bf16.mxu0 0
      %322 = vmatpush1.bf16.msra.mxu0 %v313
      %323 = vmatprep.subr.bf16.mxu0 0
      %324 = vmatpush1.bf16.msra.mxu0 0
      %325 = vmatprep.subr.bf16.mxu0 0
      %326 = vmatpush1.bf16.msra.mxu0 0
      %327 = vmatprep.subr.bf16.mxu0 0
      %328 = vmatpush1.bf16.msra.mxu0 0
      %329 = vmatprep.subr.bf16.mxu0 0
      %330 = vmatpush1.bf16.msra.mxu0 0
      %331 = vmatprep.subr.bf16.mxu0 0
      %332 = vmatpush1.bf16.msra.mxu0 0
      %333 = vmatprep.subr.bf16.mxu0 0
      %334 = vmatpush1.bf16.msra.mxu0 0
      %335 = vmatprep.subr.bf16.mxu0 0
      %336 = vmatpush1.bf16.msra.mxu0 0
      %337 = vmatprep.subr.bf16.mxu0 0
      %338 = vmatpush1.bf16.msra.mxu0 0
      %339 = vmatprep.subr.bf16.mxu0 0
      %340 = vmatpush1.bf16.msra.mxu0 0
      %341 = vmatprep.subr.bf16.mxu0 0
      %342 = vmatpush1.bf16.msra.mxu0 0
      %343 = vmatprep.subr.bf16.mxu0 0
      %344 = vmatpush1.bf16.msra.mxu0 0
      %345 = vmatprep.subr.bf16.mxu0 0
      %346 = vmatpush1.bf16.msra.mxu0 0
      %347 = vmatprep.subr.bf16.mxu0 0
      %348 = vmatpush1.bf16.msra.mxu0 0
      %349 = vmatprep.subr.bf16.mxu0 0
      %350 = vmatpush1.bf16.msra.mxu0 0
      %351 = vmatprep.mubr.bf16.mxu0 0
      %352 = vmatmul.mubr.bf16.gmra.mrb[0].mxu0 %v317
      %v353 = vpop.f32.mrb[0].mxu0
      %v354 = vadd.f32 %v302, %v353
      %v355 = vpop.f32.mrb[0].mxu0
      %v356 = vpop.f32.mrb[0].mxu0
      %v357 = vpop.f32.mrb[0].mxu0
      %358 = vdwg.mxu0
      %v359 = vpack.c.bf16 %v354, %v354
      %vm360 = vcmask 257024
      %361 = vst.msk [vmem:[%s257] sm:$0xf] %vm360, %v359
      %p362 = scmp.lt.s32.totalorder %s18, 1
      %s363 = scalar_select %p362, %s18, 1
      %s364 = smul.addr %s363, 8
      %s365 = scalar_lea.vmem %s5, %s364
      %p366 = scmp.lt.s32.totalorder %s18, 1
      %s367 = scalar_select %p366, %s18, 1
      %s368 = smul.addr %s367, 4
      %s369 = scalar_lea.vmem %s6, %s368
      // Predicated region
      $region41: #{decoder_forward.15} parent=39 // pred_check
        %p370 = pneg %p146
      $region42: #{decoder_forward.15} parent=39 // pred_check_branch
        %372 = sbr.rel (%p370) target = $region44
      $region43: #{decoder_forward.15} parent=39 // pred_region
        _
      $region44: #{decoder_forward.15} parent=39 // pred_fallthru
        _
      // Predicated region
      $region45: #{decoder_forward.15} parent=39 // pred_check
        %p373 = pneg %p172
      $region46: #{decoder_forward.15} parent=39 // pred_check_branch
        %375 = sbr.rel (%p373) target = $region48
      $region47: #{decoder_forward.15} parent=39 // pred_region
        _
      $region48: #{decoder_forward.15} parent=39 // pred_fallthru
        _
    $region40: #{decoder_forward.15} parent=5 // pred_fallthru
      _
    %p376 = scmp.le.s32.totalorder 2, %s13
    // Predicated region
    $region49: #{decoder_forward.15} parent=5 // pred_check
      %p377 = pneg %p376
    $region50: #{decoder_forward.15} parent=5 // pred_check_branch
      %379 = sbr.rel (%p377) target = $region52
    $region51: #{decoder_forward.15} parent=5 // pred_region
      %s380 = ssub.s32 %s13, 2
      // Predicated region
      $region53: #{decoder_forward.15} parent=51 // pred_check
        %p381 = pneg %p152
      $region54: #{decoder_forward.15} parent=51 // pred_check_branch
        %383 = sbr.rel (%p381) target = $region56
      $region55: #{decoder_forward.15} parent=51 // pred_region
        %p384 = scmp.lt.s32.totalorder %s19, 1
        %s385 = scalar_select %p384, %s19, 1
        %s386 = smul.addr %s385, 8
        %s387 = scalar_lea.vmem %s5, %s386
      $region56: #{decoder_forward.15} parent=51 // pred_fallthru
        _
      // Predicated region
      $region57: #{decoder_forward.15} parent=51 // pred_check
        %p388 = pneg %p178
      $region58: #{decoder_forward.15} parent=51 // pred_check_branch
        %390 = sbr.rel (%p388) target = $region60
      $region59: #{decoder_forward.15} parent=51 // pred_region
        %p391 = scmp.lt.s32.totalorder %s19, 1
        %s392 = scalar_select %p391, %s19, 1
        %s393 = smul.addr %s392, 4
        %s394 = scalar_lea.vmem %s6, %s393
      $region60: #{decoder_forward.15} parent=51 // pred_fallthru
        _
    $region52: #{decoder_forward.15} parent=5 // pred_fallthru
      _
  $region6: #{decoder_forward.15} parent=0 // loop_footer
    %s17 = sadd.s32 1, %s13
  $region7: #{decoder_forward.15} parent=0 // loop_footer_branch
    %12 = sbr.rel target = $region3
  $region8: #{decoder_forward.15} parent=0 // loop_exit
    _

// kernel: decoder_forward.13
$region0: #{decoder_forward.13}
  #allocation0 [shape = 'u32[]', space=smem, size = 0x4, offset = 0x4, fixed_abs, tag = 'smem constant byte address 0x4 - core index']
  #allocation1 [shape = 'u32[144,128]{1,0:T(1,128)}', space=vmem, size = 0x12000, scoped, tag = 'internal scratch']
  %s0 = inlined_call_operand.vmem [shape: f32[16,32], index: 0, kind: input, shape index: {}]
  %s1 = inlined_call_operand.vmem [shape: f32[1,32], index: 1, kind: input, shape index: {}]
  %s2 = inlined_call_operand.vmem [shape: f32[1,32], index: 2, kind: input, shape index: {}]
  %s3 = inlined_call_operand.vmem [shape: bf16[32,32], index: 3, kind: input, shape index: {}]
  %s4 = inlined_call_operand.vmem [shape: f32[1,32], index: 4, kind: input, shape index: {}]
  %s5 = inlined_call_operand.vmem [shape: bf16[32,64], index: 5, kind: input, shape index: {}]
  %s6 = inlined_call_operand.vmem [shape: f32[1,64], index: 6, kind: input, shape index: {}]
  %s7 = inlined_call_operand.vmem [shape: f32[16,32], index: 7, kind: output, shape index: {0}]
  %s8 = inlined_call_operand.vmem [shape: bf16[16,32], index: 8, kind: output, shape index: {1}]
  %s9 = inlined_call_operand.vmem [shape: bf16[16,64], index: 9, kind: output, shape index: {2}]
  %10 = xla_tuple %s7, %s8, %s9
  %s11 = sld [smem:[#allocation0]]
  $region77: #{decoder_forward.13} parent=0
    _
  %s13 = ssub.s32 1, %s11
  %s14 = scalar_select 0, %s13, %s11
  loop: start=0, step=1, limit=4
  $region2: #{decoder_forward.13} parent=0 // loop_pre_header
    _
  $region3: #{decoder_forward.13} parent=0 // loop_header
    %s16 = sphi 0, %s20
    %p17 = scmp.ge.s32.totalorder %s16, 4
    %s26 = sphi 0, %s28
    %s29 = sphi 0, %s26
    %s30 = sphi 0, %s29
    %s46 = sphi 0, %s30
    %s50 = sphi 0, %s50
    %s52 = sphi 0, %s50
    %s53 = sphi 0, %s52
    %s67 = sphi 0, %s53
    %s71 = sphi 0, %s71
    %s73 = sphi 0, %s71
    %s74 = sphi 0, %s73
    %s88 = sphi 0, %s74
    %s92 = sphi 0, %s92
    %s94 = sphi 0, %s92
    %s95 = sphi 0, %s94
    %s109 = sphi 0, %s95
    %s113 = sphi 0, %s113
    %s115 = sphi 0, %s113
    %s116 = sphi 0, %s115
    %s130 = sphi 0, %s116
    %s134 = sphi 0, %s134
    %s136 = sphi 0, %s134
    %s137 = sphi 0, %s136
    %s151 = sphi 0, %s137
    %s155 = sphi 0, %s155
    %s157 = sphi 0, %s155
    %s158 = sphi 0, %s157
    %s172 = sphi 0, %s158
    %s178 = sphi 0, %s180
    %s181 = sphi 0, %s178
    %s182 = sphi 0, %s181
    %s198 = sphi 0, %s182
    %s204 = sphi 0, %s206
    %s207 = sphi 0, %s204
    %s208 = sphi 0, %s207
    %s224 = sphi 0, %s208
    %s230 = sphi 0, %s232
    %s233 = sphi 0, %s230
    %s234 = sphi 0, %s233
    %s250 = sphi 0, %s234
  $region4: #{decoder_forward.13} parent=0 // loop_header_branch
    %19 = sbr.rel (%p17) target = $region8
  $region5: #{decoder_forward.13} parent=0 // loop_body
    %s21 = ssub.s32 %s16, 1
    %s22 = ssub.s32 %s16, 2
    %s23 = sadd.s32 %s16, 1
    %s24 = ssub.s32 %s16, %s23
    %p25 = scmp.eq.s32.totalorder %s24, 0
    %s27 = sadd.s32 %s26, 1
    %s28 = scalar_select %p25, %s26, %s27
    %p31 = pneg %p25
    %p32 = scmp.eq.s32.totalorder %s16, 1
    %p33 = por %p31, %p32
    %p34 = scmp.ne.s32.totalorder %s26, %s29
    %p35 = scmp.eq.s32.totalorder %s16, 0
    %p36 = por %p34, %p35
    %p37 = scmp.ne.s32.totalorder %s26, %s29
    %p38 = scmp.eq.s32.totalorder %s21, 1
    %p39 = por %p37, %p38
    %p40 = scmp.ne.s32.totalorder %s29, %s30
    %p41 = scmp.eq.s32.totalorder %s21, 0
    %p42 = por %p40, %p41
    %p43 = scmp.ne.s32.totalorder %s29, %s30
    %p44 = scmp.eq.s32.totalorder %s22, 1
    %p45 = por %p43, %p44
    %p47 = scmp.ne.s32.totalorder %s30, %s46
    %p48 = scmp.eq.s32.totalorder %s22, 0
    %p49 = por %p47, %p48
    %s51 = sadd.s32 %s50, 1
    %p54 = scmp.eq.s32.totalorder %s16, 1
    %p55 = scmp.ne.s32.totalorder %s50, %s52
    %p56 = scmp.eq.s32.totalorder %s16, 0
    %p57 = por %p55, %p56
    %p58 = scmp.ne.s32.totalorder %s50, %s52
    %p59 = scmp.eq.s32.totalorder %s21, 1
    %p60 = por %p58, %p59
    %p61 = scmp.ne.s32.totalorder %s52, %s53
    %p62 = scmp.eq.s32.totalorder %s21, 0
    %p63 = por %p61, %p62
    %p64 = scmp.ne.s32.totalorder %s52, %s53
    %p65 = scmp.eq.s32.totalorder %s22, 1
    %p66 = por %p64, %p65
    %p68 = scmp.ne.s32.totalorder %s53, %s67
    %p69 = scmp.eq.s32.totalorder %s22, 0
    %p70 = por %p68, %p69
    %s72 = sadd.s32 %s71, 1
    %p75 = scmp.eq.s32.totalorder %s16, 1
    %p76 = scmp.ne.s32.totalorder %s71, %s73
    %p77 = scmp.eq.s32.totalorder %s16, 0
    %p78 = por %p76, %p77
    %p79 = scmp.ne.s32.totalorder %s71, %s73
    %p80 = scmp.eq.s32.totalorder %s21, 1
    %p81 = por %p79, %p80
    %p82 = scmp.ne.s32.totalorder %s73, %s74
    %p83 = scmp.eq.s32.totalorder %s21, 0
    %p84 = por %p82, %p83
    %p85 = scmp.ne.s32.totalorder %s73, %s74
    %p86 = scmp.eq.s32.totalorder %s22, 1
    %p87 = por %p85, %p86
    %p89 = scmp.ne.s32.totalorder %s74, %s88
    %p90 = scmp.eq.s32.totalorder %s22, 0
    %p91 = por %p89, %p90
    %s93 = sadd.s32 %s92, 1
    %p96 = scmp.eq.s32.totalorder %s16, 1
    %p97 = scmp.ne.s32.totalorder %s92, %s94
    %p98 = scmp.eq.s32.totalorder %s16, 0
    %p99 = por %p97, %p98
    %p100 = scmp.ne.s32.totalorder %s92, %s94
    %p101 = scmp.eq.s32.totalorder %s21, 1
    %p102 = por %p100, %p101
    %p103 = scmp.ne.s32.totalorder %s94, %s95
    %p104 = scmp.eq.s32.totalorder %s21, 0
    %p105 = por %p103, %p104
    %p106 = scmp.ne.s32.totalorder %s94, %s95
    %p107 = scmp.eq.s32.totalorder %s22, 1
    %p108 = por %p106, %p107
    %p110 = scmp.ne.s32.totalorder %s95, %s109
    %p111 = scmp.eq.s32.totalorder %s22, 0
    %p112 = por %p110, %p111
    %s114 = sadd.s32 %s113, 1
    %p117 = scmp.eq.s32.totalorder %s16, 1
    %p118 = scmp.ne.s32.totalorder %s113, %s115
    %p119 = scmp.eq.s32.totalorder %s16, 0
    %p120 = por %p118, %p119
    %p121 = scmp.ne.s32.totalorder %s113, %s115
    %p122 = scmp.eq.s32.totalorder %s21, 1
    %p123 = por %p121, %p122
    %p124 = scmp.ne.s32.totalorder %s115, %s116
    %p125 = scmp.eq.s32.totalorder %s21, 0
    %p126 = por %p124, %p125
    %p127 = scmp.ne.s32.totalorder %s115, %s116
    %p128 = scmp.eq.s32.totalorder %s22, 1
    %p129 = por %p127, %p128
    %p131 = scmp.ne.s32.totalorder %s116, %s130
    %p132 = scmp.eq.s32.totalorder %s22, 0
    %p133 = por %p131, %p132
    %s135 = sadd.s32 %s134, 1
    %p138 = scmp.eq.s32.totalorder %s16, 1
    %p139 = scmp.ne.s32.totalorder %s134, %s136
    %p140 = scmp.eq.s32.totalorder %s16, 0
    %p141 = por %p139, %p140
    %p142 = scmp.ne.s32.totalorder %s134, %s136
    %p143 = scmp.eq.s32.totalorder %s21, 1
    %p144 = por %p142, %p143
    %p145 = scmp.ne.s32.totalorder %s136, %s137
    %p146 = scmp.eq.s32.totalorder %s21, 0
    %p147 = por %p145, %p146
    %p148 = scmp.ne.s32.totalorder %s136, %s137
    %p149 = scmp.eq.s32.totalorder %s22, 1
    %p150 = por %p148, %p149
    %p152 = scmp.ne.s32.totalorder %s137, %s151
    %p153 = scmp.eq.s32.totalorder %s22, 0
    %p154 = por %p152, %p153
    %s156 = sadd.s32 %s155, 1
    %p159 = scmp.eq.s32.totalorder %s16, 1
    %p160 = scmp.ne.s32.totalorder %s155, %s157
    %p161 = scmp.eq.s32.totalorder %s16, 0
    %p162 = por %p160, %p161
    %p163 = scmp.ne.s32.totalorder %s155, %s157
    %p164 = scmp.eq.s32.totalorder %s21, 1
    %p165 = por %p163, %p164
    %p166 = scmp.ne.s32.totalorder %s157, %s158
    %p167 = scmp.eq.s32.totalorder %s21, 0
    %p168 = por %p166, %p167
    %p169 = scmp.ne.s32.totalorder %s157, %s158
    %p170 = scmp.eq.s32.totalorder %s22, 1
    %p171 = por %p169, %p170
    %p173 = scmp.ne.s32.totalorder %s158, %s172
    %p174 = scmp.eq.s32.totalorder %s22, 0
    %p175 = por %p173, %p174
    %s176 = ssub.s32 %s16, %s23
    %p177 = scmp.eq.s32.totalorder %s176, 0
    %s179 = sadd.s32 %s178, 1
    %s180 = scalar_select %p177, %s178, %s179
    %p183 = pneg %p177
    %p184 = scmp.eq.s32.totalorder %s16, 1
    %p185 = por %p183, %p184
    %p186 = scmp.ne.s32.totalorder %s178, %s181
    %p187 = scmp.eq.s32.totalorder %s16, 0
    %p188 = por %p186, %p187
    %p189 = scmp.ne.s32.totalorder %s178, %s181
    %p190 = scmp.eq.s32.totalorder %s21, 1
    %p191 = por %p189, %p190
    %p192 = scmp.ne.s32.totalorder %s181, %s182
    %p193 = scmp.eq.s32.totalorder %s21, 0
    %p194 = por %p192, %p193
    %p195 = scmp.ne.s32.totalorder %s181, %s182
    %p196 = scmp.eq.s32.totalorder %s22, 1
    %p197 = por %p195, %p196
    %p199 = scmp.ne.s32.totalorder %s182, %s198
    %p200 = scmp.eq.s32.totalorder %s22, 0
    %p201 = por %p199, %p200
    %s202 = ssub.s32 %s16, %s23
    %p203 = scmp.eq.s32.totalorder %s202, 0
    %s205 = sadd.s32 %s204, 1
    %s206 = scalar_select %p203, %s204, %s205
    %p209 = pneg %p203
    %p210 = scmp.eq.s32.totalorder %s16, 1
    %p211 = por %p209, %p210
    %p212 = scmp.ne.s32.totalorder %s204, %s207
    %p213 = scmp.eq.s32.totalorder %s16, 0
    %p214 = por %p212, %p213
    %p215 = scmp.ne.s32.totalorder %s204, %s207
    %p216 = scmp.eq.s32.totalorder %s21, 1
    %p217 = por %p215, %p216
    %p218 = scmp.ne.s32.totalorder %s207, %s208
    %p219 = scmp.eq.s32.totalorder %s21, 0
    %p220 = por %p218, %p219
    %p221 = scmp.ne.s32.totalorder %s207, %s208
    %p222 = scmp.eq.s32.totalorder %s22, 1
    %p223 = por %p221, %p222
    %p225 = scmp.ne.s32.totalorder %s208, %s224
    %p226 = scmp.eq.s32.totalorder %s22, 0
    %p227 = por %p225, %p226
    %s228 = ssub.s32 %s16, %s23
    %p229 = scmp.eq.s32.totalorder %s228, 0
    %s231 = sadd.s32 %s230, 1
    %s232 = scalar_select %p229, %s230, %s231
    %p235 = pneg %p229
    %p236 = scmp.eq.s32.totalorder %s16, 1
    %p237 = por %p235, %p236
    %p238 = scmp.ne.s32.totalorder %s230, %s233
    %p239 = scmp.eq.s32.totalorder %s16, 0
    %p240 = por %p238, %p239
    %p241 = scmp.ne.s32.totalorder %s230, %s233
    %p242 = scmp.eq.s32.totalorder %s21, 1
    %p243 = por %p241, %p242
    %p244 = scmp.ne.s32.totalorder %s233, %s234
    %p245 = scmp.eq.s32.totalorder %s21, 0
    %p246 = por %p244, %p245
    %p247 = scmp.ne.s32.totalorder %s233, %s234
    %p248 = scmp.eq.s32.totalorder %s22, 1
    %p249 = por %p247, %p248
    %p251 = scmp.ne.s32.totalorder %s234, %s250
    %p252 = scmp.eq.s32.totalorder %s22, 0
    %p253 = por %p251, %p252
    %p254 = scmp.le.s32.totalorder 1, %s16
    %p255 = scmp.lt.s32.totalorder %s16, 3
    %p256 = pnand %p254, %p255
    %p257 = pneg %p256
    // Predicated region
    $region9: #{decoder_forward.13} parent=5 // pred_check
      _
    $region10: #{decoder_forward.13} parent=5 // pred_check_branch
      %259 = sbr.rel (%p256) target = $region12
    $region11: #{decoder_forward.13} parent=5 // pred_region
      %s260 = ssub.s32 %s16, 1
      // Predicated region
      $region13: #{decoder_forward.13} parent=11 // pred_check
        %p261 = pneg %p63
      $region14: #{decoder_forward.13} parent=11 // pred_check_branch
        %263 = sbr.rel (%p261) target = $region16
      $region15: #{decoder_forward.13} parent=11 // pred_region
        _
      $region16: #{decoder_forward.13} parent=11 // pred_fallthru
        _
      // Predicated region
      $region17: #{decoder_forward.13} parent=11 // pred_check
        %p264 = pneg %p84
      $region18: #{decoder_forward.13} parent=11 // pred_check_branch
        %266 = sbr.rel (%p264) target = $region20
      $region19: #{decoder_forward.13} parent=11 // pred_region
        _
      $region20: #{decoder_forward.13} parent=11 // pred_fallthru
        _
      // Predicated region
      $region21: #{decoder_forward.13} parent=11 // pred_check
        %p267 = pneg %p105
      $region22: #{decoder_forward.13} parent=11 // pred_check_branch
        %269 = sbr.rel (%p267) target = $region24
      $region23: #{decoder_forward.13} parent=11 // pred_region
        _
      $region24: #{decoder_forward.13} parent=11 // pred_fallthru
        _
      // Predicated region
      $region25: #{decoder_forward.13} parent=11 // pred_check
        %p270 = pneg %p126
      $region26: #{decoder_forward.13} parent=11 // pred_check_branch
        %272 = sbr.rel (%p270) target = $region28
      $region27: #{decoder_forward.13} parent=11 // pred_region
        _
      $region28: #{decoder_forward.13} parent=11 // pred_fallthru
        _
      // Predicated region
      $region29: #{decoder_forward.13} parent=11 // pred_check
        %p273 = pneg %p147
      $region30: #{decoder_forward.13} parent=11 // pred_check_branch
        %275 = sbr.rel (%p273) target = $region32
      $region31: #{decoder_forward.13} parent=11 // pred_region
        _
      $region32: #{decoder_forward.13} parent=11 // pred_fallthru
        _
      // Predicated region
      $region33: #{decoder_forward.13} parent=11 // pred_check
        %p276 = pneg %p168
      $region34: #{decoder_forward.13} parent=11 // pred_check_branch
        %278 = sbr.rel (%p276) target = $region36
      $region35: #{decoder_forward.13} parent=11 // pred_region
        _
      $region36: #{decoder_forward.13} parent=11 // pred_fallthru
        _
    $region12: #{decoder_forward.13} parent=5 // pred_fallthru
      _
    %p279 = scmp.lt.s32.totalorder %s16, 2
    // Predicated region
    $region37: #{decoder_forward.13} parent=5 // pred_check
      %p280 = pneg %p279
    $region38: #{decoder_forward.13} parent=5 // pred_check_branch
      %282 = sbr.rel (%p280) target = $region40
    $region39: #{decoder_forward.13} parent=5 // pred_region
      // Predicated region
      $region41: #{decoder_forward.13} parent=39 // pred_check
        %p283 = pneg %p36
      $region42: #{decoder_forward.13} parent=39 // pred_check_branch
        %285 = sbr.rel (%p283) target = $region44
      $region43: #{decoder_forward.13} parent=39 // pred_region
        %p286 = scmp.lt.s32.totalorder %s16, 1
        %s287 = scalar_select %p286, %s16, 1
        %s288 = smul.addr %s287, 8
        %s289 = scalar_lea.vmem %s0, %s288
      $region44: #{decoder_forward.13} parent=39 // pred_fallthru
        _
    $region40: #{decoder_forward.13} parent=5 // pred_fallthru
      _
    %p290 = scmp.le.s32.totalorder 1, %s16
    %p291 = scmp.lt.s32.totalorder %s16, 3
    %p292 = pnand %p290, %p291
    %p293 = pneg %p292
    // Predicated region
    $region45: #{decoder_forward.13} parent=5 // pred_check
      _
    $region46: #{decoder_forward.13} parent=5 // pred_check_branch
      %295 = sbr.rel (%p292) target = $region48
    $region47: #{decoder_forward.13} parent=5 // pred_region
      %s296 = ssub.s32 %s16, 1
      %p297 = scmp.lt.s32.totalorder %s21, 1
      %s298 = scalar_select %p297, %s21, 1
      %s299 = smul.addr %s298, 8
      %s300 = scalar_lea.vmem %s0, %s299
      %p301 = pneg %p42
      %p302 = pneg %p39
      %p303 = pneg %p63
      %p304 = pneg %p60
      %p305 = pneg %p84
      %p306 = pneg %p81
      %p307 = pneg %p105
      %p308 = pneg %p102
      %p309 = pneg %p126
      %p310 = pneg %p123
      %p311 = pneg %p147
      %p312 = pneg %p144
      %p313 = pneg %p168
      %p314 = pneg %p165
      %p315 = pneg %p194
      %p316 = pneg %p191
      %p317 = scmp.lt.s32.totalorder %s21, 1
      %s318 = scalar_select %p317, %s21, 1
      %s319 = smul.addr %s318, 8
      %s320 = scalar_lea.vmem %s7, %s319
      %p321 = pneg %p220
      %p322 = pneg %p217
      %p323 = scmp.lt.s32.totalorder %s21, 1
      %s324 = scalar_select %p323, %s21, 1
      %s325 = smul.addr %s324, 4
      %s326 = scalar_lea.vmem %s8, %s325
      %p327 = pneg %p246
      %p328 = pneg %p243
      %p329 = scmp.lt.s32.totalorder %s21, 1
      %s330 = scalar_select %p329, %s21, 1
      %s331 = smul.addr %s330, 4
      %s332 = scalar_lea.vmem %s9, %s331
      %p333 = scmp.lt.s32.totalorder %s21, 1
      %s334 = scalar_select %p333, %s21, 1
      %s335 = smul.addr %s334, 8
      %s336 = scalar_lea.vmem %s0, %s335
      %p337 = scmp.lt.s32.totalorder %s21, 1
      %s338 = scalar_select %p337, %s21, 1
      %s339 = smul.addr %s338, 8
      %s340 = scalar_lea.vmem %s7, %s339
      %p341 = scmp.lt.s32.totalorder %s21, 1
      %s342 = scalar_select %p341, %s21, 1
      %s343 = smul.addr %s342, 4
      %s344 = scalar_lea.vmem %s8, %s343
      %p345 = scmp.lt.s32.totalorder %s21, 1
      %s346 = scalar_select %p345, %s21, 1
      %s347 = smul.addr %s346, 4
      %s348 = scalar_lea.vmem %s9, %s347
      %v350 = vld [vmem:[%s336] sm:$0xff]
      %vm351 = vcmask 261120
      %v352 = vsel %vm351, %v350, 0.0
      %353 = vadd.xlane.f32.xlu0 %v352
      %v354 = vpop.xlane.xlu0 %353
      %v355 = vrcp.pop 32.0
      %v356 = vmul.f32 %v354, %v355
      %v357 = vsub.f32 %v350, %v356
      %v358 = vmul.f32 %v357, %v357
      %v359 = vsel %vm351, %v358, 0.0
      %360 = vadd.xlane.f32.xlu0 %v359
      %v361 = vpop.xlane.xlu0 %360
      %v362 = vmul.f32 %v361, %v355
      %v363 = vadd.f32 %v362, 1e-05
      %v364 = vrsqrt.pop %v363
      %v365 = vmul.f32 %v357, %v364
      %v366 = vld [vmem:[%s1] sm:$0x1]
      %v368 = vlaneseq
      %v369 = vshrl.u32 %v368, 7
      %v370 = vsub.s32 0, %v369
      %v371 = vrot.slane %v366, %v370
      %v373 = vmul.f32 %v365, %v371
      %v374 = vld [vmem:[%s2] sm:$0x1]
      %v376 = vlaneseq
      %v377 = vshrl.u32 %v376, 7
      %v378 = vsub.s32 0, %v377
      %v379 = vrot.slane %v374, %v378
      %v381 = vadd.f32 %v373, %v379
      %382 = vst.msk [vmem:[%s340] sm:$0xff] %vm351, %v381
      %v383 = vpack.c.bf16 %v381, %v381
      %v384 = vld [vmem:[%s3] sm:$0xf]
      %v385 = vld [vmem:[%s3 + $0x4] sm:$0xf]
      %v386 = vld [vmem:[%s3 + $0x8] sm:$0xf]
      %v387 = vld [vmem:[%s3 + $0xc] sm:$0xf]
      %v388 = vld [vmem:[%s4] sm:$0x1]
      %v390 = vlaneseq
      %v391 = vshrl.u32 %v390, 7
      %v392 = vsub.s32 0, %v391
      %v393 = vrot.slane %v388, %v392
      %v399 = vunpack.c.l.b16 %v384
      %v400 = vunpack.c.l.b16 %v385
      %v401 = vunpack.c.l.b16 %v386
      %v402 = vunpack.c.l.b16 %v387
      %v403 = vpack.c.b16 %v400, %v399
      %v404 = vpack.c.b16 %v402, %v401
      %v408 = vsel %vm351, %v383, 0
      %410 = vmatprep.subr.bf16.mxu0 0
      %411 = vmatpush1.bf16.msra.mxu0 %v403
      %412 = vmatprep.subr.bf16.mxu0 0
      %413 = vmatpush1.bf16.msra.mxu0 %v404
      %414 = vmatprep.subr.bf16.mxu0 0
      %415 = vmatpush1.bf16.msra.mxu0 0
      %416 = vmatprep.subr.bf16.mxu0 0
      %417 = vmatpush1.bf16.msra.mxu0 0
      %418 = vmatprep.subr.bf16.mxu0 0
      %419 = vmatpush1.bf16.msra.mxu0 0
      %420 = vmatprep.subr.bf16.mxu0 0
      %421 = vmatpush1.bf16.msra.mxu0 0
      %422 = vmatprep.subr.bf16.mxu0 0
      %423 = vmatpush1.bf16.msra.mxu0 0
      %424 = vmatprep.subr.bf16.mxu0 0
      %425 = vmatpush1.bf16.msra.mxu0 0
      %426 = vmatprep.subr.bf16.mxu0 0
      %427 = vmatpush1.bf16.msra.mxu0 0
      %428 = vmatprep.subr.bf16.mxu0 0
      %429 = vmatpush1.bf16.msra.mxu0 0
      %430 = vmatprep.subr.bf16.mxu0 0
      %431 = vmatpush1.bf16.msra.mxu0 0
      %432 = vmatprep.subr.bf16.mxu0 0
      %433 = vmatpush1.bf16.msra.mxu0 0
      %434 = vmatprep.subr.bf16.mxu0 0
      %435 = vmatpush1.bf16.msra.mxu0 0
      %436 = vmatprep.subr.bf16.mxu0 0
      %437 = vmatpush1.bf16.msra.mxu0 0
      %438 = vmatprep.subr.bf16.mxu0 0
      %439 = vmatpush1.bf16.msra.mxu0 0
      %440 = vmatprep.subr.bf16.mxu0 0
      %441 = vmatpush1.bf16.msra.mxu0 0
      %442 = vmatprep.mubr.bf16.mxu0 0
      %443 = vmatmul.mubr.bf16.gmra.mrb[0].mxu0 %v408
      %v444 = vpop.f32.mrb[0].mxu0
      %v445 = vadd.f32 %v393, %v444
      %v446 = vpop.f32.mrb[0].mxu0
      %v447 = vpop.f32.mrb[0].mxu0
      %v448 = vpop.f32.mrb[0].mxu0
      %449 = vdwg.mxu0
      %v450 = vpack.c.bf16 %v445, %v445
      %vm451 = vcmask 257024
      %452 = vst.msk [vmem:[%s344] sm:$0xf] %vm451, %v450
      %v453 = vld [vmem:[%s5] sm:$0xf]
      %v454 = vld [vmem:[%s5 + $0x4] sm:$0xf]
      %v455 = vld [vmem:[%s5 + $0x8] sm:$0xf]
      %v456 = vld [vmem:[%s5 + $0xc] sm:$0xf]
      %v457 = vld [vmem:[%s6] sm:$0x1]
      %v459 = vlaneseq
      %v460 = vshrl.u32 %v459, 7
      %v461 = vsub.s32 0, %v460
      %v462 = vrot.slane %v457, %v461
      %v468 = vunpack.c.l.b16 %v453
      %v469 = vunpack.c.l.b16 %v454
      %v470 = vunpack.c.l.b16 %v455
      %v471 = vunpack.c.l.b16 %v456
      %v472 = vpack.c.b16 %v469, %v468
      %v473 = vpack.c.b16 %v471, %v470
      %476 = vmatprep.subr.bf16.mxu0 0
      %477 = vmatpush1.bf16.msra.mxu0 %v472
      %478 = vmatprep.subr.bf16.mxu0 0
      %479 = vmatpush1.bf16.msra.mxu0 %v473
      %480 = vmatprep.subr.bf16.mxu0 0
      %481 = vmatpush1.bf16.msra.mxu0 0
      %482 = vmatprep.subr.bf16.mxu0 0
      %483 = vmatpush1.bf16.msra.mxu0 0
      %484 = vmatprep.subr.bf16.mxu0 0
      %485 = vmatpush1.bf16.msra.mxu0 0
      %486 = vmatprep.subr.bf16.mxu0 0
      %487 = vmatpush1.bf16.msra.mxu0 0
      %488 = vmatprep.subr.bf16.mxu0 0
      %489 = vmatpush1.bf16.msra.mxu0 0
      %490 = vmatprep.subr.bf16.mxu0 0
      %491 = vmatpush1.bf16.msra.mxu0 0
      %492 = vmatprep.subr.bf16.mxu0 0
      %493 = vmatpush1.bf16.msra.mxu0 0
      %494 = vmatprep.subr.bf16.mxu0 0
      %495 = vmatpush1.bf16.msra.mxu0 0
      %496 = vmatprep.subr.bf16.mxu0 0
      %497 = vmatpush1.bf16.msra.mxu0 0
      %498 = vmatprep.subr.bf16.mxu0 0
      %499 = vmatpush1.bf16.msra.mxu0 0
      %500 = vmatprep.subr.bf16.mxu0 0
      %501 = vmatpush1.bf16.msra.mxu0 0
      %502 = vmatprep.subr.bf16.mxu0 0
      %503 = vmatpush1.bf16.msra.mxu0 0
      %504 = vmatprep.subr.bf16.mxu0 0
      %505 = vmatpush1.bf16.msra.mxu0 0
      %506 = vmatprep.subr.bf16.mxu0 0
      %507 = vmatpush1.bf16.msra.mxu0 0
      %508 = vmatprep.mubr.bf16.mxu0 0
      %509 = vmatmul.mubr.bf16.gmra.mrb[0].mxu0 %v408
      %v510 = vpop.f32.mrb[0].mxu0
      %v511 = vadd.f32 %v462, %v510
      %v512 = vpop.f32.mrb[0].mxu0
      %v513 = vpop.f32.mrb[0].mxu0
      %v514 = vpop.f32.mrb[0].mxu0
      %515 = vdwg.mxu0
      %v516 = vpack.c.bf16 %v511, %v511
      %vm517 = vcmask 519168
      %518 = vst.msk [vmem:[%s348] sm:$0xf] %vm517, %v516
      %p519 = scmp.lt.s32.totalorder %s21, 1
      %s520 = scalar_select %p519, %s21, 1
      %s521 = smul.addr %s520, 8
      %s522 = scalar_lea.vmem %s7, %s521
      %p523 = scmp.lt.s32.totalorder %s21, 1
      %s524 = scalar_select %p523, %s21, 1
      %s525 = smul.addr %s524, 4
      %s526 = scalar_lea.vmem %s8, %s525
      %p527 = scmp.lt.s32.totalorder %s21, 1
      %s528 = scalar_select %p527, %s21, 1
      %s529 = smul.addr %s528, 4
      %s530 = scalar_lea.vmem %s9, %s529
      // Predicated region
      $region49: #{decoder_forward.13} parent=47 // pred_check
        %p531 = pneg %p191
      $region50: #{decoder_forward.13} parent=47 // pred_check_branch
        %533 = sbr.rel (%p531) target = $region52
      $region51: #{decoder_forward.13} parent=47 // pred_region
        _
      $region52: #{decoder_forward.13} parent=47 // pred_fallthru
        _
      // Predicated region
      $region53: #{decoder_forward.13} parent=47 // pred_check
        %p534 = pneg %p217
      $region54: #{decoder_forward.13} parent=47 // pred_check_branch
        %536 = sbr.rel (%p534) target = $region56
      $region55: #{decoder_forward.13} parent=47 // pred_region
        _
      $region56: #{decoder_forward.13} parent=47 // pred_fallthru
        _
      // Predicated region
      $region57: #{decoder_forward.13} parent=47 // pred_check
        %p537 = pneg %p243
      $region58: #{decoder_forward.13} parent=47 // pred_check_branch
        %539 = sbr.rel (%p537) target = $region60
      $region59: #{decoder_forward.13} parent=47 // pred_region
        _
      $region60: #{decoder_forward.13} parent=47 // pred_fallthru
        _
    $region48: #{decoder_forward.13} parent=5 // pred_fallthru
      _
    %p540 = scmp.le.s32.totalorder 2, %s16
    // Predicated region
    $region61: #{decoder_forward.13} parent=5 // pred_check
      %p541 = pneg %p540
    $region62: #{decoder_forward.13} parent=5 // pred_check_branch
      %543 = sbr.rel (%p541) target = $region64
    $region63: #{decoder_forward.13} parent=5 // pred_region
      %s544 = ssub.s32 %s16, 2
      // Predicated region
      $region65: #{decoder_forward.13} parent=63 // pred_check
        %p545 = pneg %p197
      $region66: #{decoder_forward.13} parent=63 // pred_check_branch
        %547 = sbr.rel (%p545) target = $region68
      $region67: #{decoder_forward.13} parent=63 // pred_region
        %p548 = scmp.lt.s32.totalorder %s22, 1
        %s549 = scalar_select %p548, %s22, 1
        %s550 = smul.addr %s549, 8
        %s551 = scalar_lea.vmem %s7, %s550
      $region68: #{decoder_forward.13} parent=63 // pred_fallthru
        _
      // Predicated region
      $region69: #{decoder_forward.13} parent=63 // pred_check
        %p552 = pneg %p223
      $region70: #{decoder_forward.13} parent=63 // pred_check_branch
        %554 = sbr.rel (%p552) target = $region72
      $region71: #{decoder_forward.13} parent=63 // pred_region
        %p555 = scmp.lt.s32.totalorder %s22, 1
        %s556 = scalar_select %p555, %s22, 1
        %s557 = smul.addr %s556, 4
        %s558 = scalar_lea.vmem %s8, %s557
      $region72: #{decoder_forward.13} parent=63 // pred_fallthru
        _
      // Predicated region
      $region73: #{decoder_forward.13} parent=63 // pred_check
        %p559 = pneg %p249
      $region74: #{decoder_forward.13} parent=63 // pred_check_branch
        %561 = sbr.rel (%p559) target = $region76
      $region75: #{decoder_forward.13} parent=63 // pred_region
        %p562 = scmp.lt.s32.totalorder %s22, 1
        %s563 = scalar_select %p562, %s22, 1
        %s564 = smul.addr %s563, 4
        %s565 = scalar_lea.vmem %s9, %s564
      $region76: #{decoder_forward.13} parent=63 // pred_fallthru
        _
    $region64: #{decoder_forward.13} parent=5 // pred_fallthru
      _
  $region6: #{decoder_forward.13} parent=0 // loop_footer
    %s20 = sadd.s32 1, %s16
  $region7: #{decoder_forward.13} parent=0 // loop_footer_branch
    %15 = sbr.rel target = $region3
  $region8: #{decoder_forward.13} parent=0 // loop_exit
    _

// kernel: decoder_forward.25
$region0: #{decoder_forward.25}
  #allocation0 [shape = 'u32[]', space=smem, size = 0x4, offset = 0x4, fixed_abs, tag = 'smem constant byte address 0x4 - core index']
  #allocation1 [shape = 'u32[144,128]{1,0:T(1,128)}', space=vmem, size = 0x12000, scoped, tag = 'internal scratch']
  %s0 = inlined_call_operand.vmem [shape: f32[16,32], index: 0, kind: input, shape index: {}]
  %s1 = inlined_call_operand.vmem [shape: f32[1,32], index: 1, kind: input, shape index: {}]
  %s2 = inlined_call_operand.vmem [shape: f32[1,32], index: 2, kind: input, shape index: {}]
  %s3 = inlined_call_operand.vmem [shape: bf16[32,64], index: 3, kind: input, shape index: {}]
  %s4 = inlined_call_operand.vmem [shape: f32[1,64], index: 4, kind: input, shape index: {}]
  %s5 = inlined_call_operand.hbm [shape: f32[16,64], index: 5, kind: output, shape index: {}]
  %s6 = sld [smem:[#allocation0]]
  $region53: #{decoder_forward.25} parent=0
    _
  %s8 = ssub.s32 1, %s6
  %s9 = scalar_select 0, %s8, %s6
  $region1: #{decoder_forward.25} parent=0
    #allocation2 [shape = 'u8[8192]{0}', space=vmem, size = 0x2000, scoped, tag = 'output window, operand 0']
    #allocation3 [shape = 's32[2]{0}', space=sflag, size = 0x8, scoped, tag = 'scoped memory for decoder_forward.25']
    %10 = vsyncpa [#allocation3], 0
    %s11 = scalar_lea.sflag [#allocation3], 1
    %12 = vsyncpa %s11, 0
    loop: start=0, step=1, limit=4
    $region2: #{decoder_forward.25} parent=1 // loop_pre_header
      _
    $region3: #{decoder_forward.25} parent=1 // loop_header
      %s14 = sphi 0, %s18
      %p15 = scmp.ge.s32.totalorder %s14, 4
      %s21 = sphi 0, %s33
      %s22 = sphi 0, %s29
      %s23 = sphi 0, %s21
      %s24 = sphi 0, %s22
      %s25 = sphi 0, %s23
      %s26 = sphi 0, %s24
      %s36 = sphi 0, %s38
      %s39 = sphi 0, %s36
      %s40 = sphi 0, %s39
      %s56 = sphi 0, %s40
      %s60 = sphi 0, %s60
      %s62 = sphi 0, %s60
      %s63 = sphi 0, %s62
      %s77 = sphi 0, %s63
      %s81 = sphi 0, %s81
      %s83 = sphi 0, %s81
      %s84 = sphi 0, %s83
      %s98 = sphi 0, %s84
      %s104 = sphi 0, %s106
      %s107 = sphi 0, %s104
      %s108 = sphi 0, %s107
      %s124 = sphi 0, %s108
      %s130 = sphi 0, %s132
      %s133 = sphi 0, %s130
      %s134 = sphi 0, %s133
      %s150 = sphi 0, %s134
      %s158 = sphi 0, %s160
      %s161 = sphi 0, %s158
      %s162 = sphi 0, %s161
      %s178 = sphi 0, %s162
    $region4: #{decoder_forward.25} parent=1 // loop_header_branch
      %17 = sbr.rel (%p15) target = $region8
    $region5: #{decoder_forward.25} parent=1 // loop_body
      %s19 = ssub.s32 %s14, 1
      %s20 = ssub.s32 %s14, 2
      %s27 = sadd.s32 1, %s22
      %p28 = scmp.ge.s32.totalorder %s27, 1
      %s29 = scalar_select %p28, 0, %s27
      %s30 = sadd.s32 1, %s21
      %s31 = scalar_select %p28, %s30, %s21
      %p32 = scmp.ge.s32.totalorder %s31, 2
      %s33 = scalar_select %p32, 0, %s31
      %s34 = ssub.s32 %s21, %s33
      %p35 = scmp.eq.s32.totalorder %s34, 0
      %s37 = sadd.s32 %s36, 1
      %s38 = scalar_select %p35, %s36, %s37
      %p41 = pneg %p35
      %p42 = scmp.eq.s32.totalorder %s14, 1
      %p43 = por %p41, %p42
      %p44 = scmp.ne.s32.totalorder %s36, %s39
      %p45 = scmp.eq.s32.totalorder %s14, 0
      %p46 = por %p44, %p45
      %p47 = scmp.ne.s32.totalorder %s36, %s39
      %p48 = scmp.eq.s32.totalorder %s19, 1
      %p49 = por %p47, %p48
      %p50 = scmp.ne.s32.totalorder %s39, %s40
      %p51 = scmp.eq.s32.totalorder %s19, 0
      %p52 = por %p50, %p51
      %p53 = scmp.ne.s32.totalorder %s39, %s40
      %p54 = scmp.eq.s32.totalorder %s20, 1
      %p55 = por %p53, %p54
      %p57 = scmp.ne.s32.totalorder %s40, %s56
      %p58 = scmp.eq.s32.totalorder %s20, 0
      %p59 = por %p57, %p58
      %s61 = sadd.s32 %s60, 1
      %p64 = scmp.eq.s32.totalorder %s14, 1
      %p65 = scmp.ne.s32.totalorder %s60, %s62
      %p66 = scmp.eq.s32.totalorder %s14, 0
      %p67 = por %p65, %p66
      %p68 = scmp.ne.s32.totalorder %s60, %s62
      %p69 = scmp.eq.s32.totalorder %s19, 1
      %p70 = por %p68, %p69
      %p71 = scmp.ne.s32.totalorder %s62, %s63
      %p72 = scmp.eq.s32.totalorder %s19, 0
      %p73 = por %p71, %p72
      %p74 = scmp.ne.s32.totalorder %s62, %s63
      %p75 = scmp.eq.s32.totalorder %s20, 1
      %p76 = por %p74, %p75
      %p78 = scmp.ne.s32.totalorder %s63, %s77
      %p79 = scmp.eq.s32.totalorder %s20, 0
      %p80 = por %p78, %p79
      %s82 = sadd.s32 %s81, 1
      %p85 = scmp.eq.s32.totalorder %s14, 1
      %p86 = scmp.ne.s32.totalorder %s81, %s83
      %p87 = scmp.eq.s32.totalorder %s14, 0
      %p88 = por %p86, %p87
      %p89 = scmp.ne.s32.totalorder %s81, %s83
      %p90 = scmp.eq.s32.totalorder %s19, 1
      %p91 = por %p89, %p90
      %p92 = scmp.ne.s32.totalorder %s83, %s84
      %p93 = scmp.eq.s32.totalorder %s19, 0
      %p94 = por %p92, %p93
      %p95 = scmp.ne.s32.totalorder %s83, %s84
      %p96 = scmp.eq.s32.totalorder %s20, 1
      %p97 = por %p95, %p96
      %p99 = scmp.ne.s32.totalorder %s84, %s98
      %p100 = scmp.eq.s32.totalorder %s20, 0
      %p101 = por %p99, %p100
      %s102 = ssub.s32 %s22, %s29
      %p103 = scmp.eq.s32.totalorder %s102, 0
      %s105 = sadd.s32 %s104, 1
      %s106 = scalar_select %p103, %s104, %s105
      %p109 = pneg %p103
      %p110 = scmp.eq.s32.totalorder %s14, 1
      %p111 = por %p109, %p110
      %p112 = scmp.ne.s32.totalorder %s104, %s107
      %p113 = scmp.eq.s32.totalorder %s14, 0
      %p114 = por %p112, %p113
      %p115 = scmp.ne.s32.totalorder %s104, %s107
      %p116 = scmp.eq.s32.totalorder %s19, 1
      %p117 = por %p115, %p116
      %p118 = scmp.ne.s32.totalorder %s107, %s108
      %p119 = scmp.eq.s32.totalorder %s19, 0
      %p120 = por %p118, %p119
      %p121 = scmp.ne.s32.totalorder %s107, %s108
      %p122 = scmp.eq.s32.totalorder %s20, 1
      %p123 = por %p121, %p122
      %p125 = scmp.ne.s32.totalorder %s108, %s124
      %p126 = scmp.eq.s32.totalorder %s20, 0
      %p127 = por %p125, %p126
      %s128 = ssub.s32 %s22, %s29
      %p129 = scmp.eq.s32.totalorder %s128, 0
      %s131 = sadd.s32 %s130, 1
      %s132 = scalar_select %p129, %s130, %s131
      %p135 = pneg %p129
      %p136 = scmp.eq.s32.totalorder %s14, 1
      %p137 = por %p135, %p136
      %p138 = scmp.ne.s32.totalorder %s130, %s133
      %p139 = scmp.eq.s32.totalorder %s14, 0
      %p140 = por %p138, %p139
      %p141 = scmp.ne.s32.totalorder %s130, %s133
      %p142 = scmp.eq.s32.totalorder %s19, 1
      %p143 = por %p141, %p142
      %p144 = scmp.ne.s32.totalorder %s133, %s134
      %p145 = scmp.eq.s32.totalorder %s19, 0
      %p146 = por %p144, %p145
      %p147 = scmp.ne.s32.totalorder %s133, %s134
      %p148 = scmp.eq.s32.totalorder %s20, 1
      %p149 = por %p147, %p148
      %p151 = scmp.ne.s32.totalorder %s134, %s150
      %p152 = scmp.eq.s32.totalorder %s20, 0
      %p153 = por %p151, %p152
      %s154 = ssub.s32 %s21, %s33
      %s155 = ssub.s32 %s22, %s29
      %s156 = sor.u32 %s154, %s155
      %p157 = scmp.eq.s32.totalorder %s156, 0
      %s159 = sadd.s32 %s158, 1
      %s160 = scalar_select %p157, %s158, %s159
      %p163 = pneg %p157
      %p164 = scmp.eq.s32.totalorder %s14, 1
      %p165 = por %p163, %p164
      %p166 = scmp.ne.s32.totalorder %s158, %s161
      %p167 = scmp.eq.s32.totalorder %s14, 0
      %p168 = por %p166, %p167
      %p169 = scmp.ne.s32.totalorder %s158, %s161
      %p170 = scmp.eq.s32.totalorder %s19, 1
      %p171 = por %p169, %p170
      %p172 = scmp.ne.s32.totalorder %s161, %s162
      %p173 = scmp.eq.s32.totalorder %s19, 0
      %p174 = por %p172, %p173
      %p175 = scmp.ne.s32.totalorder %s161, %s162
      %p176 = scmp.eq.s32.totalorder %s20, 1
      %p177 = por %p175, %p176
      %p179 = scmp.ne.s32.totalorder %s162, %s178
      %p180 = scmp.eq.s32.totalorder %s20, 0
      %p181 = por %p179, %p180
      %p182 = scmp.le.s32.totalorder 1, %s14
      %p183 = scmp.lt.s32.totalorder %s14, 3
      %p184 = pnand %p182, %p183
      %p185 = pneg %p184
      // Predicated region
      $region9: #{decoder_forward.25} parent=5 // pred_check
        _
      $region10: #{decoder_forward.25} parent=5 // pred_check_branch
        %187 = sbr.rel (%p184) target = $region12
      $region11: #{decoder_forward.25} parent=5 // pred_region
        %s188 = ssub.s32 %s14, 1
        // Predicated region
        $region13: #{decoder_forward.25} parent=11 // pred_check
          %p189 = pneg %p73
        $region14: #{decoder_forward.25} parent=11 // pred_check_branch
          %191 = sbr.rel (%p189) target = $region16
        $region15: #{decoder_forward.25} parent=11 // pred_region
          _
        $region16: #{decoder_forward.25} parent=11 // pred_fallthru
          _
        // Predicated region
        $region17: #{decoder_forward.25} parent=11 // pred_check
          %p192 = pneg %p94
        $region18: #{decoder_forward.25} parent=11 // pred_check_branch
          %194 = sbr.rel (%p192) target = $region20
        $region19: #{decoder_forward.25} parent=11 // pred_region
          _
        $region20: #{decoder_forward.25} parent=11 // pred_fallthru
          _
        // Predicated region
        $region21: #{decoder_forward.25} parent=11 // pred_check
          %p195 = pneg %p120
        $region22: #{decoder_forward.25} parent=11 // pred_check_branch
          %197 = sbr.rel (%p195) target = $region24
        $region23: #{decoder_forward.25} parent=11 // pred_region
          %p198 = scmp.lt.s32.totalorder %s24, 0
          %s199 = scalar_select %p198, %s24, 0
          %s200 = smul.addr %s199, 4
          %s201 = scalar_lea.vmem %s3, %s200
        $region24: #{decoder_forward.25} parent=11 // pred_fallthru
          _
        // Predicated region
        $region25: #{decoder_forward.25} parent=11 // pred_check
          %p202 = pneg %p146
        $region26: #{decoder_forward.25} parent=11 // pred_check_branch
          %204 = sbr.rel (%p202) target = $region28
        $region27: #{decoder_forward.25} parent=11 // pred_region
          %p205 = scmp.lt.s32.totalorder %s24, 0
          %s206 = scalar_select %p205, %s24, 0
          %s207 = scalar_lea.vmem %s4, %s206
        $region28: #{decoder_forward.25} parent=11 // pred_fallthru
          _
      $region12: #{decoder_forward.25} parent=5 // pred_fallthru
        _
      %p208 = scmp.lt.s32.totalorder %s14, 2
      // Predicated region
      $region29: #{decoder_forward.25} parent=5 // pred_check
        %p209 = pneg %p208
      $region30: #{decoder_forward.25} parent=5 // pred_check_branch
        %211 = sbr.rel (%p209) target = $region32
      $region31: #{decoder_forward.25} parent=5 // pred_region
        // Predicated region
        $region33: #{decoder_forward.25} parent=31 // pred_check
          %p212 = pneg %p46
        $region34: #{decoder_forward.25} parent=31 // pred_check_branch
          %214 = sbr.rel (%p212) target = $region36
        $region35: #{decoder_forward.25} parent=31 // pred_region
          %p215 = scmp.lt.s32.totalorder %s21, 1
          %s216 = scalar_select %p215, %s21, 1
          %s217 = smul.addr %s216, 8
          %s218 = scalar_lea.vmem %s0, %s217
        $region36: #{decoder_forward.25} parent=31 // pred_fallthru
          _
      $region32: #{decoder_forward.25} parent=5 // pred_fallthru
        _
      %p219 = scmp.le.s32.totalorder 1, %s14
      %p220 = scmp.lt.s32.totalorder %s14, 3
      %p221 = pnand %p219, %p220
      %p222 = pneg %p221
      // Predicated region
      $region37: #{decoder_forward.25} parent=5 // pred_check
        _
      $region38: #{decoder_forward.25} parent=5 // pred_check_branch
        %224 = sbr.rel (%p221) target = $region40
      $region39: #{decoder_forward.25} parent=5 // pred_region
        %s225 = ssub.s32 %s14, 1
        %p226 = scmp.lt.s32.totalorder %s23, 1
        %s227 = scalar_select %p226, %s23, 1
        %s228 = smul.addr %s227, 8
        %s229 = scalar_lea.vmem %s0, %s228
        %p230 = pneg %p52
        %p231 = pneg %p49
        %p232 = pneg %p73
        %p233 = pneg %p70
        %p234 = pneg %p94
        %p235 = pneg %p91
        %p236 = scmp.lt.s32.totalorder %s24, 0
        %s237 = scalar_select %p236, %s24, 0
        %s238 = smul.addr %s237, 4
        %s239 = scalar_lea.vmem %s3, %s238
        %p240 = pneg %p120
        %p241 = pneg %p117
        %p242 = scmp.lt.s32.totalorder %s24, 0
        %s243 = scalar_select %p242, %s24, 0
        %s244 = scalar_lea.vmem %s4, %s243
        %p245 = pneg %p146
        %p246 = pneg %p143
        %p247 = pneg %p174
        %p248 = pneg %p171
        %s249 = sand.u32 %s161, 1
        %s250 = scalar_lea.sflag [#allocation3], %s249
        %s251 = sand.u32 %s161, 1
        %s252 = smul.addr %s251, 8
        %s253 = scalar_lea.vmem [#allocation2], %s252
        %p254 = scmp.lt.s32.totalorder %s23, 1
        %s255 = scalar_select %p254, %s23, 1
        %s256 = smul.addr %s255, 8
        %s257 = scalar_lea.vmem %s0, %s256
        %p258 = scmp.lt.s32.totalorder %s24, 0
        %s259 = scalar_select %p258, %s24, 0
        %s260 = smul.addr %s259, 4
        %s261 = scalar_lea.vmem %s3, %s260
        %p262 = scmp.lt.s32.totalorder %s24, 0
        %s263 = scalar_select %p262, %s24, 0
        %s264 = scalar_lea.vmem %s4, %s263
        %v266 = vld [vmem:[%s257] sm:$0xff]
        %vm267 = vcmask 261120
        %v268 = vsel %vm267, %v266, 0.0
        %269 = vadd.xlane.f32.xlu0 %v268
        %v270 = vpop.xlane.xlu0 %269
        %v271 = vrcp.pop 32.0
        %v272 = vmul.f32 %v270, %v271
        %v273 = vsub.f32 %v266, %v272
        %v274 = vmul.f32 %v273, %v273
        %v275 = vsel %vm267, %v274, 0.0
        %276 = vadd.xlane.f32.xlu0 %v275
        %v277 = vpop.xlane.xlu0 %276
        %v278 = vmul.f32 %v277, %v271
        %v279 = vadd.f32 %v278, 1e-05
        %v280 = vrsqrt.pop %v279
        %v281 = vmul.f32 %v273, %v280
        %v282 = vld [vmem:[%s1] sm:$0x1]
        %v284 = vlaneseq
        %v285 = vshrl.u32 %v284, 7
        %v286 = vsub.s32 0, %v285
        %v287 = vrot.slane %v282, %v286
        %v289 = vmul.f32 %v281, %v287
        %v290 = vld [vmem:[%s2] sm:$0x1]
        %v292 = vlaneseq
        %v293 = vshrl.u32 %v292, 7
        %v294 = vsub.s32 0, %v293
        %v295 = vrot.slane %v290, %v294
        %v297 = vadd.f32 %v289, %v295
        %v298 = vpack.c.bf16 %v297, %v297
        %v299 = vld [vmem:[%s261] sm:$0xf]
        %v300 = vld [vmem:[%s261 + $0x4] sm:$0xf]
        %v301 = vld [vmem:[%s261 + $0x8] sm:$0xf]
        %v302 = vld [vmem:[%s261 + $0xc] sm:$0xf]
        %v303 = vld [vmem:[%s264] sm:$0x1]
        %v305 = vlaneseq
        %v306 = vshrl.u32 %v305, 7
        %v307 = vsub.s32 0, %v306
        %v308 = vrot.slane %v303, %v307
        %v314 = vunpack.c.l.b16 %v299
        %v315 = vunpack.c.l.b16 %v300
        %v316 = vunpack.c.l.b16 %v301
        %v317 = vunpack.c.l.b16 %v302
        %v318 = vpack.c.b16 %v315, %v314
        %v319 = vpack.c.b16 %v317, %v316
        %v323 = vsel %vm267, %v298, 0
        %325 = vmatprep.subr.bf16.mxu0 0
        %326 = vmatpush1.bf16.msra.mxu0 %v318
        %327 = vmatprep.subr.bf16.mxu0 0
        %328 = vmatpush1.bf16.msra.mxu0 %v319
        %329 = vmatprep.subr.bf16.mxu0 0
        %330 = vmatpush1.bf16.msra.mxu0 0
        %331 = vmatprep.subr.bf16.mxu0 0
        %332 = vmatpush1.bf16.msra.mxu0 0
        %333 = vmatprep.subr.bf16.mxu0 0
        %334 = vmatpush1.bf16.msra.mxu0 0
        %335 = vmatprep.subr.bf16.mxu0 0
        %336 = vmatpush1.bf16.msra.mxu0 0
        %337 = vmatprep.subr.bf16.mxu0 0
        %338 = vmatpush1.bf16.msra.mxu0 0
        %339 = vmatprep.subr.bf16.mxu0 0
        %340 = vmatpush1.bf16.msra.mxu0 0
        %341 = vmatprep.subr.bf16.mxu0 0
        %342 = vmatpush1.bf16.msra.mxu0 0
        %343 = vmatprep.subr.bf16.mxu0 0
        %344 = vmatpush1.bf16.msra.mxu0 0
        %345 = vmatprep.subr.bf16.mxu0 0
        %346 = vmatpush1.bf16.msra.mxu0 0
        %347 = vmatprep.subr.bf16.mxu0 0
        %348 = vmatpush1.bf16.msra.mxu0 0
        %349 = vmatprep.subr.bf16.mxu0 0
        %350 = vmatpush1.bf16.msra.mxu0 0
        %351 = vmatprep.subr.bf16.mxu0 0
        %352 = vmatpush1.bf16.msra.mxu0 0
        %353 = vmatprep.subr.bf16.mxu0 0
        %354 = vmatpush1.bf16.msra.mxu0 0
        %355 = vmatprep.subr.bf16.mxu0 0
        %356 = vmatpush1.bf16.msra.mxu0 0
        %357 = vmatprep.mubr.bf16.mxu0 0
        %358 = vmatmul.mubr.bf16.gmra.mrb[0].mxu0 %v323
        %v359 = vpop.f32.mrb[0].mxu0
        %v360 = vadd.f32 %v308, %v359
        %v361 = vpop.f32.mrb[0].mxu0
        %v362 = vpop.f32.mrb[0].mxu0
        %v363 = vpop.f32.mrb[0].mxu0
        %364 = vdwg.mxu0
        %vm365 = vcmask 523264
        %366 = vst.msk [vmem:[%s253] sm:$0xff] %vm365, %v360
        %s367 = sand.u32 %s161, 1
        %s368 = scalar_lea.sflag [#allocation3], %s367
        %s369 = sand.u32 %s161, 1
        %s370 = smul.addr %s369, 8
        %s371 = scalar_lea.vmem [#allocation2], %s370
        // Predicated region
        $region41: #{decoder_forward.25} parent=39 // pred_check
          %p372 = pneg %p171
        $region42: #{decoder_forward.25} parent=39 // pred_check_branch
          %374 = sbr.rel (%p372) target = $region44
        $region43: #{decoder_forward.25} parent=39 // pred_region
          %s376 = ssub.s32 128, 128
          %377 = vsyncadd %s368, %s376
          %s378 = sadd.s32 %s24, %s23
          %s379 = smul.addr %s378, 128
          %s380 = scalar_lea.hbm %s5, %s379
          %s382 = sshll.u32 %s371, 4
          %s383 = int_to_ptr.vmem [resolvable:$true] %s382
          %385 = dma.vmem_to_hbm [thread:$0]  %s383, 128, %s380, %s368
        $region44: #{decoder_forward.25} parent=39 // pred_fallthru
          _
      $region40: #{decoder_forward.25} parent=5 // pred_fallthru
        _
      %p386 = scmp.le.s32.totalorder 2, %s14
      // Predicated region
      $region45: #{decoder_forward.25} parent=5 // pred_check
        %p387 = pneg %p386
      $region46: #{decoder_forward.25} parent=5 // pred_check_branch
        %389 = sbr.rel (%p387) target = $region48
      $region47: #{decoder_forward.25} parent=5 // pred_region
        %s390 = ssub.s32 %s14, 2
        // Predicated region
        $region49: #{decoder_forward.25} parent=47 // pred_check
          %p391 = pneg %p177
        $region50: #{decoder_forward.25} parent=47 // pred_check_branch
          %393 = sbr.rel (%p391) target = $region52
        $region51: #{decoder_forward.25} parent=47 // pred_region
          %s394 = sand.u32 %s162, 1
          %s395 = scalar_lea.sflag [#allocation3], %s394
          %s396 = sand.u32 %s162, 1
          %s397 = smul.addr %s396, 8
          %s398 = scalar_lea.vmem [#allocation2], %s397
          %399 = dma.done %s395, 128
        $region52: #{decoder_forward.25} parent=47 // pred_fallthru
          _
      $region48: #{decoder_forward.25} parent=5 // pred_fallthru
        _
    $region6: #{decoder_forward.25} parent=1 // loop_footer
      %s18 = sadd.s32 1, %s14
    $region7: #{decoder_forward.25} parent=1 // loop_footer_branch
      %13 = sbr.rel target = $region3
    $region8: #{decoder_forward.25} parent=1 // loop_exit
      _
    %400 = vsyncpa [#allocation3], 1
    %s401 = scalar_lea.sflag [#allocation3], 1
    %402 = vsyncpa %s401, 1

// kernel: decoder_forward.18
$region0: #{decoder_forward.18}
  #allocation0 [shape = 'u32[]', space=smem, size = 0x4, offset = 0x4, fixed_abs, tag = 'smem constant byte address 0x4 - core index']
  #allocation1 [shape = 'u32[144,128]{1,0:T(1,128)}', space=vmem, size = 0x12000, scoped, tag = 'internal scratch']
  #allocation2 [shape = 'f32[8,32]{1,0:T(8,128)}', space=vmem, size = 0x1000, scoped, tag = 'scratch operand']
  #allocation3 [shape = 'f32[8,32]{1,0:T(8,128)}', space=vmem, size = 0x1000, scoped, tag = 'scratch operand']
  %s0 = inlined_call_operand.vmem [shape: f32[16,32], index: 0, kind: input, shape index: {}]
  %s1 = inlined_call_operand.vmem [shape: f32[1,32], index: 1, kind: input, shape index: {}]
  %s2 = inlined_call_operand.vmem [shape: f32[1,32], index: 2, kind: input, shape index: {}]
  %s3 = inlined_call_operand.vmem [shape: bf16[32,64], index: 3, kind: input, shape index: {}]
  %s4 = inlined_call_operand.vmem [shape: f32[1,64], index: 4, kind: input, shape index: {}]
  %s5 = inlined_call_operand.vmem [shape: bf16[64,32], index: 5, kind: input, shape index: {}]
  %s6 = inlined_call_operand.vmem [shape: f32[1,32], index: 6, kind: input, shape index: {}]
  %s7 = inlined_call_operand.vmem [shape: f32[16,32], index: 7, kind: output, shape index: {}]
  %s8 = sld [smem:[#allocation0]]
  $region69: #{decoder_forward.18} parent=0
    _
  %s10 = ssub.s32 1, %s8
  %s11 = scalar_select 0, %s10, %s8
  loop: start=0, step=1, limit=4
  $region2: #{decoder_forward.18} parent=0 // loop_pre_header
    _
  $region3: #{decoder_forward.18} parent=0 // loop_header
    %s13 = sphi 0, %s17
    %p14 = scmp.ge.s32.totalorder %s13, 4
    %s20 = sphi 0, %s32
    %s21 = sphi 0, %s28
    %s22 = sphi 0, %s20
    %s23 = sphi 0, %s21
    %s24 = sphi 0, %s22
    %s25 = sphi 0, %s23
    %s35 = sphi 0, %s37
    %s38 = sphi 0, %s35
    %s39 = sphi 0, %s38
    %s55 = sphi 0, %s39
    %s59 = sphi 0, %s59
    %s61 = sphi 0, %s59
    %s62 = sphi 0, %s61
    %s76 = sphi 0, %s62
    %s80 = sphi 0, %s80
    %s82 = sphi 0, %s80
    %s83 = sphi 0, %s82
    %s97 = sphi 0, %s83
    %s103 = sphi 0, %s105
    %s106 = sphi 0, %s103
    %s107 = sphi 0, %s106
    %s123 = sphi 0, %s107
    %s129 = sphi 0, %s131
    %s132 = sphi 0, %s129
    %s133 = sphi 0, %s132
    %s149 = sphi 0, %s133
    %s155 = sphi 0, %s157
    %s158 = sphi 0, %s155
    %s159 = sphi 0, %s158
    %s175 = sphi 0, %s159
    %s179 = sphi 0, %s179
    %s181 = sphi 0, %s179
    %s182 = sphi 0, %s181
    %s196 = sphi 0, %s182
    %s202 = sphi 0, %s204
    %s205 = sphi 0, %s202
    %s206 = sphi 0, %s205
    %s222 = sphi 0, %s206
  $region4: #{decoder_forward.18} parent=0 // loop_header_branch
    %16 = sbr.rel (%p14) target = $region8
  $region5: #{decoder_forward.18} parent=0 // loop_body
    %s18 = ssub.s32 %s13, 1
    %s19 = ssub.s32 %s13, 2
    %s26 = sadd.s32 1, %s21
    %p27 = scmp.ge.s32.totalorder %s26, 1
    %s28 = scalar_select %p27, 0, %s26
    %s29 = sadd.s32 1, %s20
    %s30 = scalar_select %p27, %s29, %s20
    %p31 = scmp.ge.s32.totalorder %s30, 2
    %s32 = scalar_select %p31, 0, %s30
    %s33 = ssub.s32 %s20, %s32
    %p34 = scmp.eq.s32.totalorder %s33, 0
    %s36 = sadd.s32 %s35, 1
    %s37 = scalar_select %p34, %s35, %s36
    %p40 = pneg %p34
    %p41 = scmp.eq.s32.totalorder %s13, 1
    %p42 = por %p40, %p41
    %p43 = scmp.ne.s32.totalorder %s35, %s38
    %p44 = scmp.eq.s32.totalorder %s13, 0
    %p45 = por %p43, %p44
    %p46 = scmp.ne.s32.totalorder %s35, %s38
    %p47 = scmp.eq.s32.totalorder %s18, 1
    %p48 = por %p46, %p47
    %p49 = scmp.ne.s32.totalorder %s38, %s39
    %p50 = scmp.eq.s32.totalorder %s18, 0
    %p51 = por %p49, %p50
    %p52 = scmp.ne.s32.totalorder %s38, %s39
    %p53 = scmp.eq.s32.totalorder %s19, 1
    %p54 = por %p52, %p53
    %p56 = scmp.ne.s32.totalorder %s39, %s55
    %p57 = scmp.eq.s32.totalorder %s19, 0
    %p58 = por %p56, %p57
    %s60 = sadd.s32 %s59, 1
    %p63 = scmp.eq.s32.totalorder %s13, 1
    %p64 = scmp.ne.s32.totalorder %s59, %s61
    %p65 = scmp.eq.s32.totalorder %s13, 0
    %p66 = por %p64, %p65
    %p67 = scmp.ne.s32.totalorder %s59, %s61
    %p68 = scmp.eq.s32.totalorder %s18, 1
    %p69 = por %p67, %p68
    %p70 = scmp.ne.s32.totalorder %s61, %s62
    %p71 = scmp.eq.s32.totalorder %s18, 0
    %p72 = por %p70, %p71
    %p73 = scmp.ne.s32.totalorder %s61, %s62
    %p74 = scmp.eq.s32.totalorder %s19, 1
    %p75 = por %p73, %p74
    %p77 = scmp.ne.s32.totalorder %s62, %s76
    %p78 = scmp.eq.s32.totalorder %s19, 0
    %p79 = por %p77, %p78
    %s81 = sadd.s32 %s80, 1
    %p84 = scmp.eq.s32.totalorder %s13, 1
    %p85 = scmp.ne.s32.totalorder %s80, %s82
    %p86 = scmp.eq.s32.totalorder %s13, 0
    %p87 = por %p85, %p86
    %p88 = scmp.ne.s32.totalorder %s80, %s82
    %p89 = scmp.eq.s32.totalorder %s18, 1
    %p90 = por %p88, %p89
    %p91 = scmp.ne.s32.totalorder %s82, %s83
    %p92 = scmp.eq.s32.totalorder %s18, 0
    %p93 = por %p91, %p92
    %p94 = scmp.ne.s32.totalorder %s82, %s83
    %p95 = scmp.eq.s32.totalorder %s19, 1
    %p96 = por %p94, %p95
    %p98 = scmp.ne.s32.totalorder %s83, %s97
    %p99 = scmp.eq.s32.totalorder %s19, 0
    %p100 = por %p98, %p99
    %s101 = ssub.s32 %s21, %s28
    %p102 = scmp.eq.s32.totalorder %s101, 0
    %s104 = sadd.s32 %s103, 1
    %s105 = scalar_select %p102, %s103, %s104
    %p108 = pneg %p102
    %p109 = scmp.eq.s32.totalorder %s13, 1
    %p110 = por %p108, %p109
    %p111 = scmp.ne.s32.totalorder %s103, %s106
    %p112 = scmp.eq.s32.totalorder %s13, 0
    %p113 = por %p111, %p112
    %p114 = scmp.ne.s32.totalorder %s103, %s106
    %p115 = scmp.eq.s32.totalorder %s18, 1
    %p116 = por %p114, %p115
    %p117 = scmp.ne.s32.totalorder %s106, %s107
    %p118 = scmp.eq.s32.totalorder %s18, 0
    %p119 = por %p117, %p118
    %p120 = scmp.ne.s32.totalorder %s106, %s107
    %p121 = scmp.eq.s32.totalorder %s19, 1
    %p122 = por %p120, %p121
    %p124 = scmp.ne.s32.totalorder %s107, %s123
    %p125 = scmp.eq.s32.totalorder %s19, 0
    %p126 = por %p124, %p125
    %s127 = ssub.s32 %s21, %s28
    %p128 = scmp.eq.s32.totalorder %s127, 0
    %s130 = sadd.s32 %s129, 1
    %s131 = scalar_select %p128, %s129, %s130
    %p134 = pneg %p128
    %p135 = scmp.eq.s32.totalorder %s13, 1
    %p136 = por %p134, %p135
    %p137 = scmp.ne.s32.totalorder %s129, %s132
    %p138 = scmp.eq.s32.totalorder %s13, 0
    %p139 = por %p137, %p138
    %p140 = scmp.ne.s32.totalorder %s129, %s132
    %p141 = scmp.eq.s32.totalorder %s18, 1
    %p142 = por %p140, %p141
    %p143 = scmp.ne.s32.totalorder %s132, %s133
    %p144 = scmp.eq.s32.totalorder %s18, 0
    %p145 = por %p143, %p144
    %p146 = scmp.ne.s32.totalorder %s132, %s133
    %p147 = scmp.eq.s32.totalorder %s19, 1
    %p148 = por %p146, %p147
    %p150 = scmp.ne.s32.totalorder %s133, %s149
    %p151 = scmp.eq.s32.totalorder %s19, 0
    %p152 = por %p150, %p151
    %s153 = ssub.s32 %s21, %s28
    %p154 = scmp.eq.s32.totalorder %s153, 0
    %s156 = sadd.s32 %s155, 1
    %s157 = scalar_select %p154, %s155, %s156
    %p160 = pneg %p154
    %p161 = scmp.eq.s32.totalorder %s13, 1
    %p162 = por %p160, %p161
    %p163 = scmp.ne.s32.totalorder %s155, %s158
    %p164 = scmp.eq.s32.totalorder %s13, 0
    %p165 = por %p163, %p164
    %p166 = scmp.ne.s32.totalorder %s155, %s158
    %p167 = scmp.eq.s32.totalorder %s18, 1
    %p168 = por %p166, %p167
    %p169 = scmp.ne.s32.totalorder %s158, %s159
    %p170 = scmp.eq.s32.totalorder %s18, 0
    %p171 = por %p169, %p170
    %p172 = scmp.ne.s32.totalorder %s158, %s159
    %p173 = scmp.eq.s32.totalorder %s19, 1
    %p174 = por %p172, %p173
    %p176 = scmp.ne.s32.totalorder %s159, %s175
    %p177 = scmp.eq.s32.totalorder %s19, 0
    %p178 = por %p176, %p177
    %s180 = sadd.s32 %s179, 1
    %p183 = scmp.eq.s32.totalorder %s13, 1
    %p184 = scmp.ne.s32.totalorder %s179, %s181
    %p185 = scmp.eq.s32.totalorder %s13, 0
    %p186 = por %p184, %p185
    %p187 = scmp.ne.s32.totalorder %s179, %s181
    %p188 = scmp.eq.s32.totalorder %s18, 1
    %p189 = por %p187, %p188
    %p190 = scmp.ne.s32.totalorder %s181, %s182
    %p191 = scmp.eq.s32.totalorder %s18, 0
    %p192 = por %p190, %p191
    %p193 = scmp.ne.s32.totalorder %s181, %s182
    %p194 = scmp.eq.s32.totalorder %s19, 1
    %p195 = por %p193, %p194
    %p197 = scmp.ne.s32.totalorder %s182, %s196
    %p198 = scmp.eq.s32.totalorder %s19, 0
    %p199 = por %p197, %p198
    %s200 = ssub.s32 %s20, %s32
    %p201 = scmp.eq.s32.totalorder %s200, 0
    %s203 = sadd.s32 %s202, 1
    %s204 = scalar_select %p201, %s202, %s203
    %p207 = pneg %p201
    %p208 = scmp.eq.s32.totalorder %s13, 1
    %p209 = por %p207, %p208
    %p210 = scmp.ne.s32.totalorder %s202, %s205
    %p211 = scmp.eq.s32.totalorder %s13, 0
    %p212 = por %p210, %p211
    %p213 = scmp.ne.s32.totalorder %s202, %s205
    %p214 = scmp.eq.s32.totalorder %s18, 1
    %p215 = por %p213, %p214
    %p216 = scmp.ne.s32.totalorder %s205, %s206
    %p217 = scmp.eq.s32.totalorder %s18, 0
    %p218 = por %p216, %p217
    %p219 = scmp.ne.s32.totalorder %s205, %s206
    %p220 = scmp.eq.s32.totalorder %s19, 1
    %p221 = por %p219, %p220
    %p223 = scmp.ne.s32.totalorder %s206, %s222
    %p224 = scmp.eq.s32.totalorder %s19, 0
    %p225 = por %p223, %p224
    %p226 = scmp.le.s32.totalorder 1, %s13
    %p227 = scmp.lt.s32.totalorder %s13, 3
    %p228 = pnand %p226, %p227
    %p229 = pneg %p228
    // Predicated region
    $region9: #{decoder_forward.18} parent=5 // pred_check
      _
    $region10: #{decoder_forward.18} parent=5 // pred_check_branch
      %231 = sbr.rel (%p228) target = $region12
    $region11: #{decoder_forward.18} parent=5 // pred_region
      %s232 = ssub.s32 %s13, 1
      // Predicated region
      $region13: #{decoder_forward.18} parent=11 // pred_check
        %p233 = pneg %p72
      $region14: #{decoder_forward.18} parent=11 // pred_check_branch
        %235 = sbr.rel (%p233) target = $region16
      $region15: #{decoder_forward.18} parent=11 // pred_region
        _
      $region16: #{decoder_forward.18} parent=11 // pred_fallthru
        _
      // Predicated region
      $region17: #{decoder_forward.18} parent=11 // pred_check
        %p236 = pneg %p93
      $region18: #{decoder_forward.18} parent=11 // pred_check_branch
        %238 = sbr.rel (%p236) target = $region20
      $region19: #{decoder_forward.18} parent=11 // pred_region
        _
      $region20: #{decoder_forward.18} parent=11 // pred_fallthru
        _
      // Predicated region
      $region21: #{decoder_forward.18} parent=11 // pred_check
        %p239 = pneg %p119
      $region22: #{decoder_forward.18} parent=11 // pred_check_branch
        %241 = sbr.rel (%p239) target = $region24
      $region23: #{decoder_forward.18} parent=11 // pred_region
        %p242 = scmp.lt.s32.totalorder %s23, 0
        %s243 = scalar_select %p242, %s23, 0
        %s244 = smul.addr %s243, 4
        %s245 = scalar_lea.vmem %s3, %s244
      $region24: #{decoder_forward.18} parent=11 // pred_fallthru
        _
      // Predicated region
      $region25: #{decoder_forward.18} parent=11 // pred_check
        %p246 = pneg %p145
      $region26: #{decoder_forward.18} parent=11 // pred_check_branch
        %248 = sbr.rel (%p246) target = $region28
      $region27: #{decoder_forward.18} parent=11 // pred_region
        %p249 = scmp.lt.s32.totalorder %s23, 0
        %s250 = scalar_select %p249, %s23, 0
        %s251 = scalar_lea.vmem %s4, %s250
      $region28: #{decoder_forward.18} parent=11 // pred_fallthru
        _
      // Predicated region
      $region29: #{decoder_forward.18} parent=11 // pred_check
        %p252 = pneg %p171
      $region30: #{decoder_forward.18} parent=11 // pred_check_branch
        %254 = sbr.rel (%p252) target = $region32
      $region31: #{decoder_forward.18} parent=11 // pred_region
        %s255 = smul.u32 8, %s23
        %p256 = scmp.lt.s32.totalorder %s255, 7
        %s257 = scalar_select %p256, %s255, 7
        %s258 = smul.addr %s257, 4
        %s259 = scalar_lea.vmem %s5, %s258
        %s260 = smul.u32 8, %s23
      $region32: #{decoder_forward.18} parent=11 // pred_fallthru
        _
      // Predicated region
      $region33: #{decoder_forward.18} parent=11 // pred_check
        %p261 = pneg %p192
      $region34: #{decoder_forward.18} parent=11 // pred_check_branch
        %263 = sbr.rel (%p261) target = $region36
      $region35: #{decoder_forward.18} parent=11 // pred_region
        _
      $region36: #{decoder_forward.18} parent=11 // pred_fallthru
        _
    $region12: #{decoder_forward.18} parent=5 // pred_fallthru
      _
    %p264 = scmp.lt.s32.totalorder %s13, 2
    // Predicated region
    $region37: #{decoder_forward.18} parent=5 // pred_check
      %p265 = pneg %p264
    $region38: #{decoder_forward.18} parent=5 // pred_check_branch
      %267 = sbr.rel (%p265) target = $region40
    $region39: #{decoder_forward.18} parent=5 // pred_region
      // Predicated region
      $region41: #{decoder_forward.18} parent=39 // pred_check
        %p268 = pneg %p45
      $region42: #{decoder_forward.18} parent=39 // pred_check_branch
        %270 = sbr.rel (%p268) target = $region44
      $region43: #{decoder_forward.18} parent=39 // pred_region
        %p271 = scmp.lt.s32.totalorder %s20, 1
        %s272 = scalar_select %p271, %s20, 1
        %s273 = smul.addr %s272, 8
        %s274 = scalar_lea.vmem %s0, %s273
      $region44: #{decoder_forward.18} parent=39 // pred_fallthru
        _
    $region40: #{decoder_forward.18} parent=5 // pred_fallthru
      _
    %p275 = scmp.le.s32.totalorder 1, %s13
    %p276 = scmp.lt.s32.totalorder %s13, 3
    %p277 = pnand %p275, %p276
    %p278 = pneg %p277
    // Predicated region
    $region45: #{decoder_forward.18} parent=5 // pred_check
      _
    $region46: #{decoder_forward.18} parent=5 // pred_check_branch
      %280 = sbr.rel (%p277) target = $region48
    $region47: #{decoder_forward.18} parent=5 // pred_region
      %s281 = ssub.s32 %s13, 1
      %p282 = scmp.lt.s32.totalorder %s22, 1
      %s283 = scalar_select %p282, %s22, 1
      %s284 = smul.addr %s283, 8
      %s285 = scalar_lea.vmem %s0, %s284
      %p286 = pneg %p51
      %p287 = pneg %p48
      %p288 = pneg %p72
      %p289 = pneg %p69
      %p290 = pneg %p93
      %p291 = pneg %p90
      %p292 = scmp.lt.s32.totalorder %s23, 0
      %s293 = scalar_select %p292, %s23, 0
      %s294 = smul.addr %s293, 4
      %s295 = scalar_lea.vmem %s3, %s294
      %p296 = pneg %p119
      %p297 = pneg %p116
      %p298 = scmp.lt.s32.totalorder %s23, 0
      %s299 = scalar_select %p298, %s23, 0
      %s300 = scalar_lea.vmem %s4, %s299
      %p301 = pneg %p145
      %p302 = pneg %p142
      %s303 = smul.u32 8, %s23
      %p304 = scmp.lt.s32.totalorder %s303, 7
      %s305 = scalar_select %p304, %s303, 7
      %s306 = smul.addr %s305, 4
      %s307 = scalar_lea.vmem %s5, %s306
      %p308 = pneg %p171
      %p309 = pneg %p168
      %p310 = pneg %p192
      %p311 = pneg %p189
      %p312 = pneg %p218
      %p313 = pneg %p215
      %p314 = scmp.lt.s32.totalorder %s22, 1
      %s315 = scalar_select %p314, %s22, 1
      %s316 = smul.addr %s315, 8
      %s317 = scalar_lea.vmem %s7, %s316
      %p318 = scmp.lt.s32.totalorder %s22, 1
      %s319 = scalar_select %p318, %s22, 1
      %s320 = smul.addr %s319, 8
      %s321 = scalar_lea.vmem %s0, %s320
      %p322 = scmp.lt.s32.totalorder %s23, 0
      %s323 = scalar_select %p322, %s23, 0
      %s324 = smul.addr %s323, 4
      %s325 = scalar_lea.vmem %s3, %s324
      %p326 = scmp.lt.s32.totalorder %s23, 0
      %s327 = scalar_select %p326, %s23, 0
      %s328 = scalar_lea.vmem %s4, %s327
      %s329 = smul.u32 8, %s23
      %p330 = scmp.lt.s32.totalorder %s329, 7
      %s331 = scalar_select %p330, %s329, 7
      %s332 = smul.addr %s331, 4
      %s333 = scalar_lea.vmem %s5, %s332
      %s334 = smul.u32 8, %s23
      %p335 = scmp.lt.s32.totalorder %s22, 1
      %s336 = scalar_select %p335, %s22, 1
      %s337 = smul.addr %s336, 8
      %s338 = scalar_lea.vmem %s7, %s337
      %p340 = scmp.eq.s32.totalorder %s23, 0
      // Predicated region
      $region49: #{decoder_forward.18} parent=47 // pred_check
        %p341 = pneg %p340
      $region50: #{decoder_forward.18} parent=47 // pred_check_branch
        %343 = sbr.rel (%p341) target = $region52
      $region51: #{decoder_forward.18} parent=47 // pred_region
        %v344 = vld [vmem:[%s321] sm:$0xff]
        %vm345 = vcmask 261120
        %v346 = vsel %vm345, %v344, 0.0
        %347 = vadd.xlane.f32.xlu0 %v346
        %v348 = vpop.xlane.xlu0 %347
        %v349 = vrcp.pop 32.0
        %v350 = vmul.f32 %v348, %v349
        %v351 = vsub.f32 %v344, %v350
        %v352 = vmul.f32 %v351, %v351
        %v353 = vsel %vm345, %v352, 0.0
        %354 = vadd.xlane.f32.xlu0 %v353
        %v355 = vpop.xlane.xlu0 %354
        %v356 = vmul.f32 %v355, %v349
        %v357 = vadd.f32 %v356, 1e-05
        %v358 = vrsqrt.pop %v357
        %v359 = vmul.f32 %v351, %v358
        %v360 = vld [vmem:[%s1] sm:$0x1]
        %v362 = vlaneseq
        %v363 = vshrl.u32 %v362, 7
        %v364 = vsub.s32 0, %v363
        %v365 = vrot.slane %v360, %v364
        %v367 = vmul.f32 %v359, %v365
        %v368 = vld [vmem:[%s2] sm:$0x1]
        %v370 = vlaneseq
        %v371 = vshrl.u32 %v370, 7
        %v372 = vsub.s32 0, %v371
        %v373 = vrot.slane %v368, %v372
        %v375 = vadd.f32 %v367, %v373
        %376 = vst.msk [vmem:[#allocation2] sm:$0xff] %vm345, %v375
        %v377 = vld [vmem:[%s6] sm:$0x1]
        %v379 = vlaneseq
        %v380 = vshrl.u32 %v379, 7
        %v381 = vsub.s32 0, %v380
        %v382 = vrot.slane %v377, %v381
        %v384 = vadd.f32 %v375, %v382
        %385 = vst.msk [vmem:[#allocation3] sm:$0xff] %vm345, %v384
      $region52: #{decoder_forward.18} parent=47 // pred_fallthru
        _
      %v386 = vld [vmem:[#allocation2] sm:$0xff]
      %v387 = vpack.c.bf16 %v386, %v386
      %v388 = vld [vmem:[%s325] sm:$0xf]
      %v389 = vld [vmem:[%s325 + $0x4] sm:$0xf]
      %v390 = vld [vmem:[%s325 + $0x8] sm:$0xf]
      %v391 = vld [vmem:[%s325 + $0xc] sm:$0xf]
      %v392 = vld [vmem:[%s328] sm:$0x1]
      %v394 = vlaneseq
      %v395 = vshrl.u32 %v394, 7
      %v396 = vsub.s32 0, %v395
      %v397 = vrot.slane %v392, %v396
      %v403 = vunpack.c.l.b16 %v388
      %v404 = vunpack.c.l.b16 %v389
      %v405 = vunpack.c.l.b16 %v390
      %v406 = vunpack.c.l.b16 %v391
      %v407 = vpack.c.b16 %v404, %v403
      %v408 = vpack.c.b16 %v406, %v405
      %vm411 = vcmask 261120
      %v413 = vsel %vm411, %v387, 0
      %415 = vmatprep.subr.bf16.mxu0 0
      %416 = vmatpush1.bf16.msra.mxu0 %v407
      %417 = vmatprep.subr.bf16.mxu0 0
      %418 = vmatpush1.bf16.msra.mxu0 %v408
      %419 = vmatprep.subr.bf16.mxu0 0
      %420 = vmatpush1.bf16.msra.mxu0 0
      %421 = vmatprep.subr.bf16.mxu0 0
      %422 = vmatpush1.bf16.msra.mxu0 0
      %423 = vmatprep.subr.bf16.mxu0 0
      %424 = vmatpush1.bf16.msra.mxu0 0
      %425 = vmatprep.subr.bf16.mxu0 0
      %426 = vmatpush1.bf16.msra.mxu0 0
      %427 = vmatprep.subr.bf16.mxu0 0
      %428 = vmatpush1.bf16.msra.mxu0 0
      %429 = vmatprep.subr.bf16.mxu0 0
      %430 = vmatpush1.bf16.msra.mxu0 0
      %431 = vmatprep.subr.bf16.mxu0 0
      %432 = vmatpush1.bf16.msra.mxu0 0
      %433 = vmatprep.subr.bf16.mxu0 0
      %434 = vmatpush1.bf16.msra.mxu0 0
      %435 = vmatprep.subr.bf16.mxu0 0
      %436 = vmatpush1.bf16.msra.mxu0 0
      %437 = vmatprep.subr.bf16.mxu0 0
      %438 = vmatpush1.bf16.msra.mxu0 0
      %439 = vmatprep.subr.bf16.mxu0 0
      %440 = vmatpush1.bf16.msra.mxu0 0
      %441 = vmatprep.subr.bf16.mxu0 0
      %442 = vmatpush1.bf16.msra.mxu0 0
      %443 = vmatprep.subr.bf16.mxu0 0
      %444 = vmatpush1.bf16.msra.mxu0 0
      %445 = vmatprep.subr.bf16.mxu0 0
      %446 = vmatpush1.bf16.msra.mxu0 0
      %447 = vmatprep.mubr.bf16.mxu0 0
      %448 = vmatmul.mubr.bf16.gmra.mrb[0].mxu0 %v413
      %v449 = vpop.f32.mrb[0].mxu0
      %v450 = vadd.f32 %v397, %v449
      %v451 = vpop.f32.mrb[0].mxu0
      %v452 = vpop.f32.mrb[0].mxu0
      %v453 = vpop.f32.mrb[0].mxu0
      %454 = vdwg.mxu0
      %v455 = vmax.f32 %v450, 0.0
      %v456 = vld [vmem:[#allocation3] sm:$0xff]
      %v457 = vpack.c.bf16 %v455, %v455
      %v458 = vld [vmem:[%s333] sm:$0xf]
      %v459 = vld [vmem:[%s333 + $0x4] sm:$0xf]
      %v460 = vld [vmem:[%s333 + $0x8] sm:$0xf]
      %v461 = vld [vmem:[%s333 + $0xc] sm:$0xf]
      %v462 = vld [vmem:[%s333 + $0x10] sm:$0xf]
      %v463 = vld [vmem:[%s333 + $0x14] sm:$0xf]
      %v464 = vld [vmem:[%s333 + $0x18] sm:$0xf]
      %v465 = vld [vmem:[%s333 + $0x1c] sm:$0xf]
      %v474 = vunpack.c.l.b16 %v458
      %v475 = vunpack.c.l.b16 %v459
      %v476 = vunpack.c.l.b16 %v460
      %v477 = vunpack.c.l.b16 %v461
      %v478 = vunpack.c.l.b16 %v462
      %v479 = vunpack.c.l.b16 %v463
      %v480 = vunpack.c.l.b16 %v464
      %v481 = vunpack.c.l.b16 %v465
      %v482 = vpack.c.b16 %v475, %v474
      %v483 = vpack.c.b16 %v477, %v476
      %v484 = vpack.c.b16 %v479, %v478
      %v485 = vpack.c.b16 %v481, %v480
      %vm490 = vcmask 523264
      %v492 = vsel %vm490, %v457, 0
      %494 = vmatprep.subr.bf16.mxu0 0
      %495 = vmatpush1.bf16.msra.mxu0 %v482
      %496 = vmatprep.subr.bf16.mxu0 0
      %497 = vmatpush1.bf16.msra.mxu0 %v483
      %498 = vmatprep.subr.bf16.mxu0 0
      %499 = vmatpush1.bf16.msra.mxu0 %v484
      %500 = vmatprep.subr.bf16.mxu0 0
      %501 = vmatpush1.bf16.msra.mxu0 %v485
      %502 = vmatprep.subr.bf16.mxu0 0
      %503 = vmatpush1.bf16.msra.mxu0 0
      %504 = vmatprep.subr.bf16.mxu0 0
      %505 = vmatpush1.bf16.msra.mxu0 0
      %506 = vmatprep.subr.bf16.mxu0 0
      %507 = vmatpush1.bf16.msra.mxu0 0
      %508 = vmatprep.subr.bf16.mxu0 0
      %509 = vmatpush1.bf16.msra.mxu0 0
      %510 = vmatprep.subr.bf16.mxu0 0
      %511 = vmatpush1.bf16.msra.mxu0 0
      %512 = vmatprep.subr.bf16.mxu0 0
      %513 = vmatpush1.bf16.msra.mxu0 0
      %514 = vmatprep.subr.bf16.mxu0 0
      %515 = vmatpush1.bf16.msra.mxu0 0
      %516 = vmatprep.subr.bf16.mxu0 0
      %517 = vmatpush1.bf16.msra.mxu0 0
      %518 = vmatprep.subr.bf16.mxu0 0
      %519 = vmatpush1.bf16.msra.mxu0 0
      %520 = vmatprep.subr.bf16.mxu0 0
      %521 = vmatpush1.bf16.msra.mxu0 0
      %522 = vmatprep.subr.bf16.mxu0 0
      %523 = vmatpush1.bf16.msra.mxu0 0
      %524 = vmatprep.subr.bf16.mxu0 0
      %525 = vmatpush1.bf16.msra.mxu0 0
      %526 = vmatprep.mubr.bf16.mxu0 0
      %527 = vmatmul.mubr.bf16.gmra.mrb[0].mxu0 %v492
      %v528 = vpop.f32.mrb[0].mxu0
      %v529 = vadd.f32 0.0, %v528
      %v530 = vpop.f32.mrb[0].mxu0
      %v531 = vpop.f32.mrb[0].mxu0
      %v532 = vpop.f32.mrb[0].mxu0
      %533 = vdwg.mxu0
      %v534 = vadd.f32 %v456, %v529
      %535 = vst.msk [vmem:[#allocation3] sm:$0xff] %vm411, %v534
      // Predicated region
      $region53: #{decoder_forward.18} parent=47 // pred_check
        %p536 = pneg %p340
      $region54: #{decoder_forward.18} parent=47 // pred_check_branch
        %538 = sbr.rel (%p536) target = $region56
      $region55: #{decoder_forward.18} parent=47 // pred_region
        %v539 = vld [vmem:[#allocation3] sm:$0xff]
        %540 = vst.msk [vmem:[%s338] sm:$0xff] %vm411, %v539
      $region56: #{decoder_forward.18} parent=47 // pred_fallthru
        _
      %p541 = scmp.lt.s32.totalorder %s22, 1
      %s542 = scalar_select %p541, %s22, 1
      %s543 = smul.addr %s542, 8
      %s544 = scalar_lea.vmem %s7, %s543
      // Predicated region
      $region57: #{decoder_forward.18} parent=47 // pred_check
        %p545 = pneg %p215
      $region58: #{decoder_forward.18} parent=47 // pred_check_branch
        %547 = sbr.rel (%p545) target = $region60
      $region59: #{decoder_forward.18} parent=47 // pred_region
        _
      $region60: #{decoder_forward.18} parent=47 // pred_fallthru
        _
    $region48: #{decoder_forward.18} parent=5 // pred_fallthru
      _
    %p548 = scmp.le.s32.totalorder 2, %s13
    // Predicated region
    $region61: #{decoder_forward.18} parent=5 // pred_check
      %p549 = pneg %p548
    $region62: #{decoder_forward.18} parent=5 // pred_check_branch
      %551 = sbr.rel (%p549) target = $region64
    $region63: #{decoder_forward.18} parent=5 // pred_region
      %s552 = ssub.s32 %s13, 2
      // Predicated region
      $region65: #{decoder_forward.18} parent=63 // pred_check
        %p553 = pneg %p221
      $region66: #{decoder_forward.18} parent=63 // pred_check_branch
        %555 = sbr.rel (%p553) target = $region68
      $region67: #{decoder_forward.18} parent=63 // pred_region
        %p556 = scmp.lt.s32.totalorder %s24, 1
        %s557 = scalar_select %p556, %s24, 1
        %s558 = smul.addr %s557, 8
        %s559 = scalar_lea.vmem %s7, %s558
      $region68: #{decoder_forward.18} parent=63 // pred_fallthru
        _
    $region64: #{decoder_forward.18} parent=5 // pred_fallthru
      _
  $region6: #{decoder_forward.18} parent=0 // loop_footer
    %s17 = sadd.s32 1, %s13
  $region7: #{decoder_forward.18} parent=0 // loop_footer_branch
    %12 = sbr.rel target = $region3
  $region8: #{decoder_forward.18} parent=0 // loop_exit
    _

</llo_original>
